<compile_context>
chip_gen: v5e
topology: v5e:2x2
jax: 0.10.0
libtpu: 0.0.40
codegen_flags: <defaults>
</compile_context>

<pallas_src>
import jax
import jax.numpy as jnp
from jax.experimental import pallas as pl
from jax.experimental.pallas import tpu as pltpu

PRIOR_MU = 0.0
PRIOR_SIGMA = 1.0


def _softmax(x):
    m = jnp.max(x, axis=-1, keepdims=True)
    e = jnp.exp(x - m)
    return e * pl.reciprocal(jnp.sum(e, axis=-1, keepdims=True), approx=True)


def vae_kernel(data_ref, eps_ref,
               w1_ref, b1_ref, wmusig_ref, bmusig_ref, wg_ref, bg_ref,
               recon_ref, stats_ref):
    data_bf16 = data_ref[...]                              # (TB, X)  bf16
    eps = eps_ref[...]                                     # (TB, Z)  f32
    z_dim = eps.shape[-1]

    # ----- encoder: en1 = softmax(data @ W1 + b1)  (bf16 MXU, f32 accumulate) -----
    h = jnp.dot(data_bf16, w1_ref[...],
                preferred_element_type=jnp.float32) + b1_ref[...]
    en1 = _softmax(h)

    # ----- fused mu / sigma projection: one (H, 2Z) matmul, split on lane 128 -----
    musig = jnp.dot(en1.astype(jnp.bfloat16), wmusig_ref[...],
                    preferred_element_type=jnp.float32) + bmusig_ref[...]
    mu = musig[:, :z_dim]
    sigma = musig[:, z_dim:]

    # ----- reparameterized gaussian sample, then softmax -----
    z = _softmax(mu + sigma * eps)

    # ----- decoder -----
    recon = _softmax(jnp.dot(z.astype(jnp.bfloat16), wg_ref[...],
                             preferred_element_type=jnp.float32) + bg_ref[...])
    recon_ref[...] = recon.astype(recon_ref.dtype)         # bf16 writeback

    # ----- per-tile partial sums for KLD and reconstruction MSE (all f32) -----
    mean_sq = (mu - PRIOR_MU) * (mu - PRIOR_MU)
    std_sq = (sigma - PRIOR_SIGMA) * (sigma - PRIOR_SIGMA)
    # NOTE: log(std_sq) is -inf when sigma == PRIOR_SIGMA exactly; this matches
    # the reference formula (no clamp added).
    kld_sum = jnp.sum(0.5 * (mean_sq + std_sq - 1.0 - jnp.log(std_sq)))
    diff = data_bf16.astype(jnp.float32) - recon
    rec_sum = jnp.sum(diff * diff)

    # single lane-dense stats tile: lane 0 = kld partial sum, lane 1 = rec partial sum
    lane = jax.lax.broadcasted_iota(jnp.int32, (1, 8, 128), 2)
    stats = jnp.where(lane == 0, kld_sum,
                      jnp.where(lane == 1, rec_sum, 0.0))
    stats_ref[...] = stats


def vae_forward(data, eps, params, *, tb=None):
    """data: f32 or bf16 (B, X); eps: f32 (B, Z); params: bf16 weights / f32 biases.

    tb: batch tile. Default B//2 -> 2-step parallel grid (fills both v7x TCs;
    on single-TC v5e/v6e the one extra step costs ~0.35 us, negligible).
    """
    B, x_dim = data.shape
    z_dim = eps.shape[-1]
    w1, b1, wmusig, bmusig, wg, bg = params
    h_dim = w1.shape[-1]

    if tb is None:
        tb = B // 2 if (B % 2 == 0 and (B // 2) % 8 == 0) else B
    assert B % tb == 0, "batch must be a multiple of the batch tile"
    assert z_dim % 128 == 0, "keep the mu/sigma lane split 128-aligned"
    num_tiles = pl.cdiv(B, tb)

    data_bf16 = data.astype(jnp.bfloat16)

    grid_spec = pltpu.PrefetchScalarGridSpec(
        num_scalar_prefetch=0,
        grid=(num_tiles,),
        in_specs=[
            pl.BlockSpec((tb, x_dim), lambda i: (i, 0)),          # data (tiled, bf16)
            pl.BlockSpec((tb, z_dim), lambda i: (i, 0)),          # eps  (tiled, f32)
            pl.BlockSpec((x_dim, h_dim), lambda i: (0, 0)),       # W1       (resident)
            pl.BlockSpec((1, h_dim), lambda i: (0, 0)),           # b1       (resident)
            pl.BlockSpec((h_dim, 2 * z_dim), lambda i: (0, 0)),   # Wmu|Wsig (resident)
            pl.BlockSpec((1, 2 * z_dim), lambda i: (0, 0)),       # bmu|bsig (resident)
            pl.BlockSpec((z_dim, x_dim), lambda i: (0, 0)),       # Wg       (resident)
            pl.BlockSpec((1, x_dim), lambda i: (0, 0)),           # bg       (resident)
        ],
        out_specs=[
            pl.BlockSpec((tb, x_dim), lambda i: (i, 0)),          # recon (tiled, bf16)
            pl.BlockSpec((1, 8, 128), lambda i: (i, 0, 0)),       # per-tile stats (f32)
        ],
    )
    out_shape = (
        jax.ShapeDtypeStruct((B, x_dim), jnp.bfloat16),
        jax.ShapeDtypeStruct((num_tiles, 8, 128), jnp.float32),
    )

    # Advisory cost hint so XLA overlaps this tiny call with surrounding ops.
    flops = 2 * B * (x_dim * h_dim + h_dim * 2 * z_dim + z_dim * x_dim)
    transcendentals = B * (h_dim + z_dim + x_dim) + B * z_dim + 3 * B
    bytes_accessed = (B * x_dim * 2 + B * z_dim * 4 + B * x_dim * 2
                      + num_tiles * 8 * 128 * 4
                      + (x_dim * h_dim + h_dim * 2 * z_dim + z_dim * x_dim) * 2
                      + (h_dim + 2 * z_dim + x_dim) * 4)
    cost = pl.CostEstimate(flops=flops, transcendentals=transcendentals,
                           bytes_accessed=bytes_accessed)

    recon, stats = pl.pallas_call(
        vae_kernel,
        grid_spec=grid_spec,
        out_shape=out_shape,
        cost_estimate=cost,
        compiler_params=pltpu.CompilerParams(
            dimension_semantics=("parallel",)),
    )(data_bf16, eps, w1, b1, wmusig, bmusig, wg, bg)

    # Finalize scalar losses from per-tile partial sums (wrapper-side reductions).
    kld = jnp.sum(stats[:, 0, 0]) / jnp.float32(B * z_dim)
    rec = jnp.sum(stats[:, 0, 1]) / jnp.float32(B * x_dim)
    loss = kld - rec
    return recon, kld, rec, loss


def vae_reference(data, eps, w1, b1, wmu, bmu, wsig, bsig, wg, bg):
    """Pure-JAX f32 reference matching the PyTorch forward."""
    en1 = jax.nn.softmax(data @ w1 + b1, axis=-1)
    mu = en1 @ wmu + bmu
    sigma = en1 @ wsig + bsig
    z = jax.nn.softmax(mu + sigma * eps, axis=-1)
    recon = jax.nn.softmax(z @ wg + bg, axis=-1)
    mean_sq = (mu - PRIOR_MU) ** 2
    std_sq = (sigma - PRIOR_SIGMA) ** 2
    kld = jnp.mean(0.5 * (mean_sq + std_sq - 1.0 - jnp.log(std_sq)))
    rec = jnp.mean((data - recon) ** 2)
    return recon, kld, rec, kld - rec


def init_linear(key, in_dim, out_dim):
    # Mimic torch.nn.Linear default init: U(-1/sqrt(in), 1/sqrt(in)).
    # Returned weight is already transposed to (in_dim, out_dim).
    kw, kb = jax.random.split(key)
    bound = 1.0 / jnp.sqrt(jnp.float32(in_dim))
    w = jax.random.uniform(kw, (in_dim, out_dim), jnp.float32, -bound, bound)
    b = jax.random.uniform(kb, (1, out_dim), jnp.float32, -bound, bound)
    return w, b


if __name__ == "__main__":
    # Batch lifted so TB = B/2 = 256 fills the MXU rows and keeps a 2-step
    # parallel grid for v7x's two TensorCores; feature dims stay small.
    B, X_DIM, H_DIM, Z_DIM = 512, 256, 256, 128

    key = jax.random.PRNGKey(0)
    k_data, k_eps, k1, k2, k3, k4 = jax.random.split(key, 6)

    data = jax.random.normal(k_data, (B, X_DIM), jnp.float32)
    # eps_from(prior_mu, prior_sigma, sigma.size())  ->  mu + randn * sigma
    eps = PRIOR_MU + PRIOR_SIGMA * jax.random.normal(k_eps, (B, Z_DIM), jnp.float32)

    w1_f, b1 = init_linear(k1, X_DIM, H_DIM)       # enc.fcEn1
    wmu_f, bmu = init_linear(k2, H_DIM, Z_DIM)     # enc.fcMiu
    wsig_f, bsig = init_linear(k3, H_DIM, Z_DIM)   # enc.fcSigma
    wg_f, bg = init_linear(k4, Z_DIM, X_DIM)       # dec.fcG1

    # bf16 weights for the kernel (halves weight DMA); biases stay f32.
    w1 = w1_f.astype(jnp.bfloat16)
    wg = wg_f.astype(jnp.bfloat16)
    wmusig = jnp.concatenate([wmu_f, wsig_f], axis=1).astype(jnp.bfloat16)
    bmusig = jnp.concatenate([bmu, bsig], axis=1)

    params = (w1, b1, wmusig, bmusig, wg, bg)

    recon, kld, rec_loss, loss = vae_forward(data, eps, params)  # tb defaults to B//2
    jax.block_until_ready((recon, kld, rec_loss, loss))

    # ----- sanity checks -----
    assert recon.shape == (B, X_DIM)
    recon_f32 = recon.astype(jnp.float32)
    # softmax rows sum to 1 (approx reciprocal on EUP + bf16 output -> loose tol)
    assert jnp.allclose(jnp.sum(recon_f32, axis=-1), 1.0, atol=2e-3)
    # loss identity
    assert jnp.allclose(loss, kld - rec_loss, atol=1e-5)
    assert bool(jnp.isfinite(loss))

    # f32 pure-JAX reference (loose tolerances: kernel matmuls run in bf16,
    # data/recon streamed in bf16)
    recon_r, kld_r, rec_r, loss_r = vae_reference(
        data, eps, w1_f, b1, wmu_f, bmu, wsig_f, bsig, wg_f, bg)
    assert jnp.max(jnp.abs(recon_f32 - recon_r)) < 2e-3
    assert jnp.allclose(rec_loss, rec_r, rtol=1e-2, atol=1e-3)
    assert jnp.allclose(kld, kld_r, rtol=1e-1, atol=1e-3)

    print("KERNEL_OK")
</pallas_src>

<mosaic_0001>
module attributes {stable_mosaic.version = 11 : i64} {
  func.func @vae_kernel(%arg0: i32, %arg1: memref<256x256xbf16, #tpu.memory_space<vmem>>, %arg2: memref<256x128xf32, #tpu.memory_space<vmem>>, %arg3: memref<256x256xbf16, #tpu.memory_space<vmem>>, %arg4: memref<1x256xf32, #tpu.memory_space<vmem>>, %arg5: memref<256x256xbf16, #tpu.memory_space<vmem>>, %arg6: memref<1x256xf32, #tpu.memory_space<vmem>>, %arg7: memref<128x256xbf16, #tpu.memory_space<vmem>>, %arg8: memref<1x256xf32, #tpu.memory_space<vmem>>, %arg9: memref<256x256xbf16, #tpu.memory_space<vmem>>, %arg10: memref<1x8x128xf32, #tpu.memory_space<vmem>>) attributes {dimension_semantics = [#tpu.dimension_semantics<parallel>], iteration_bounds = array<i64: 2>, scalar_prefetch = 0 : i64, scratch_operands = 0 : i64, tpu.core_type = #tpu.core_type<tc>, window_params = [{transform_indices = @transform_0, window_bounds = array<i64: 256, 256>}, {transform_indices = @transform_1, window_bounds = array<i64: 256, 128>}, {pipeline_mode = #tpu.pipeline_mode<synchronous>, transform_indices = @transform_2, window_bounds = array<i64: 256, 256>}, {pipeline_mode = #tpu.pipeline_mode<synchronous>, transform_indices = @transform_3, window_bounds = array<i64: 1, 256>}, {pipeline_mode = #tpu.pipeline_mode<synchronous>, transform_indices = @transform_4, window_bounds = array<i64: 256, 256>}, {pipeline_mode = #tpu.pipeline_mode<synchronous>, transform_indices = @transform_5, window_bounds = array<i64: 1, 256>}, {pipeline_mode = #tpu.pipeline_mode<synchronous>, transform_indices = @transform_6, window_bounds = array<i64: 128, 256>}, {pipeline_mode = #tpu.pipeline_mode<synchronous>, transform_indices = @transform_7, window_bounds = array<i64: 1, 256>}, {transform_indices = @transform_8, window_bounds = array<i64: 256, 256>}, {transform_indices = @transform_9, window_bounds = array<i64: 1, 8, 128>}]} {
    %c0 = arith.constant 0 : index
    %c0_0 = arith.constant 0 : index
    %0 = vector.load %arg1[%c0, %c0_0] : memref<256x256xbf16, #tpu.memory_space<vmem>>, vector<256x256xbf16>
    %c0_1 = arith.constant 0 : index
    %c0_2 = arith.constant 0 : index
    %1 = vector.load %arg2[%c0_1, %c0_2] : memref<256x128xf32, #tpu.memory_space<vmem>>, vector<256x128xf32>
    %c0_3 = arith.constant 0 : index
    %c0_4 = arith.constant 0 : index
    %2 = vector.load %arg3[%c0_3, %c0_4] : memref<256x256xbf16, #tpu.memory_space<vmem>>, vector<256x256xbf16>
    %cst = arith.constant dense<0.000000e+00> : vector<256x256xf32>
    %3 = tpu.matmul %0, %2, %cst {dimension_numbers = #tpu.dot_dimension_numbers<[1], [0], [0], [1], [0, 0, 1, 1], [], []>} : vector<256x256xbf16>, vector<256x256xbf16>, vector<256x256xf32> -> vector<256x256xf32>
    %c0_5 = arith.constant 0 : index
    %c0_6 = arith.constant 0 : index
    %4 = vector.load %arg4[%c0_5, %c0_6] : memref<1x256xf32, #tpu.memory_space<vmem>>, vector<1x256xf32>
    %5 = vector.broadcast %4 : vector<1x256xf32> to vector<256x256xf32>
    %6 = arith.addf %3, %5 : vector<256x256xf32>
    %cst_7 = arith.constant dense<0xFF800000> : vector<256xf32>
    %7 = vector.multi_reduction <maximumf>, %6, %cst_7 [1] : vector<256x256xf32> to vector<256xf32>
    %8 = vector.shape_cast %7 : vector<256xf32> to vector<256x1xf32>
    %9 = vector.broadcast %8 : vector<256x1xf32> to vector<256x256xf32>
    %10 = arith.subf %6, %9 : vector<256x256xf32>
    %11 = math.exp %10 : vector<256x256xf32>
    %cst_8 = arith.constant dense<0.000000e+00> : vector<256xf32>
    %12 = vector.multi_reduction <add>, %11, %cst_8 [1] : vector<256x256xf32> to vector<256xf32>
    %13 = vector.shape_cast %12 : vector<256xf32> to vector<256x1xf32>
    %14 = tpu.reciprocal %13 {approx = true} : vector<256x1xf32> -> vector<256x1xf32>
    %15 = vector.broadcast %14 : vector<256x1xf32> to vector<256x256xf32>
    %16 = arith.mulf %11, %15 : vector<256x256xf32>
    %17 = arith.truncf %16 : vector<256x256xf32> to vector<256x256xbf16>
    %c0_9 = arith.constant 0 : index
    %c0_10 = arith.constant 0 : index
    %18 = vector.load %arg5[%c0_9, %c0_10] : memref<256x256xbf16, #tpu.memory_space<vmem>>, vector<256x256xbf16>
    %cst_11 = arith.constant dense<0.000000e+00> : vector<256x256xf32>
    %19 = tpu.matmul %17, %18, %cst_11 {dimension_numbers = #tpu.dot_dimension_numbers<[1], [0], [0], [1], [0, 0, 1, 1], [], []>} : vector<256x256xbf16>, vector<256x256xbf16>, vector<256x256xf32> -> vector<256x256xf32>
    %c0_12 = arith.constant 0 : index
    %c0_13 = arith.constant 0 : index
    %20 = vector.load %arg6[%c0_12, %c0_13] : memref<1x256xf32, #tpu.memory_space<vmem>>, vector<1x256xf32>
    %21 = vector.broadcast %20 : vector<1x256xf32> to vector<256x256xf32>
    %22 = arith.addf %19, %21 : vector<256x256xf32>
    %23 = vector.extract_strided_slice %22 {offsets = [0, 0], sizes = [256, 128], strides = [1, 1]} : vector<256x256xf32> to vector<256x128xf32>
    %24 = vector.extract_strided_slice %22 {offsets = [0, 128], sizes = [256, 128], strides = [1, 1]} : vector<256x256xf32> to vector<256x128xf32>
    %25 = arith.mulf %24, %1 : vector<256x128xf32>
    %26 = arith.addf %23, %25 : vector<256x128xf32>
    %cst_14 = arith.constant dense<0xFF800000> : vector<256xf32>
    %27 = vector.multi_reduction <maximumf>, %26, %cst_14 [1] : vector<256x128xf32> to vector<256xf32>
    %28 = vector.shape_cast %27 : vector<256xf32> to vector<256x1xf32>
    %29 = vector.broadcast %28 : vector<256x1xf32> to vector<256x128xf32>
    %30 = arith.subf %26, %29 : vector<256x128xf32>
    %31 = math.exp %30 : vector<256x128xf32>
    %cst_15 = arith.constant dense<0.000000e+00> : vector<256xf32>
    %32 = vector.multi_reduction <add>, %31, %cst_15 [1] : vector<256x128xf32> to vector<256xf32>
    %33 = vector.shape_cast %32 : vector<256xf32> to vector<256x1xf32>
    %34 = tpu.reciprocal %33 {approx = true} : vector<256x1xf32> -> vector<256x1xf32>
    %35 = vector.broadcast %34 : vector<256x1xf32> to vector<256x128xf32>
    %36 = arith.mulf %31, %35 : vector<256x128xf32>
    %37 = arith.truncf %36 : vector<256x128xf32> to vector<256x128xbf16>
    %c0_16 = arith.constant 0 : index
    %c0_17 = arith.constant 0 : index
    %38 = vector.load %arg7[%c0_16, %c0_17] : memref<128x256xbf16, #tpu.memory_space<vmem>>, vector<128x256xbf16>
    %cst_18 = arith.constant dense<0.000000e+00> : vector<256x256xf32>
    %39 = tpu.matmul %37, %38, %cst_18 {dimension_numbers = #tpu.dot_dimension_numbers<[1], [0], [0], [1], [0, 0, 1, 1], [], []>} : vector<256x128xbf16>, vector<128x256xbf16>, vector<256x256xf32> -> vector<256x256xf32>
    %c0_19 = arith.constant 0 : index
    %c0_20 = arith.constant 0 : index
    %40 = vector.load %arg8[%c0_19, %c0_20] : memref<1x256xf32, #tpu.memory_space<vmem>>, vector<1x256xf32>
    %41 = vector.broadcast %40 : vector<1x256xf32> to vector<256x256xf32>
    %42 = arith.addf %39, %41 : vector<256x256xf32>
    %cst_21 = arith.constant dense<0xFF800000> : vector<256xf32>
    %43 = vector.multi_reduction <maximumf>, %42, %cst_21 [1] : vector<256x256xf32> to vector<256xf32>
    %44 = vector.shape_cast %43 : vector<256xf32> to vector<256x1xf32>
    %45 = vector.broadcast %44 : vector<256x1xf32> to vector<256x256xf32>
    %46 = arith.subf %42, %45 : vector<256x256xf32>
    %47 = math.exp %46 : vector<256x256xf32>
    %cst_22 = arith.constant dense<0.000000e+00> : vector<256xf32>
    %48 = vector.multi_reduction <add>, %47, %cst_22 [1] : vector<256x256xf32> to vector<256xf32>
    %49 = vector.shape_cast %48 : vector<256xf32> to vector<256x1xf32>
    %50 = tpu.reciprocal %49 {approx = true} : vector<256x1xf32> -> vector<256x1xf32>
    %51 = vector.broadcast %50 : vector<256x1xf32> to vector<256x256xf32>
    %52 = arith.mulf %47, %51 : vector<256x256xf32>
    %53 = arith.truncf %52 : vector<256x256xf32> to vector<256x256xbf16>
    %c0_23 = arith.constant 0 : index
    %c0_24 = arith.constant 0 : index
    %54 = vector.load %arg9[%c0_23, %c0_24] : memref<256x256xbf16, #tpu.memory_space<vmem>>, vector<256x256xbf16>
    tpu.vector_store %arg9[%c0_23, %c0_24], %53 {strides = array<i32>} : memref<256x256xbf16, #tpu.memory_space<vmem>>, vector<256x256xbf16>,
    %cst_25 = arith.constant 0.000000e+00 : f32
    %55 = vector.broadcast %cst_25 : f32 to vector<256x128xf32>
    %56 = arith.subf %23, %55 : vector<256x128xf32>
    %cst_26 = arith.constant 0.000000e+00 : f32
    %57 = vector.broadcast %cst_26 : f32 to vector<256x128xf32>
    %58 = arith.subf %23, %57 : vector<256x128xf32>
    %59 = arith.mulf %56, %58 : vector<256x128xf32>
    %cst_27 = arith.constant 1.000000e+00 : f32
    %60 = vector.broadcast %cst_27 : f32 to vector<256x128xf32>
    %61 = arith.subf %24, %60 : vector<256x128xf32>
    %cst_28 = arith.constant 1.000000e+00 : f32
    %62 = vector.broadcast %cst_28 : f32 to vector<256x128xf32>
    %63 = arith.subf %24, %62 : vector<256x128xf32>
    %64 = arith.mulf %61, %63 : vector<256x128xf32>
    %65 = arith.addf %59, %64 : vector<256x128xf32>
    %cst_29 = arith.constant 1.000000e+00 : f32
    %66 = vector.broadcast %cst_29 : f32 to vector<256x128xf32>
    %67 = arith.subf %65, %66 : vector<256x128xf32>
    %68 = math.log %64 : vector<256x128xf32>
    %69 = arith.subf %67, %68 : vector<256x128xf32>
    %cst_30 = arith.constant 5.000000e-01 : f32
    %70 = vector.broadcast %cst_30 : f32 to vector<256x128xf32>
    %71 = arith.mulf %70, %69 : vector<256x128xf32>
    %72 = vector.shape_cast %71 : vector<256x128xf32> to vector<1x256x128xf32>
    %cst_31 = arith.constant dense<0.000000e+00> : vector<1xf32>
    %73 = vector.multi_reduction <add>, %72, %cst_31 [1, 2] : vector<1x256x128xf32> to vector<1xf32>
    %74 = vector.shape_cast %73 : vector<1xf32> to vector<1x1x1xf32>
    %75 = vector.extract %74[0, 0, 0] : f32 from vector<1x1x1xf32>
    %76 = arith.extf %0 : vector<256x256xbf16> to vector<256x256xf32>
    %77 = arith.subf %76, %52 : vector<256x256xf32>
    %78 = arith.mulf %77, %77 : vector<256x256xf32>
    %79 = vector.shape_cast %78 : vector<256x256xf32> to vector<1x256x256xf32>
    %cst_32 = arith.constant dense<0.000000e+00> : vector<1xf32>
    %80 = vector.multi_reduction <add>, %79, %cst_32 [1, 2] : vector<1x256x256xf32> to vector<1xf32>
    %81 = vector.shape_cast %80 : vector<1xf32> to vector<1x1x1xf32>
    %82 = vector.extract %81[0, 0, 0] : f32 from vector<1x1x1xf32>
    %83 = tpu.iota {dimensions = array<i32: 2>} : vector<1x8x128xi32>
    %c0_i32 = arith.constant 0 : i32
    %84 = vector.broadcast %c0_i32 : i32 to vector<1x8x128xi32>
    %85 = arith.cmpi eq, %83, %84 : vector<1x8x128xi32>
    %c1_i32 = arith.constant 1 : i32
    %86 = vector.broadcast %c1_i32 : i32 to vector<1x8x128xi32>
    %87 = arith.cmpi eq, %83, %86 : vector<1x8x128xi32>
    %cst_33 = arith.constant 0.000000e+00 : f32
    %88 = vector.broadcast %82 : f32 to vector<1x8x128xf32>
    %89 = vector.broadcast %cst_33 : f32 to vector<1x8x128xf32>
    %90 = arith.select %87, %88, %89 : vector<1x8x128xi1>, vector<1x8x128xf32>
    %91 = vector.broadcast %75 : f32 to vector<1x8x128xf32>
    %92 = arith.select %85, %91, %90 : vector<1x8x128xi1>, vector<1x8x128xf32>
    %c0_34 = arith.constant 0 : index
    %c0_35 = arith.constant 0 : index
    %c0_36 = arith.constant 0 : index
    %93 = vector.load %arg10[%c0_34, %c0_35, %c0_36] : memref<1x8x128xf32, #tpu.memory_space<vmem>>, vector<1x8x128xf32>
    tpu.vector_store %arg10[%c0_34, %c0_35, %c0_36], %92 {strides = array<i32>} : memref<1x8x128xf32, #tpu.memory_space<vmem>>, vector<1x8x128xf32>,
    return
  }
  func.func @transform_0(%arg0: i32) -> (i32, i32) {
    %c0_i32 = arith.constant 0 : i32
    %c0_i32_0 = arith.constant 0 : i32
    return %arg0, %c0_i32 : i32, i32
  }
  func.func @transform_1(%arg0: i32) -> (i32, i32) {
    %c0_i32 = arith.constant 0 : i32
    %c0_i32_0 = arith.constant 0 : i32
    return %arg0, %c0_i32 : i32, i32
  }
  func.func @transform_2(%arg0: i32) -> (i32, i32) {
    %c0_i32 = arith.constant 0 : i32
    %c0_i32_0 = arith.constant 0 : i32
    %c0_i32_1 = arith.constant 0 : i32
    return %c0_i32, %c0_i32_0 : i32, i32
  }
  func.func @transform_3(%arg0: i32) -> (i32, i32) {
    %c0_i32 = arith.constant 0 : i32
    %c0_i32_0 = arith.constant 0 : i32
    %c0_i32_1 = arith.constant 0 : i32
    return %c0_i32, %c0_i32_0 : i32, i32
  }
  func.func @transform_4(%arg0: i32) -> (i32, i32) {
    %c0_i32 = arith.constant 0 : i32
    %c0_i32_0 = arith.constant 0 : i32
    %c0_i32_1 = arith.constant 0 : i32
    return %c0_i32, %c0_i32_0 : i32, i32
  }
  func.func @transform_5(%arg0: i32) -> (i32, i32) {
    %c0_i32 = arith.constant 0 : i32
    %c0_i32_0 = arith.constant 0 : i32
    %c0_i32_1 = arith.constant 0 : i32
    return %c0_i32, %c0_i32_0 : i32, i32
  }
  func.func @transform_6(%arg0: i32) -> (i32, i32) {
    %c0_i32 = arith.constant 0 : i32
    %c0_i32_0 = arith.constant 0 : i32
    %c0_i32_1 = arith.constant 0 : i32
    return %c0_i32, %c0_i32_0 : i32, i32
  }
  func.func @transform_7(%arg0: i32) -> (i32, i32) {
    %c0_i32 = arith.constant 0 : i32
    %c0_i32_0 = arith.constant 0 : i32
    %c0_i32_1 = arith.constant 0 : i32
    return %c0_i32, %c0_i32_0 : i32, i32
  }
  func.func @transform_8(%arg0: i32) -> (i32, i32) {
    %c0_i32 = arith.constant 0 : i32
    %c0_i32_0 = arith.constant 0 : i32
    return %arg0, %c0_i32 : i32, i32
  }
  func.func @transform_9(%arg0: i32) -> (i32, i32, i32) {
    %c0_i32 = arith.constant 0 : i32
    %c0_i32_0 = arith.constant 0 : i32
    %c0_i32_1 = arith.constant 0 : i32
    return %arg0, %c0_i32, %c0_i32_0 : i32, i32, i32
  }
}

</mosaic_0001>

<llo_original>
// kernel: tpu_custom_call.1
$region0: #{tpu_custom_call.1}
  #allocation0 [shape = 'u32[]', space=smem, size = 0x4, offset = 0x4, fixed_abs, tag = 'smem constant byte address 0x4 - core index']
  #allocation1 [shape = 'u32[72,128]{1,0:T(1,128)}', space=vmem, size = 0x9000, scoped, tag = 'internal scratch']
  %s0 = inlined_call_operand.hbm [shape: bf16[512,256], index: 0, kind: input, shape index: {}]
  %s1 = inlined_call_operand.hbm [shape: f32[512,128], index: 1, kind: input, shape index: {}]
  %s2 = inlined_call_operand.hbm [shape: bf16[256,256], index: 2, kind: input, shape index: {}]
  %s3 = inlined_call_operand.vmem [shape: f32[1,256], index: 3, kind: input, shape index: {}]
  %s4 = inlined_call_operand.hbm [shape: bf16[256,256], index: 4, kind: input, shape index: {}]
  %s5 = inlined_call_operand.vmem [shape: f32[1,256], index: 5, kind: input, shape index: {}]
  %s6 = inlined_call_operand.hbm [shape: bf16[128,256], index: 6, kind: input, shape index: {}]
  %s7 = inlined_call_operand.vmem [shape: f32[1,256], index: 7, kind: input, shape index: {}]
  %s8 = inlined_call_operand.hbm [shape: bf16[512,256], index: 8, kind: output, shape index: {0}]
  %s9 = inlined_call_operand.hbm [shape: f32[2,8,128], index: 9, kind: output, shape index: {1}]
  %10 = xla_tuple %s8, %s9
  %s11 = sld [smem:[#allocation0]]
  $region93: #{tpu_custom_call.1} parent=0
    _
  %s13 = ssub.s32 1, %s11
  %s14 = scalar_select 0, %s13, %s11
  $region1: #{tpu_custom_call.1} parent=0
    #allocation2 [shape = 'u8[262144]{0}', space=vmem, size = 0x40000, scoped, tag = 'input window, operand 0']
    #allocation3 [shape = 's32[2]{0}', space=sflag, size = 0x8, scoped, tag = 'scoped memory for tpu_custom_call.1']
    #allocation4 [shape = 's32[2]{0}', space=sflag, size = 0x8, scoped, tag = 'scoped memory for tpu_custom_call.1']
    #allocation5 [shape = 'u8[262144]{0}', space=vmem, size = 0x40000, scoped, tag = 'input window, operand 1']
    #allocation6 [shape = 's32[2]{0}', space=sflag, size = 0x8, scoped, tag = 'scoped memory for tpu_custom_call.1']
    #allocation7 [shape = 'u8[131072]{0}', space=vmem, size = 0x20000, scoped, tag = 'input window, operand 2, single buffered']
    #allocation8 [shape = 'u8[131072]{0}', space=vmem, size = 0x20000, scoped, tag = 'input window, operand 4, single buffered']
    #allocation9 [shape = 's32[1]{0}', space=sflag, size = 0x4, scoped, tag = 'scoped memory for tpu_custom_call.1']
    #allocation10 [shape = 'u8[65536]{0}', space=vmem, size = 0x10000, scoped, tag = 'input window, operand 6, single buffered']
    #allocation11 [shape = 'u8[262144]{0}', space=vmem, size = 0x40000, scoped, tag = 'output window, operand 0']
    #allocation12 [shape = 'u8[8192]{0}', space=vmem, size = 0x2000, scoped, tag = 'output window, operand 1']
    #allocation13 [shape = 's32[2]{0}', space=sflag, size = 0x8, scoped, tag = 'scoped memory for tpu_custom_call.1']
    %15 = vsyncpa [#allocation3], 0
    %s16 = scalar_lea.sflag [#allocation3], 1
    %17 = vsyncpa %s16, 0
    %18 = vsyncpa [#allocation6], 0
    %s19 = scalar_lea.sflag [#allocation6], 1
    %20 = vsyncpa %s19, 0
    %21 = vsyncpa [#allocation9], 0
    %22 = vsyncpa [#allocation4], 0
    %s23 = scalar_lea.sflag [#allocation4], 1
    %24 = vsyncpa %s23, 0
    %25 = vsyncpa [#allocation13], 0
    %s26 = scalar_lea.sflag [#allocation13], 1
    %27 = vsyncpa %s26, 0
    loop: start=0, step=1, limit=4
    $region2: #{tpu_custom_call.1} parent=1 // loop_pre_header
      _
    $region3: #{tpu_custom_call.1} parent=1 // loop_header
      %s29 = sphi 0, %s33
      %p30 = scmp.ge.s32.totalorder %s29, 4
      %s39 = sphi 0, %s41
      %s42 = sphi 0, %s39
      %s43 = sphi 0, %s42
      %s59 = sphi 0, %s43
      %s65 = sphi 0, %s67
      %s68 = sphi 0, %s65
      %s69 = sphi 0, %s68
      %s85 = sphi 0, %s69
      %s89 = sphi 0, %s89
      %s91 = sphi 0, %s89
      %s92 = sphi 0, %s91
      %s106 = sphi 0, %s92
      %s110 = sphi 0, %s110
      %s112 = sphi 0, %s110
      %s113 = sphi 0, %s112
      %s127 = sphi 0, %s113
      %s131 = sphi 0, %s131
      %s133 = sphi 0, %s131
      %s134 = sphi 0, %s133
      %s148 = sphi 0, %s134
      %s152 = sphi 0, %s152
      %s154 = sphi 0, %s152
      %s155 = sphi 0, %s154
      %s169 = sphi 0, %s155
      %s173 = sphi 0, %s173
      %s175 = sphi 0, %s173
      %s176 = sphi 0, %s175
      %s190 = sphi 0, %s176
      %s194 = sphi 0, %s194
      %s196 = sphi 0, %s194
      %s197 = sphi 0, %s196
      %s211 = sphi 0, %s197
      %s217 = sphi 0, %s219
      %s220 = sphi 0, %s217
      %s221 = sphi 0, %s220
      %s237 = sphi 0, %s221
      %s243 = sphi 0, %s245
      %s246 = sphi 0, %s243
      %s247 = sphi 0, %s246
      %s263 = sphi 0, %s247
    $region4: #{tpu_custom_call.1} parent=1 // loop_header_branch
      %32 = sbr.rel (%p30) target = $region8
    $region5: #{tpu_custom_call.1} parent=1 // loop_body
      %s34 = ssub.s32 %s29, 1
      %s35 = ssub.s32 %s29, 2
      %s36 = sadd.s32 %s29, 1
      %s37 = ssub.s32 %s29, %s36
      %p38 = scmp.eq.s32.totalorder %s37, 0
      %s40 = sadd.s32 %s39, 1
      %s41 = scalar_select %p38, %s39, %s40
      %p44 = pneg %p38
      %p45 = scmp.eq.s32.totalorder %s29, 1
      %p46 = por %p44, %p45
      %p47 = scmp.ne.s32.totalorder %s39, %s42
      %p48 = scmp.eq.s32.totalorder %s29, 0
      %p49 = por %p47, %p48
      %p50 = scmp.ne.s32.totalorder %s39, %s42
      %p51 = scmp.eq.s32.totalorder %s34, 1
      %p52 = por %p50, %p51
      %p53 = scmp.ne.s32.totalorder %s42, %s43
      %p54 = scmp.eq.s32.totalorder %s34, 0
      %p55 = por %p53, %p54
      %p56 = scmp.ne.s32.totalorder %s42, %s43
      %p57 = scmp.eq.s32.totalorder %s35, 1
      %p58 = por %p56, %p57
      %p60 = scmp.ne.s32.totalorder %s43, %s59
      %p61 = scmp.eq.s32.totalorder %s35, 0
      %p62 = por %p60, %p61
      %s63 = ssub.s32 %s29, %s36
      %p64 = scmp.eq.s32.totalorder %s63, 0
      %s66 = sadd.s32 %s65, 1
      %s67 = scalar_select %p64, %s65, %s66
      %p70 = pneg %p64
      %p71 = scmp.eq.s32.totalorder %s29, 1
      %p72 = por %p70, %p71
      %p73 = scmp.ne.s32.totalorder %s65, %s68
      %p74 = scmp.eq.s32.totalorder %s29, 0
      %p75 = por %p73, %p74
      %p76 = scmp.ne.s32.totalorder %s65, %s68
      %p77 = scmp.eq.s32.totalorder %s34, 1
      %p78 = por %p76, %p77
      %p79 = scmp.ne.s32.totalorder %s68, %s69
      %p80 = scmp.eq.s32.totalorder %s34, 0
      %p81 = por %p79, %p80
      %p82 = scmp.ne.s32.totalorder %s68, %s69
      %p83 = scmp.eq.s32.totalorder %s35, 1
      %p84 = por %p82, %p83
      %p86 = scmp.ne.s32.totalorder %s69, %s85
      %p87 = scmp.eq.s32.totalorder %s35, 0
      %p88 = por %p86, %p87
      %s90 = sadd.s32 %s89, 1
      %p93 = scmp.eq.s32.totalorder %s29, 1
      %p94 = scmp.ne.s32.totalorder %s89, %s91
      %p95 = scmp.eq.s32.totalorder %s29, 0
      %p96 = por %p94, %p95
      %p97 = scmp.ne.s32.totalorder %s89, %s91
      %p98 = scmp.eq.s32.totalorder %s34, 1
      %p99 = por %p97, %p98
      %p100 = scmp.ne.s32.totalorder %s91, %s92
      %p101 = scmp.eq.s32.totalorder %s34, 0
      %p102 = por %p100, %p101
      %p103 = scmp.ne.s32.totalorder %s91, %s92
      %p104 = scmp.eq.s32.totalorder %s35, 1
      %p105 = por %p103, %p104
      %p107 = scmp.ne.s32.totalorder %s92, %s106
      %p108 = scmp.eq.s32.totalorder %s35, 0
      %p109 = por %p107, %p108
      %s111 = sadd.s32 %s110, 1
      %p114 = scmp.eq.s32.totalorder %s29, 1
      %p115 = scmp.ne.s32.totalorder %s110, %s112
      %p116 = scmp.eq.s32.totalorder %s29, 0
      %p117 = por %p115, %p116
      %p118 = scmp.ne.s32.totalorder %s110, %s112
      %p119 = scmp.eq.s32.totalorder %s34, 1
      %p120 = por %p118, %p119
      %p121 = scmp.ne.s32.totalorder %s112, %s113
      %p122 = scmp.eq.s32.totalorder %s34, 0
      %p123 = por %p121, %p122
      %p124 = scmp.ne.s32.totalorder %s112, %s113
      %p125 = scmp.eq.s32.totalorder %s35, 1
      %p126 = por %p124, %p125
      %p128 = scmp.ne.s32.totalorder %s113, %s127
      %p129 = scmp.eq.s32.totalorder %s35, 0
      %p130 = por %p128, %p129
      %s132 = sadd.s32 %s131, 1
      %p135 = scmp.eq.s32.totalorder %s29, 1
      %p136 = scmp.ne.s32.totalorder %s131, %s133
      %p137 = scmp.eq.s32.totalorder %s29, 0
      %p138 = por %p136, %p137
      %p139 = scmp.ne.s32.totalorder %s131, %s133
      %p140 = scmp.eq.s32.totalorder %s34, 1
      %p141 = por %p139, %p140
      %p142 = scmp.ne.s32.totalorder %s133, %s134
      %p143 = scmp.eq.s32.totalorder %s34, 0
      %p144 = por %p142, %p143
      %p145 = scmp.ne.s32.totalorder %s133, %s134
      %p146 = scmp.eq.s32.totalorder %s35, 1
      %p147 = por %p145, %p146
      %p149 = scmp.ne.s32.totalorder %s134, %s148
      %p150 = scmp.eq.s32.totalorder %s35, 0
      %p151 = por %p149, %p150
      %s153 = sadd.s32 %s152, 1
      %p156 = scmp.eq.s32.totalorder %s29, 1
      %p157 = scmp.ne.s32.totalorder %s152, %s154
      %p158 = scmp.eq.s32.totalorder %s29, 0
      %p159 = por %p157, %p158
      %p160 = scmp.ne.s32.totalorder %s152, %s154
      %p161 = scmp.eq.s32.totalorder %s34, 1
      %p162 = por %p160, %p161
      %p163 = scmp.ne.s32.totalorder %s154, %s155
      %p164 = scmp.eq.s32.totalorder %s34, 0
      %p165 = por %p163, %p164
      %p166 = scmp.ne.s32.totalorder %s154, %s155
      %p167 = scmp.eq.s32.totalorder %s35, 1
      %p168 = por %p166, %p167
      %p170 = scmp.ne.s32.totalorder %s155, %s169
      %p171 = scmp.eq.s32.totalorder %s35, 0
      %p172 = por %p170, %p171
      %s174 = sadd.s32 %s173, 1
      %p177 = scmp.eq.s32.totalorder %s29, 1
      %p178 = scmp.ne.s32.totalorder %s173, %s175
      %p179 = scmp.eq.s32.totalorder %s29, 0
      %p180 = por %p178, %p179
      %p181 = scmp.ne.s32.totalorder %s173, %s175
      %p182 = scmp.eq.s32.totalorder %s34, 1
      %p183 = por %p181, %p182
      %p184 = scmp.ne.s32.totalorder %s175, %s176
      %p185 = scmp.eq.s32.totalorder %s34, 0
      %p186 = por %p184, %p185
      %p187 = scmp.ne.s32.totalorder %s175, %s176
      %p188 = scmp.eq.s32.totalorder %s35, 1
      %p189 = por %p187, %p188
      %p191 = scmp.ne.s32.totalorder %s176, %s190
      %p192 = scmp.eq.s32.totalorder %s35, 0
      %p193 = por %p191, %p192
      %s195 = sadd.s32 %s194, 1
      %p198 = scmp.eq.s32.totalorder %s29, 1
      %p199 = scmp.ne.s32.totalorder %s194, %s196
      %p200 = scmp.eq.s32.totalorder %s29, 0
      %p201 = por %p199, %p200
      %p202 = scmp.ne.s32.totalorder %s194, %s196
      %p203 = scmp.eq.s32.totalorder %s34, 1
      %p204 = por %p202, %p203
      %p205 = scmp.ne.s32.totalorder %s196, %s197
      %p206 = scmp.eq.s32.totalorder %s34, 0
      %p207 = por %p205, %p206
      %p208 = scmp.ne.s32.totalorder %s196, %s197
      %p209 = scmp.eq.s32.totalorder %s35, 1
      %p210 = por %p208, %p209
      %p212 = scmp.ne.s32.totalorder %s197, %s211
      %p213 = scmp.eq.s32.totalorder %s35, 0
      %p214 = por %p212, %p213
      %s215 = ssub.s32 %s29, %s36
      %p216 = scmp.eq.s32.totalorder %s215, 0
      %s218 = sadd.s32 %s217, 1
      %s219 = scalar_select %p216, %s217, %s218
      %p222 = pneg %p216
      %p223 = scmp.eq.s32.totalorder %s29, 1
      %p224 = por %p222, %p223
      %p225 = scmp.ne.s32.totalorder %s217, %s220
      %p226 = scmp.eq.s32.totalorder %s29, 0
      %p227 = por %p225, %p226
      %p228 = scmp.ne.s32.totalorder %s217, %s220
      %p229 = scmp.eq.s32.totalorder %s34, 1
      %p230 = por %p228, %p229
      %p231 = scmp.ne.s32.totalorder %s220, %s221
      %p232 = scmp.eq.s32.totalorder %s34, 0
      %p233 = por %p231, %p232
      %p234 = scmp.ne.s32.totalorder %s220, %s221
      %p235 = scmp.eq.s32.totalorder %s35, 1
      %p236 = por %p234, %p235
      %p238 = scmp.ne.s32.totalorder %s221, %s237
      %p239 = scmp.eq.s32.totalorder %s35, 0
      %p240 = por %p238, %p239
      %s241 = ssub.s32 %s29, %s36
      %p242 = scmp.eq.s32.totalorder %s241, 0
      %s244 = sadd.s32 %s243, 1
      %s245 = scalar_select %p242, %s243, %s244
      %p248 = pneg %p242
      %p249 = scmp.eq.s32.totalorder %s29, 1
      %p250 = por %p248, %p249
      %p251 = scmp.ne.s32.totalorder %s243, %s246
      %p252 = scmp.eq.s32.totalorder %s29, 0
      %p253 = por %p251, %p252
      %p254 = scmp.ne.s32.totalorder %s243, %s246
      %p255 = scmp.eq.s32.totalorder %s34, 1
      %p256 = por %p254, %p255
      %p257 = scmp.ne.s32.totalorder %s246, %s247
      %p258 = scmp.eq.s32.totalorder %s34, 0
      %p259 = por %p257, %p258
      %p260 = scmp.ne.s32.totalorder %s246, %s247
      %p261 = scmp.eq.s32.totalorder %s35, 1
      %p262 = por %p260, %p261
      %p264 = scmp.ne.s32.totalorder %s247, %s263
      %p265 = scmp.eq.s32.totalorder %s35, 0
      %p266 = por %p264, %p265
      %p267 = scmp.le.s32.totalorder 1, %s29
      %p268 = scmp.lt.s32.totalorder %s29, 3
      %p269 = pnand %p267, %p268
      %p270 = pneg %p269
      // Predicated region
      $region9: #{tpu_custom_call.1} parent=5 // pred_check
        _
      $region10: #{tpu_custom_call.1} parent=5 // pred_check_branch
        %272 = sbr.rel (%p269) target = $region12
      $region11: #{tpu_custom_call.1} parent=5 // pred_region
        %s273 = ssub.s32 %s29, 1
        // Predicated region
        $region13: #{tpu_custom_call.1} parent=11 // pred_check
          %p274 = pneg %p102
        $region14: #{tpu_custom_call.1} parent=11 // pred_check_branch
          %276 = sbr.rel (%p274) target = $region16
        $region15: #{tpu_custom_call.1} parent=11 // pred_region
          %278 = vsyncadd [#allocation6], 0
          %s279 = sshll.u32 %s2, 4
          %s280 = int_to_ptr.hbm [resolvable:$true] %s279
          %s281 = sshll.u32 [#allocation7], 4
          %s282 = int_to_ptr.vmem [resolvable:$true] %s281
          %287 = dma.hbm_to_vmem [thread:$0]  %s280, 4096, %s282, [#allocation6], 128, 128, 8
        $region16: #{tpu_custom_call.1} parent=11 // pred_fallthru
          _
        // Predicated region
        $region17: #{tpu_custom_call.1} parent=11 // pred_check
          %p288 = pneg %p123
        $region18: #{tpu_custom_call.1} parent=11 // pred_check_branch
          %290 = sbr.rel (%p288) target = $region20
        $region19: #{tpu_custom_call.1} parent=11 // pred_region
          _
        $region20: #{tpu_custom_call.1} parent=11 // pred_fallthru
          _
        // Predicated region
        $region21: #{tpu_custom_call.1} parent=11 // pred_check
          %p291 = pneg %p144
        $region22: #{tpu_custom_call.1} parent=11 // pred_check_branch
          %293 = sbr.rel (%p291) target = $region24
        $region23: #{tpu_custom_call.1} parent=11 // pred_region
          %295 = vsyncadd [#allocation9], 0
          %s296 = sshll.u32 %s4, 4
          %s297 = int_to_ptr.hbm [resolvable:$true] %s296
          %s298 = sshll.u32 [#allocation8], 4
          %s299 = int_to_ptr.vmem [resolvable:$true] %s298
          %304 = dma.hbm_to_vmem [thread:$0]  %s297, 4096, %s299, [#allocation9], 128, 128, 8
        $region24: #{tpu_custom_call.1} parent=11 // pred_fallthru
          _
        // Predicated region
        $region25: #{tpu_custom_call.1} parent=11 // pred_check
          %p305 = pneg %p165
        $region26: #{tpu_custom_call.1} parent=11 // pred_check_branch
          %307 = sbr.rel (%p305) target = $region28
        $region27: #{tpu_custom_call.1} parent=11 // pred_region
          _
        $region28: #{tpu_custom_call.1} parent=11 // pred_fallthru
          _
        // Predicated region
        $region29: #{tpu_custom_call.1} parent=11 // pred_check
          %p308 = pneg %p186
        $region30: #{tpu_custom_call.1} parent=11 // pred_check_branch
          %310 = sbr.rel (%p308) target = $region32
        $region31: #{tpu_custom_call.1} parent=11 // pred_region
          %312 = vsyncadd [#allocation9], 0
          %s313 = sshll.u32 %s6, 4
          %s314 = int_to_ptr.hbm [resolvable:$true] %s313
          %s315 = sshll.u32 [#allocation10], 4
          %s316 = int_to_ptr.vmem [resolvable:$true] %s315
          %321 = dma.hbm_to_vmem [thread:$0]  %s314, 2048, %s316, [#allocation9], 128, 128, 8
        $region32: #{tpu_custom_call.1} parent=11 // pred_fallthru
          _
        // Predicated region
        $region33: #{tpu_custom_call.1} parent=11 // pred_check
          %p322 = pneg %p207
        $region34: #{tpu_custom_call.1} parent=11 // pred_check_branch
          %324 = sbr.rel (%p322) target = $region36
        $region35: #{tpu_custom_call.1} parent=11 // pred_region
          _
        $region36: #{tpu_custom_call.1} parent=11 // pred_fallthru
          _
      $region12: #{tpu_custom_call.1} parent=5 // pred_fallthru
        _
      %p325 = scmp.lt.s32.totalorder %s29, 2
      // Predicated region
      $region37: #{tpu_custom_call.1} parent=5 // pred_check
        %p326 = pneg %p325
      $region38: #{tpu_custom_call.1} parent=5 // pred_check_branch
        %328 = sbr.rel (%p326) target = $region40
      $region39: #{tpu_custom_call.1} parent=5 // pred_region
        // Predicated region
        $region41: #{tpu_custom_call.1} parent=39 // pred_check
          %p329 = pneg %p49
        $region42: #{tpu_custom_call.1} parent=39 // pred_check_branch
          %331 = sbr.rel (%p329) target = $region44
        $region43: #{tpu_custom_call.1} parent=39 // pred_region
          %s332 = sand.u32 %s39, 1
          %s333 = scalar_lea.sflag [#allocation3], %s332
          %s334 = sand.u32 %s39, 1
          %s335 = smul.addr %s334, 256
          %s336 = scalar_lea.vmem [#allocation2], %s335
          %s337 = smul.u32 32, %s29
          %339 = vsyncadd %s333, 0
          %s340 = smul.addr %s337, 2
          %s341 = smul.addr %s340, 4
          %s342 = scalar_lea.hbm %s0, %s341
          %s343 = sshll.u32 %s342, 4
          %s344 = int_to_ptr.hbm [resolvable:$true] %s343
          %s345 = sshll.u32 %s336, 4
          %s346 = int_to_ptr.vmem [resolvable:$true] %s345
          %351 = dma.hbm_to_vmem [thread:$0]  %s344, 4096, %s346, %s333, 128, 128, 8
        $region44: #{tpu_custom_call.1} parent=39 // pred_fallthru
          _
        // Predicated region
        $region45: #{tpu_custom_call.1} parent=39 // pred_check
          %p352 = pneg %p75
        $region46: #{tpu_custom_call.1} parent=39 // pred_check_branch
          %354 = sbr.rel (%p352) target = $region48
        $region47: #{tpu_custom_call.1} parent=39 // pred_region
          %s355 = sand.u32 %s29, 1
          %s356 = scalar_lea.sflag [#allocation6], %s355
          %s357 = sand.u32 %s65, 1
          %s358 = smul.addr %s357, 256
          %s359 = scalar_lea.vmem [#allocation5], %s358
          %s360 = smul.u32 32, %s29
          %362 = vsyncadd %s356, 0
          %s363 = smul.addr %s360, 8
          %s364 = scalar_lea.hbm %s1, %s363
          %s365 = sshll.u32 %s364, 4
          %s366 = int_to_ptr.hbm [resolvable:$true] %s365
          %s367 = sshll.u32 %s359, 4
          %s368 = int_to_ptr.vmem [resolvable:$true] %s367
          %373 = dma.hbm_to_vmem [thread:$0]  %s366, 4096, %s368, %s356, 128, 128, 8
        $region48: #{tpu_custom_call.1} parent=39 // pred_fallthru
          _
      $region40: #{tpu_custom_call.1} parent=5 // pred_fallthru
        _
      %p374 = scmp.le.s32.totalorder 1, %s29
      %p375 = scmp.lt.s32.totalorder %s29, 3
      %p376 = pnand %p374, %p375
      %p377 = pneg %p376
      // Predicated region
      $region49: #{tpu_custom_call.1} parent=5 // pred_check
        _
      $region50: #{tpu_custom_call.1} parent=5 // pred_check_branch
        %379 = sbr.rel (%p376) target = $region52
      $region51: #{tpu_custom_call.1} parent=5 // pred_region
        %s380 = ssub.s32 %s29, 1
        %s381 = sand.u32 %s42, 1
        %s382 = scalar_lea.sflag [#allocation3], %s381
        %s383 = sand.u32 %s42, 1
        %s384 = smul.addr %s383, 256
        %s385 = scalar_lea.vmem [#allocation2], %s384
        // Predicated region
        $region53: #{tpu_custom_call.1} parent=51 // pred_check
          %p386 = pneg %p55
        $region54: #{tpu_custom_call.1} parent=51 // pred_check_branch
          %388 = sbr.rel (%p386) target = $region56
        $region55: #{tpu_custom_call.1} parent=51 // pred_region
          %390 = dma.done %s382, 4096
        $region56: #{tpu_custom_call.1} parent=51 // pred_fallthru
          _
        %s391 = sand.u32 %s34, 1
        %s392 = scalar_lea.sflag [#allocation6], %s391
        %s393 = sand.u32 %s68, 1
        %s394 = smul.addr %s393, 256
        %s395 = scalar_lea.vmem [#allocation5], %s394
        // Predicated region
        $region57: #{tpu_custom_call.1} parent=51 // pred_check
          %p396 = pneg %p81
        $region58: #{tpu_custom_call.1} parent=51 // pred_check_branch
          %398 = sbr.rel (%p396) target = $region60
        $region59: #{tpu_custom_call.1} parent=51 // pred_region
          %400 = dma.done %s392, 4096
        $region60: #{tpu_custom_call.1} parent=51 // pred_fallthru
          _
        // Predicated region
        $region61: #{tpu_custom_call.1} parent=51 // pred_check
          %p401 = pneg %p102
        $region62: #{tpu_custom_call.1} parent=51 // pred_check_branch
          %403 = sbr.rel (%p401) target = $region64
        $region63: #{tpu_custom_call.1} parent=51 // pred_region
          %405 = dma.done [#allocation6], 4096
        $region64: #{tpu_custom_call.1} parent=51 // pred_fallthru
          _
        // Predicated region
        $region65: #{tpu_custom_call.1} parent=51 // pred_check
          %p406 = pneg %p144
        $region66: #{tpu_custom_call.1} parent=51 // pred_check_branch
          %408 = sbr.rel (%p406) target = $region68
        $region67: #{tpu_custom_call.1} parent=51 // pred_region
          %410 = dma.done [#allocation9], 4096
        $region68: #{tpu_custom_call.1} parent=51 // pred_fallthru
          _
        // Predicated region
        $region69: #{tpu_custom_call.1} parent=51 // pred_check
          %p411 = pneg %p186
        $region70: #{tpu_custom_call.1} parent=51 // pred_check_branch
          %413 = sbr.rel (%p411) target = $region72
        $region71: #{tpu_custom_call.1} parent=51 // pred_region
          %415 = dma.done [#allocation9], 2048
        $region72: #{tpu_custom_call.1} parent=51 // pred_fallthru
          _
        %s416 = sand.u32 %s42, 1
        %s417 = scalar_lea.sflag [#allocation3], %s416
        %s418 = sand.u32 %s42, 1
        %s419 = smul.addr %s418, 256
        %s420 = scalar_lea.vmem [#allocation2], %s419
        %p421 = pneg %p55
        %p422 = pneg %p52
        %s423 = sand.u32 %s34, 1
        %s424 = scalar_lea.sflag [#allocation6], %s423
        %s425 = sand.u32 %s68, 1
        %s426 = smul.addr %s425, 256
        %s427 = scalar_lea.vmem [#allocation5], %s426
        %p428 = pneg %p81
        %p429 = pneg %p78
        %p430 = pneg %p102
        %p431 = pneg %p99
        %p432 = pneg %p123
        %p433 = pneg %p120
        %p434 = pneg %p144
        %p435 = pneg %p141
        %p436 = pneg %p165
        %p437 = pneg %p162
        %p438 = pneg %p186
        %p439 = pneg %p183
        %p440 = pneg %p207
        %p441 = pneg %p204
        %p442 = pneg %p233
        %p443 = pneg %p230
        %s444 = sand.u32 %s220, 1
        %s445 = scalar_lea.sflag [#allocation4], %s444
        %s446 = sand.u32 %s220, 1
        %s447 = smul.addr %s446, 256
        %s448 = scalar_lea.vmem [#allocation11], %s447
        %p449 = pneg %p259
        %p450 = pneg %p256
        %s451 = sand.u32 %s246, 1
        %s452 = scalar_lea.sflag [#allocation13], %s451
        %s453 = sand.u32 %s246, 1
        %s454 = smul.addr %s453, 8
        %s455 = scalar_lea.vmem [#allocation12], %s454
        %s456 = smul.u32 32, %s34
        %s457 = smul.u32 32, %s34
        %s458 = smul.u32 32, %s34
        %v459 = vld [vmem:[%s385] sm:$0xff]
        %v460 = vld [vmem:[%s385 + $0x8] sm:$0xff]
        %v461 = vld [vmem:[%s385 + $0x10] sm:$0xff]
        %v462 = vld [vmem:[%s385 + $0x18] sm:$0xff]
        %v463 = vld [vmem:[%s385 + $0x20] sm:$0xff]
        %v464 = vld [vmem:[%s385 + $0x28] sm:$0xff]
        %v465 = vld [vmem:[%s385 + $0x30] sm:$0xff]
        %v466 = vld [vmem:[%s385 + $0x38] sm:$0xff]
        %v467 = vld [vmem:[%s385 + $0x40] sm:$0xff]
        %v468 = vld [vmem:[%s385 + $0x48] sm:$0xff]
        %v469 = vld [vmem:[%s385 + $0x50] sm:$0xff]
        %v470 = vld [vmem:[%s385 + $0x58] sm:$0xff]
        %v471 = vld [vmem:[%s385 + $0x60] sm:$0xff]
        %v472 = vld [vmem:[%s385 + $0x68] sm:$0xff]
        %v473 = vld [vmem:[%s385 + $0x70] sm:$0xff]
        %v474 = vld [vmem:[%s385 + $0x78] sm:$0xff]
        %v475 = vld [vmem:[%s385 + $0x80] sm:$0xff]
        %v476 = vld [vmem:[%s385 + $0x88] sm:$0xff]
        %v477 = vld [vmem:[%s385 + $0x90] sm:$0xff]
        %v478 = vld [vmem:[%s385 + $0x98] sm:$0xff]
        %v479 = vld [vmem:[%s385 + $0xa0] sm:$0xff]
        %v480 = vld [vmem:[%s385 + $0xa8] sm:$0xff]
        %v481 = vld [vmem:[%s385 + $0xb0] sm:$0xff]
        %v482 = vld [vmem:[%s385 + $0xb8] sm:$0xff]
        %v483 = vld [vmem:[%s385 + $0xc0] sm:$0xff]
        %v484 = vld [vmem:[%s385 + $0xc8] sm:$0xff]
        %v485 = vld [vmem:[%s385 + $0xd0] sm:$0xff]
        %v486 = vld [vmem:[%s385 + $0xd8] sm:$0xff]
        %v487 = vld [vmem:[%s385 + $0xe0] sm:$0xff]
        %v488 = vld [vmem:[%s385 + $0xe8] sm:$0xff]
        %v489 = vld [vmem:[%s385 + $0xf0] sm:$0xff]
        %v490 = vld [vmem:[%s385 + $0xf8] sm:$0xff]
        %v491 = vld [vmem:[%s395] sm:$0xff]
        %v492 = vld [vmem:[%s395 + $0x8] sm:$0xff]
        %v493 = vld [vmem:[%s395 + $0x10] sm:$0xff]
        %v494 = vld [vmem:[%s395 + $0x18] sm:$0xff]
        %v495 = vld [vmem:[%s395 + $0x20] sm:$0xff]
        %v496 = vld [vmem:[%s395 + $0x28] sm:$0xff]
        %v497 = vld [vmem:[%s395 + $0x30] sm:$0xff]
        %v498 = vld [vmem:[%s395 + $0x38] sm:$0xff]
        %v499 = vld [vmem:[%s395 + $0x40] sm:$0xff]
        %v500 = vld [vmem:[%s395 + $0x48] sm:$0xff]
        %v501 = vld [vmem:[%s395 + $0x50] sm:$0xff]
        %v502 = vld [vmem:[%s395 + $0x58] sm:$0xff]
        %v503 = vld [vmem:[%s395 + $0x60] sm:$0xff]
        %v504 = vld [vmem:[%s395 + $0x68] sm:$0xff]
        %v505 = vld [vmem:[%s395 + $0x70] sm:$0xff]
        %v506 = vld [vmem:[%s395 + $0x78] sm:$0xff]
        %v507 = vld [vmem:[%s395 + $0x80] sm:$0xff]
        %v508 = vld [vmem:[%s395 + $0x88] sm:$0xff]
        %v509 = vld [vmem:[%s395 + $0x90] sm:$0xff]
        %v510 = vld [vmem:[%s395 + $0x98] sm:$0xff]
        %v511 = vld [vmem:[%s395 + $0xa0] sm:$0xff]
        %v512 = vld [vmem:[%s395 + $0xa8] sm:$0xff]
        %v513 = vld [vmem:[%s395 + $0xb0] sm:$0xff]
        %v514 = vld [vmem:[%s395 + $0xb8] sm:$0xff]
        %v515 = vld [vmem:[%s395 + $0xc0] sm:$0xff]
        %v516 = vld [vmem:[%s395 + $0xc8] sm:$0xff]
        %v517 = vld [vmem:[%s395 + $0xd0] sm:$0xff]
        %v518 = vld [vmem:[%s395 + $0xd8] sm:$0xff]
        %v519 = vld [vmem:[%s395 + $0xe0] sm:$0xff]
        %v520 = vld [vmem:[%s395 + $0xe8] sm:$0xff]
        %v521 = vld [vmem:[%s395 + $0xf0] sm:$0xff]
        %v522 = vld [vmem:[%s395 + $0xf8] sm:$0xff]
        %v523 = vld [vmem:[#allocation7] sm:$0xff]
        %v524 = vld [vmem:[#allocation7 + $0x8] sm:$0xff]
        %v525 = vld [vmem:[#allocation7 + $0x10] sm:$0xff]
        %v526 = vld [vmem:[#allocation7 + $0x18] sm:$0xff]
        %v527 = vld [vmem:[#allocation7 + $0x20] sm:$0xff]
        %v528 = vld [vmem:[#allocation7 + $0x28] sm:$0xff]
        %v529 = vld [vmem:[#allocation7 + $0x30] sm:$0xff]
        %v530 = vld [vmem:[#allocation7 + $0x38] sm:$0xff]
        %v531 = vld [vmem:[#allocation7 + $0x40] sm:$0xff]
        %v532 = vld [vmem:[#allocation7 + $0x48] sm:$0xff]
        %v533 = vld [vmem:[#allocation7 + $0x50] sm:$0xff]
        %v534 = vld [vmem:[#allocation7 + $0x58] sm:$0xff]
        %v535 = vld [vmem:[#allocation7 + $0x60] sm:$0xff]
        %v536 = vld [vmem:[#allocation7 + $0x68] sm:$0xff]
        %v537 = vld [vmem:[#allocation7 + $0x70] sm:$0xff]
        %v538 = vld [vmem:[#allocation7 + $0x78] sm:$0xff]
        %v539 = vld [vmem:[#allocation7 + $0x80] sm:$0xff]
        %v540 = vld [vmem:[#allocation7 + $0x88] sm:$0xff]
        %v541 = vld [vmem:[#allocation7 + $0x90] sm:$0xff]
        %v542 = vld [vmem:[#allocation7 + $0x98] sm:$0xff]
        %v543 = vld [vmem:[#allocation7 + $0xa0] sm:$0xff]
        %v544 = vld [vmem:[#allocation7 + $0xa8] sm:$0xff]
        %v545 = vld [vmem:[#allocation7 + $0xb0] sm:$0xff]
        %v546 = vld [vmem:[#allocation7 + $0xb8] sm:$0xff]
        %v547 = vld [vmem:[#allocation7 + $0xc0] sm:$0xff]
        %v548 = vld [vmem:[#allocation7 + $0xc8] sm:$0xff]
        %v549 = vld [vmem:[#allocation7 + $0xd0] sm:$0xff]
        %v550 = vld [vmem:[#allocation7 + $0xd8] sm:$0xff]
        %v551 = vld [vmem:[#allocation7 + $0xe0] sm:$0xff]
        %v552 = vld [vmem:[#allocation7 + $0xe8] sm:$0xff]
        %v553 = vld [vmem:[#allocation7 + $0xf0] sm:$0xff]
        %v554 = vld [vmem:[#allocation7 + $0xf8] sm:$0xff]
        %v555 = vld [vmem:[%s3] sm:$0x3]
        %v557 = vperm.slane %v555, 0
        %v558 = vperm.slane %v555, 1
        %v593 = vunpack.c.l.b16 %v459
        %v594 = vunpack.c.h.b16 %v459
        %v595 = vunpack.c.l.b16 %v460
        %v596 = vunpack.c.h.b16 %v460
        %v597 = vunpack.c.l.b16 %v461
        %v598 = vunpack.c.h.b16 %v461
        %v599 = vunpack.c.l.b16 %v462
        %v600 = vunpack.c.h.b16 %v462
        %v601 = vunpack.c.l.b16 %v463
        %v602 = vunpack.c.h.b16 %v463
        %v603 = vunpack.c.l.b16 %v464
        %v604 = vunpack.c.h.b16 %v464
        %v605 = vunpack.c.l.b16 %v465
        %v606 = vunpack.c.h.b16 %v465
        %v607 = vunpack.c.l.b16 %v466
        %v608 = vunpack.c.h.b16 %v466
        %v609 = vunpack.c.l.b16 %v467
        %v610 = vunpack.c.h.b16 %v467
        %v611 = vunpack.c.l.b16 %v468
        %v612 = vunpack.c.h.b16 %v468
        %v613 = vunpack.c.l.b16 %v469
        %v614 = vunpack.c.h.b16 %v469
        %v615 = vunpack.c.l.b16 %v470
        %v616 = vunpack.c.h.b16 %v470
        %v617 = vunpack.c.l.b16 %v471
        %v618 = vunpack.c.h.b16 %v471
        %v619 = vunpack.c.l.b16 %v472
        %v620 = vunpack.c.h.b16 %v472
        %v621 = vunpack.c.l.b16 %v473
        %v622 = vunpack.c.h.b16 %v473
        %v623 = vunpack.c.l.b16 %v474
        %v624 = vunpack.c.h.b16 %v474
        %v625 = vunpack.c.l.b16 %v475
        %v626 = vunpack.c.h.b16 %v475
        %v627 = vunpack.c.l.b16 %v476
        %v628 = vunpack.c.h.b16 %v476
        %v629 = vunpack.c.l.b16 %v477
        %v630 = vunpack.c.h.b16 %v477
        %v631 = vunpack.c.l.b16 %v478
        %v632 = vunpack.c.h.b16 %v478
        %v633 = vunpack.c.l.b16 %v479
        %v634 = vunpack.c.h.b16 %v479
        %v635 = vunpack.c.l.b16 %v480
        %v636 = vunpack.c.h.b16 %v480
        %v637 = vunpack.c.l.b16 %v481
        %v638 = vunpack.c.h.b16 %v481
        %v639 = vunpack.c.l.b16 %v482
        %v640 = vunpack.c.h.b16 %v482
        %v641 = vunpack.c.l.b16 %v483
        %v642 = vunpack.c.h.b16 %v483
        %v643 = vunpack.c.l.b16 %v484
        %v644 = vunpack.c.h.b16 %v484
        %v645 = vunpack.c.l.b16 %v485
        %v646 = vunpack.c.h.b16 %v485
        %v647 = vunpack.c.l.b16 %v486
        %v648 = vunpack.c.h.b16 %v486
        %v649 = vunpack.c.l.b16 %v487
        %v650 = vunpack.c.h.b16 %v487
        %v651 = vunpack.c.l.b16 %v488
        %v652 = vunpack.c.h.b16 %v488
        %v653 = vunpack.c.l.b16 %v489
        %v654 = vunpack.c.h.b16 %v489
        %v655 = vunpack.c.l.b16 %v490
        %v656 = vunpack.c.h.b16 %v490
        %v657 = vpack.c.b16 %v595, %v593
        %v658 = vpack.c.b16 %v596, %v594
        %v659 = vpack.c.b16 %v599, %v597
        %v660 = vpack.c.b16 %v600, %v598
        %v661 = vpack.c.b16 %v603, %v601
        %v662 = vpack.c.b16 %v604, %v602
        %v663 = vpack.c.b16 %v607, %v605
        %v664 = vpack.c.b16 %v608, %v606
        %v665 = vpack.c.b16 %v611, %v609
        %v666 = vpack.c.b16 %v612, %v610
        %v667 = vpack.c.b16 %v615, %v613
        %v668 = vpack.c.b16 %v616, %v614
        %v669 = vpack.c.b16 %v619, %v617
        %v670 = vpack.c.b16 %v620, %v618
        %v671 = vpack.c.b16 %v623, %v621
        %v672 = vpack.c.b16 %v624, %v622
        %v673 = vpack.c.b16 %v627, %v625
        %v674 = vpack.c.b16 %v628, %v626
        %v675 = vpack.c.b16 %v631, %v629
        %v676 = vpack.c.b16 %v632, %v630
        %v677 = vpack.c.b16 %v635, %v633
        %v678 = vpack.c.b16 %v636, %v634
        %v679 = vpack.c.b16 %v639, %v637
        %v680 = vpack.c.b16 %v640, %v638
        %v681 = vpack.c.b16 %v643, %v641
        %v682 = vpack.c.b16 %v644, %v642
        %v683 = vpack.c.b16 %v647, %v645
        %v684 = vpack.c.b16 %v648, %v646
        %v685 = vpack.c.b16 %v651, %v649
        %v686 = vpack.c.b16 %v652, %v650
        %v687 = vpack.c.b16 %v655, %v653
        %v688 = vpack.c.b16 %v656, %v654
        %v753 = vunpack.c.l.b16 %v523
        %v754 = vunpack.c.h.b16 %v523
        %v755 = vunpack.c.l.b16 %v524
        %v756 = vunpack.c.h.b16 %v524
        %v757 = vunpack.c.l.b16 %v525
        %v758 = vunpack.c.h.b16 %v525
        %v759 = vunpack.c.l.b16 %v526
        %v760 = vunpack.c.h.b16 %v526
        %v761 = vunpack.c.l.b16 %v527
        %v762 = vunpack.c.h.b16 %v527
        %v763 = vunpack.c.l.b16 %v528
        %v764 = vunpack.c.h.b16 %v528
        %v765 = vunpack.c.l.b16 %v529
        %v766 = vunpack.c.h.b16 %v529
        %v767 = vunpack.c.l.b16 %v530
        %v768 = vunpack.c.h.b16 %v530
        %v769 = vunpack.c.l.b16 %v531
        %v770 = vunpack.c.h.b16 %v531
        %v771 = vunpack.c.l.b16 %v532
        %v772 = vunpack.c.h.b16 %v532
        %v773 = vunpack.c.l.b16 %v533
        %v774 = vunpack.c.h.b16 %v533
        %v775 = vunpack.c.l.b16 %v534
        %v776 = vunpack.c.h.b16 %v534
        %v777 = vunpack.c.l.b16 %v535
        %v778 = vunpack.c.h.b16 %v535
        %v779 = vunpack.c.l.b16 %v536
        %v780 = vunpack.c.h.b16 %v536
        %v781 = vunpack.c.l.b16 %v537
        %v782 = vunpack.c.h.b16 %v537
        %v783 = vunpack.c.l.b16 %v538
        %v784 = vunpack.c.h.b16 %v538
        %v785 = vunpack.c.l.b16 %v539
        %v786 = vunpack.c.h.b16 %v539
        %v787 = vunpack.c.l.b16 %v540
        %v788 = vunpack.c.h.b16 %v540
        %v789 = vunpack.c.l.b16 %v541
        %v790 = vunpack.c.h.b16 %v541
        %v791 = vunpack.c.l.b16 %v542
        %v792 = vunpack.c.h.b16 %v542
        %v793 = vunpack.c.l.b16 %v543
        %v794 = vunpack.c.h.b16 %v543
        %v795 = vunpack.c.l.b16 %v544
        %v796 = vunpack.c.h.b16 %v544
        %v797 = vunpack.c.l.b16 %v545
        %v798 = vunpack.c.h.b16 %v545
        %v799 = vunpack.c.l.b16 %v546
        %v800 = vunpack.c.h.b16 %v546
        %v801 = vunpack.c.l.b16 %v547
        %v802 = vunpack.c.h.b16 %v547
        %v803 = vunpack.c.l.b16 %v548
        %v804 = vunpack.c.h.b16 %v548
        %v805 = vunpack.c.l.b16 %v549
        %v806 = vunpack.c.h.b16 %v549
        %v807 = vunpack.c.l.b16 %v550
        %v808 = vunpack.c.h.b16 %v550
        %v809 = vunpack.c.l.b16 %v551
        %v810 = vunpack.c.h.b16 %v551
        %v811 = vunpack.c.l.b16 %v552
        %v812 = vunpack.c.h.b16 %v552
        %v813 = vunpack.c.l.b16 %v553
        %v814 = vunpack.c.h.b16 %v553
        %v815 = vunpack.c.l.b16 %v554
        %v816 = vunpack.c.h.b16 %v554
        %v817 = vpack.c.b16 %v755, %v753
        %v818 = vpack.c.b16 %v756, %v754
        %v819 = vpack.c.b16 %v759, %v757
        %v820 = vpack.c.b16 %v760, %v758
        %v821 = vpack.c.b16 %v763, %v761
        %v822 = vpack.c.b16 %v764, %v762
        %v823 = vpack.c.b16 %v767, %v765
        %v824 = vpack.c.b16 %v768, %v766
        %v825 = vpack.c.b16 %v771, %v769
        %v826 = vpack.c.b16 %v772, %v770
        %v827 = vpack.c.b16 %v775, %v773
        %v828 = vpack.c.b16 %v776, %v774
        %v829 = vpack.c.b16 %v779, %v777
        %v830 = vpack.c.b16 %v780, %v778
        %v831 = vpack.c.b16 %v783, %v781
        %v832 = vpack.c.b16 %v784, %v782
        %v833 = vpack.c.b16 %v787, %v785
        %v834 = vpack.c.b16 %v788, %v786
        %v835 = vpack.c.b16 %v791, %v789
        %v836 = vpack.c.b16 %v792, %v790
        %v837 = vpack.c.b16 %v795, %v793
        %v838 = vpack.c.b16 %v796, %v794
        %v839 = vpack.c.b16 %v799, %v797
        %v840 = vpack.c.b16 %v800, %v798
        %v841 = vpack.c.b16 %v803, %v801
        %v842 = vpack.c.b16 %v804, %v802
        %v843 = vpack.c.b16 %v807, %v805
        %v844 = vpack.c.b16 %v808, %v806
        %v845 = vpack.c.b16 %v811, %v809
        %v846 = vpack.c.b16 %v812, %v810
        %v847 = vpack.c.b16 %v815, %v813
        %v848 = vpack.c.b16 %v816, %v814
        %881 = vmatpush.bf16.msra.mxu0 %v831
        %882 = vmatpush.bf16.msra.mxu0 %v829
        %883 = vmatpush.bf16.msra.mxu0 %v827
        %884 = vmatpush.bf16.msra.mxu0 %v825
        %885 = vmatpush.bf16.msra.mxu0 %v823
        %886 = vmatpush.bf16.msra.mxu0 %v821
        %887 = vmatpush.bf16.msra.mxu0 %v819
        %888 = vmatpush.bf16.msra.mxu0 %v817
        %889 = vmatmul.bf16.gmra.mxu0 %v657
        %v890 = vpop.f32.mrf.mxu0
        %v891 = vadd.f32 %v557, %v890
        %v892 = vpop.f32.mrf.mxu0
        %v893 = vadd.f32 %v557, %v892
        %894 = vmatmul.bf16.gmra.mxu0 %v659
        %v895 = vpop.f32.mrf.mxu0
        %v896 = vadd.f32 %v557, %v895
        %v897 = vpop.f32.mrf.mxu0
        %v898 = vadd.f32 %v557, %v897
        %899 = vmatmul.bf16.gmra.mxu0 %v661
        %v900 = vpop.f32.mrf.mxu0
        %v901 = vadd.f32 %v557, %v900
        %v902 = vpop.f32.mrf.mxu0
        %v903 = vadd.f32 %v557, %v902
        %904 = vmatmul.bf16.gmra.mxu0 %v663
        %v905 = vpop.f32.mrf.mxu0
        %v906 = vadd.f32 %v557, %v905
        %v907 = vpop.f32.mrf.mxu0
        %v908 = vadd.f32 %v557, %v907
        %909 = vmatmul.bf16.gmra.mxu0 %v665
        %v910 = vpop.f32.mrf.mxu0
        %v911 = vadd.f32 %v557, %v910
        %v912 = vpop.f32.mrf.mxu0
        %v913 = vadd.f32 %v557, %v912
        %914 = vmatmul.bf16.gmra.mxu0 %v667
        %v915 = vpop.f32.mrf.mxu0
        %v916 = vadd.f32 %v557, %v915
        %v917 = vpop.f32.mrf.mxu0
        %v918 = vadd.f32 %v557, %v917
        %919 = vmatmul.bf16.gmra.mxu0 %v669
        %v920 = vpop.f32.mrf.mxu0
        %v921 = vadd.f32 %v557, %v920
        %v922 = vpop.f32.mrf.mxu0
        %v923 = vadd.f32 %v557, %v922
        %924 = vmatmul.bf16.gmra.mxu0 %v671
        %v925 = vpop.f32.mrf.mxu0
        %v926 = vadd.f32 %v557, %v925
        %v927 = vpop.f32.mrf.mxu0
        %v928 = vadd.f32 %v557, %v927
        %929 = vmatmul.bf16.gmra.mxu0 %v673
        %v930 = vpop.f32.mrf.mxu0
        %v931 = vadd.f32 %v557, %v930
        %v932 = vpop.f32.mrf.mxu0
        %v933 = vadd.f32 %v557, %v932
        %934 = vmatmul.bf16.gmra.mxu0 %v675
        %v935 = vpop.f32.mrf.mxu0
        %v936 = vadd.f32 %v557, %v935
        %v937 = vpop.f32.mrf.mxu0
        %v938 = vadd.f32 %v557, %v937
        %939 = vmatmul.bf16.gmra.mxu0 %v677
        %v940 = vpop.f32.mrf.mxu0
        %v941 = vadd.f32 %v557, %v940
        %v942 = vpop.f32.mrf.mxu0
        %v943 = vadd.f32 %v557, %v942
        %944 = vmatmul.bf16.gmra.mxu0 %v679
        %v945 = vpop.f32.mrf.mxu0
        %v946 = vadd.f32 %v557, %v945
        %v947 = vpop.f32.mrf.mxu0
        %v948 = vadd.f32 %v557, %v947
        %949 = vmatmul.bf16.gmra.mxu0 %v681
        %v950 = vpop.f32.mrf.mxu0
        %v951 = vadd.f32 %v557, %v950
        %v952 = vpop.f32.mrf.mxu0
        %v953 = vadd.f32 %v557, %v952
        %954 = vmatmul.bf16.gmra.mxu0 %v683
        %v955 = vpop.f32.mrf.mxu0
        %v956 = vadd.f32 %v557, %v955
        %v957 = vpop.f32.mrf.mxu0
        %v958 = vadd.f32 %v557, %v957
        %959 = vmatmul.bf16.gmra.mxu0 %v685
        %v960 = vpop.f32.mrf.mxu0
        %v961 = vadd.f32 %v557, %v960
        %v962 = vpop.f32.mrf.mxu0
        %v963 = vadd.f32 %v557, %v962
        %964 = vmatmul.bf16.gmra.mxu0 %v687
        %v965 = vpop.f32.mrf.mxu0
        %v966 = vadd.f32 %v557, %v965
        %v967 = vpop.f32.mrf.mxu0
        %v968 = vadd.f32 %v557, %v967
        %969 = vdwg.mxu0
        %970 = vmatpush.bf16.msra.mxu0 %v847
        %971 = vmatpush.bf16.msra.mxu0 %v845
        %972 = vmatpush.bf16.msra.mxu0 %v843
        %973 = vmatpush.bf16.msra.mxu0 %v841
        %974 = vmatpush.bf16.msra.mxu0 %v839
        %975 = vmatpush.bf16.msra.mxu0 %v837
        %976 = vmatpush.bf16.msra.mxu0 %v835
        %977 = vmatpush.bf16.msra.mxu0 %v833
        %978 = vmatmul.bf16.gmra.mxu0 %v658
        %v979 = vpop.f32.mrf.mxu0
        %v980 = vadd.f32 %v891, %v979
        %v981 = vpop.f32.mrf.mxu0
        %v982 = vadd.f32 %v893, %v981
        %983 = vmatmul.bf16.gmra.mxu0 %v660
        %v984 = vpop.f32.mrf.mxu0
        %v985 = vadd.f32 %v896, %v984
        %v986 = vpop.f32.mrf.mxu0
        %v987 = vadd.f32 %v898, %v986
        %988 = vmatmul.bf16.gmra.mxu0 %v662
        %v989 = vpop.f32.mrf.mxu0
        %v990 = vadd.f32 %v901, %v989
        %v991 = vpop.f32.mrf.mxu0
        %v992 = vadd.f32 %v903, %v991
        %993 = vmatmul.bf16.gmra.mxu0 %v664
        %v994 = vpop.f32.mrf.mxu0
        %v995 = vadd.f32 %v906, %v994
        %v996 = vpop.f32.mrf.mxu0
        %v997 = vadd.f32 %v908, %v996
        %998 = vmatmul.bf16.gmra.mxu0 %v666
        %v999 = vpop.f32.mrf.mxu0
        %v1000 = vadd.f32 %v911, %v999
        %v1001 = vpop.f32.mrf.mxu0
        %v1002 = vadd.f32 %v913, %v1001
        %1003 = vmatmul.bf16.gmra.mxu0 %v668
        %v1004 = vpop.f32.mrf.mxu0
        %v1005 = vadd.f32 %v916, %v1004
        %v1006 = vpop.f32.mrf.mxu0
        %v1007 = vadd.f32 %v918, %v1006
        %1008 = vmatmul.bf16.gmra.mxu0 %v670
        %v1009 = vpop.f32.mrf.mxu0
        %v1010 = vadd.f32 %v921, %v1009
        %v1011 = vpop.f32.mrf.mxu0
        %v1012 = vadd.f32 %v923, %v1011
        %1013 = vmatmul.bf16.gmra.mxu0 %v672
        %v1014 = vpop.f32.mrf.mxu0
        %v1015 = vadd.f32 %v926, %v1014
        %v1016 = vpop.f32.mrf.mxu0
        %v1017 = vadd.f32 %v928, %v1016
        %1018 = vmatmul.bf16.gmra.mxu0 %v674
        %v1019 = vpop.f32.mrf.mxu0
        %v1020 = vadd.f32 %v931, %v1019
        %v1021 = vpop.f32.mrf.mxu0
        %v1022 = vadd.f32 %v933, %v1021
        %1023 = vmatmul.bf16.gmra.mxu0 %v676
        %v1024 = vpop.f32.mrf.mxu0
        %v1025 = vadd.f32 %v936, %v1024
        %v1026 = vpop.f32.mrf.mxu0
        %v1027 = vadd.f32 %v938, %v1026
        %1028 = vmatmul.bf16.gmra.mxu0 %v678
        %v1029 = vpop.f32.mrf.mxu0
        %v1030 = vadd.f32 %v941, %v1029
        %v1031 = vpop.f32.mrf.mxu0
        %v1032 = vadd.f32 %v943, %v1031
        %1033 = vmatmul.bf16.gmra.mxu0 %v680
        %v1034 = vpop.f32.mrf.mxu0
        %v1035 = vadd.f32 %v946, %v1034
        %v1036 = vpop.f32.mrf.mxu0
        %v1037 = vadd.f32 %v948, %v1036
        %1038 = vmatmul.bf16.gmra.mxu0 %v682
        %v1039 = vpop.f32.mrf.mxu0
        %v1040 = vadd.f32 %v951, %v1039
        %v1041 = vpop.f32.mrf.mxu0
        %v1042 = vadd.f32 %v953, %v1041
        %1043 = vmatmul.bf16.gmra.mxu0 %v684
        %v1044 = vpop.f32.mrf.mxu0
        %v1045 = vadd.f32 %v956, %v1044
        %v1046 = vpop.f32.mrf.mxu0
        %v1047 = vadd.f32 %v958, %v1046
        %1048 = vmatmul.bf16.gmra.mxu0 %v686
        %v1049 = vpop.f32.mrf.mxu0
        %v1050 = vadd.f32 %v961, %v1049
        %v1051 = vpop.f32.mrf.mxu0
        %v1052 = vadd.f32 %v963, %v1051
        %1053 = vmatmul.bf16.gmra.mxu0 %v688
        %v1054 = vpop.f32.mrf.mxu0
        %v1055 = vadd.f32 %v966, %v1054
        %v1056 = vpop.f32.mrf.mxu0
        %v1057 = vadd.f32 %v968, %v1056
        %1058 = vdwg.mxu0
        %1059 = vmatpush.bf16.msra.mxu0 %v832
        %1060 = vmatpush.bf16.msra.mxu0 %v830
        %1061 = vmatpush.bf16.msra.mxu0 %v828
        %1062 = vmatpush.bf16.msra.mxu0 %v826
        %1063 = vmatpush.bf16.msra.mxu0 %v824
        %1064 = vmatpush.bf16.msra.mxu0 %v822
        %1065 = vmatpush.bf16.msra.mxu0 %v820
        %1066 = vmatpush.bf16.msra.mxu0 %v818
        %1067 = vmatmul.bf16.gmra.mxu0 %v657
        %v1068 = vpop.f32.mrf.mxu0
        %v1069 = vadd.f32 %v558, %v1068
        %v1070 = vpop.f32.mrf.mxu0
        %v1071 = vadd.f32 %v558, %v1070
        %1072 = vmatmul.bf16.gmra.mxu0 %v659
        %v1073 = vpop.f32.mrf.mxu0
        %v1074 = vadd.f32 %v558, %v1073
        %v1075 = vpop.f32.mrf.mxu0
        %v1076 = vadd.f32 %v558, %v1075
        %1077 = vmatmul.bf16.gmra.mxu0 %v661
        %v1078 = vpop.f32.mrf.mxu0
        %v1079 = vadd.f32 %v558, %v1078
        %v1080 = vpop.f32.mrf.mxu0
        %v1081 = vadd.f32 %v558, %v1080
        %1082 = vmatmul.bf16.gmra.mxu0 %v663
        %v1083 = vpop.f32.mrf.mxu0
        %v1084 = vadd.f32 %v558, %v1083
        %v1085 = vpop.f32.mrf.mxu0
        %v1086 = vadd.f32 %v558, %v1085
        %1087 = vmatmul.bf16.gmra.mxu0 %v665
        %v1088 = vpop.f32.mrf.mxu0
        %v1089 = vadd.f32 %v558, %v1088
        %v1090 = vpop.f32.mrf.mxu0
        %v1091 = vadd.f32 %v558, %v1090
        %1092 = vmatmul.bf16.gmra.mxu0 %v667
        %v1093 = vpop.f32.mrf.mxu0
        %v1094 = vadd.f32 %v558, %v1093
        %v1095 = vpop.f32.mrf.mxu0
        %v1096 = vadd.f32 %v558, %v1095
        %1097 = vmatmul.bf16.gmra.mxu0 %v669
        %v1098 = vpop.f32.mrf.mxu0
        %v1099 = vadd.f32 %v558, %v1098
        %v1100 = vpop.f32.mrf.mxu0
        %v1101 = vadd.f32 %v558, %v1100
        %1102 = vmatmul.bf16.gmra.mxu0 %v671
        %v1103 = vpop.f32.mrf.mxu0
        %v1104 = vadd.f32 %v558, %v1103
        %v1105 = vpop.f32.mrf.mxu0
        %v1106 = vadd.f32 %v558, %v1105
        %1107 = vmatmul.bf16.gmra.mxu0 %v673
        %v1108 = vpop.f32.mrf.mxu0
        %v1109 = vadd.f32 %v558, %v1108
        %v1110 = vpop.f32.mrf.mxu0
        %v1111 = vadd.f32 %v558, %v1110
        %1112 = vmatmul.bf16.gmra.mxu0 %v675
        %v1113 = vpop.f32.mrf.mxu0
        %v1114 = vadd.f32 %v558, %v1113
        %v1115 = vpop.f32.mrf.mxu0
        %v1116 = vadd.f32 %v558, %v1115
        %1117 = vmatmul.bf16.gmra.mxu0 %v677
        %v1118 = vpop.f32.mrf.mxu0
        %v1119 = vadd.f32 %v558, %v1118
        %v1120 = vpop.f32.mrf.mxu0
        %v1121 = vadd.f32 %v558, %v1120
        %1122 = vmatmul.bf16.gmra.mxu0 %v679
        %v1123 = vpop.f32.mrf.mxu0
        %v1124 = vadd.f32 %v558, %v1123
        %v1125 = vpop.f32.mrf.mxu0
        %v1126 = vadd.f32 %v558, %v1125
        %1127 = vmatmul.bf16.gmra.mxu0 %v681
        %v1128 = vpop.f32.mrf.mxu0
        %v1129 = vadd.f32 %v558, %v1128
        %v1130 = vpop.f32.mrf.mxu0
        %v1131 = vadd.f32 %v558, %v1130
        %1132 = vmatmul.bf16.gmra.mxu0 %v683
        %v1133 = vpop.f32.mrf.mxu0
        %v1134 = vadd.f32 %v558, %v1133
        %v1135 = vpop.f32.mrf.mxu0
        %v1136 = vadd.f32 %v558, %v1135
        %1137 = vmatmul.bf16.gmra.mxu0 %v685
        %v1138 = vpop.f32.mrf.mxu0
        %v1139 = vadd.f32 %v558, %v1138
        %v1140 = vpop.f32.mrf.mxu0
        %v1141 = vadd.f32 %v558, %v1140
        %1142 = vmatmul.bf16.gmra.mxu0 %v687
        %v1143 = vpop.f32.mrf.mxu0
        %v1144 = vadd.f32 %v558, %v1143
        %v1145 = vpop.f32.mrf.mxu0
        %v1146 = vadd.f32 %v558, %v1145
        %1147 = vdwg.mxu0
        %1148 = vmatpush.bf16.msra.mxu0 %v848
        %1149 = vmatpush.bf16.msra.mxu0 %v846
        %1150 = vmatpush.bf16.msra.mxu0 %v844
        %1151 = vmatpush.bf16.msra.mxu0 %v842
        %1152 = vmatpush.bf16.msra.mxu0 %v840
        %1153 = vmatpush.bf16.msra.mxu0 %v838
        %1154 = vmatpush.bf16.msra.mxu0 %v836
        %1155 = vmatpush.bf16.msra.mxu0 %v834
        %1156 = vmatmul.bf16.gmra.mxu0 %v658
        %v1157 = vpop.f32.mrf.mxu0
        %v1158 = vadd.f32 %v1069, %v1157
        %v1159 = vpop.f32.mrf.mxu0
        %v1160 = vadd.f32 %v1071, %v1159
        %1161 = vmatmul.bf16.gmra.mxu0 %v660
        %v1162 = vpop.f32.mrf.mxu0
        %v1163 = vadd.f32 %v1074, %v1162
        %v1164 = vpop.f32.mrf.mxu0
        %v1165 = vadd.f32 %v1076, %v1164
        %1166 = vmatmul.bf16.gmra.mxu0 %v662
        %v1167 = vpop.f32.mrf.mxu0
        %v1168 = vadd.f32 %v1079, %v1167
        %v1169 = vpop.f32.mrf.mxu0
        %v1170 = vadd.f32 %v1081, %v1169
        %1171 = vmatmul.bf16.gmra.mxu0 %v664
        %v1172 = vpop.f32.mrf.mxu0
        %v1173 = vadd.f32 %v1084, %v1172
        %v1174 = vpop.f32.mrf.mxu0
        %v1175 = vadd.f32 %v1086, %v1174
        %1176 = vmatmul.bf16.gmra.mxu0 %v666
        %v1177 = vpop.f32.mrf.mxu0
        %v1178 = vadd.f32 %v1089, %v1177
        %v1179 = vpop.f32.mrf.mxu0
        %v1180 = vadd.f32 %v1091, %v1179
        %1181 = vmatmul.bf16.gmra.mxu0 %v668
        %v1182 = vpop.f32.mrf.mxu0
        %v1183 = vadd.f32 %v1094, %v1182
        %v1184 = vpop.f32.mrf.mxu0
        %v1185 = vadd.f32 %v1096, %v1184
        %1186 = vmatmul.bf16.gmra.mxu0 %v670
        %v1187 = vpop.f32.mrf.mxu0
        %v1188 = vadd.f32 %v1099, %v1187
        %v1189 = vpop.f32.mrf.mxu0
        %v1190 = vadd.f32 %v1101, %v1189
        %1191 = vmatmul.bf16.gmra.mxu0 %v672
        %v1192 = vpop.f32.mrf.mxu0
        %v1193 = vadd.f32 %v1104, %v1192
        %v1194 = vpop.f32.mrf.mxu0
        %v1195 = vadd.f32 %v1106, %v1194
        %1196 = vmatmul.bf16.gmra.mxu0 %v674
        %v1197 = vpop.f32.mrf.mxu0
        %v1198 = vadd.f32 %v1109, %v1197
        %v1199 = vpop.f32.mrf.mxu0
        %v1200 = vadd.f32 %v1111, %v1199
        %1201 = vmatmul.bf16.gmra.mxu0 %v676
        %v1202 = vpop.f32.mrf.mxu0
        %v1203 = vadd.f32 %v1114, %v1202
        %v1204 = vpop.f32.mrf.mxu0
        %v1205 = vadd.f32 %v1116, %v1204
        %1206 = vmatmul.bf16.gmra.mxu0 %v678
        %v1207 = vpop.f32.mrf.mxu0
        %v1208 = vadd.f32 %v1119, %v1207
        %v1209 = vpop.f32.mrf.mxu0
        %v1210 = vadd.f32 %v1121, %v1209
        %1211 = vmatmul.bf16.gmra.mxu0 %v680
        %v1212 = vpop.f32.mrf.mxu0
        %v1213 = vadd.f32 %v1124, %v1212
        %v1214 = vpop.f32.mrf.mxu0
        %v1215 = vadd.f32 %v1126, %v1214
        %1216 = vmatmul.bf16.gmra.mxu0 %v682
        %v1217 = vpop.f32.mrf.mxu0
        %v1218 = vadd.f32 %v1129, %v1217
        %v1219 = vpop.f32.mrf.mxu0
        %v1220 = vadd.f32 %v1131, %v1219
        %1221 = vmatmul.bf16.gmra.mxu0 %v684
        %v1222 = vpop.f32.mrf.mxu0
        %v1223 = vadd.f32 %v1134, %v1222
        %v1224 = vpop.f32.mrf.mxu0
        %v1225 = vadd.f32 %v1136, %v1224
        %1226 = vmatmul.bf16.gmra.mxu0 %v686
        %v1227 = vpop.f32.mrf.mxu0
        %v1228 = vadd.f32 %v1139, %v1227
        %v1229 = vpop.f32.mrf.mxu0
        %v1230 = vadd.f32 %v1141, %v1229
        %1231 = vmatmul.bf16.gmra.mxu0 %v688
        %v1232 = vpop.f32.mrf.mxu0
        %v1233 = vadd.f32 %v1144, %v1232
        %v1234 = vpop.f32.mrf.mxu0
        %v1235 = vadd.f32 %v1146, %v1234
        %1236 = vdwg.mxu0
        %v1237 = vmax.f32 %v980, %v1158
        %1238 = vmax.xlane.f32.xlu0 %v1237
        %v1239 = vpop.xlane.xlu0 %1238
        %v1240 = vmax.f32 %v982, %v1160
        %1241 = vmax.xlane.f32.xlu0 %v1240
        %v1242 = vpop.xlane.xlu0 %1241
        %v1243 = vmax.f32 %v985, %v1163
        %1244 = vmax.xlane.f32.xlu0 %v1243
        %v1245 = vpop.xlane.xlu0 %1244
        %v1246 = vmax.f32 %v987, %v1165
        %1247 = vmax.xlane.f32.xlu0 %v1246
        %v1248 = vpop.xlane.xlu0 %1247
        %v1249 = vmax.f32 %v990, %v1168
        %1250 = vmax.xlane.f32.xlu0 %v1249
        %v1251 = vpop.xlane.xlu0 %1250
        %v1252 = vmax.f32 %v992, %v1170
        %1253 = vmax.xlane.f32.xlu0 %v1252
        %v1254 = vpop.xlane.xlu0 %1253
        %v1255 = vmax.f32 %v995, %v1173
        %1256 = vmax.xlane.f32.xlu0 %v1255
        %v1257 = vpop.xlane.xlu0 %1256
        %v1258 = vmax.f32 %v997, %v1175
        %1259 = vmax.xlane.f32.xlu0 %v1258
        %v1260 = vpop.xlane.xlu0 %1259
        %v1261 = vmax.f32 %v1000, %v1178
        %1262 = vmax.xlane.f32.xlu0 %v1261
        %v1263 = vpop.xlane.xlu0 %1262
        %v1264 = vmax.f32 %v1002, %v1180
        %1265 = vmax.xlane.f32.xlu0 %v1264
        %v1266 = vpop.xlane.xlu0 %1265
        %v1267 = vmax.f32 %v1005, %v1183
        %1268 = vmax.xlane.f32.xlu0 %v1267
        %v1269 = vpop.xlane.xlu0 %1268
        %v1270 = vmax.f32 %v1007, %v1185
        %1271 = vmax.xlane.f32.xlu0 %v1270
        %v1272 = vpop.xlane.xlu0 %1271
        %v1273 = vmax.f32 %v1010, %v1188
        %1274 = vmax.xlane.f32.xlu0 %v1273
        %v1275 = vpop.xlane.xlu0 %1274
        %v1276 = vmax.f32 %v1012, %v1190
        %1277 = vmax.xlane.f32.xlu0 %v1276
        %v1278 = vpop.xlane.xlu0 %1277
        %v1279 = vmax.f32 %v1015, %v1193
        %1280 = vmax.xlane.f32.xlu0 %v1279
        %v1281 = vpop.xlane.xlu0 %1280
        %v1282 = vmax.f32 %v1017, %v1195
        %1283 = vmax.xlane.f32.xlu0 %v1282
        %v1284 = vpop.xlane.xlu0 %1283
        %v1285 = vmax.f32 %v1020, %v1198
        %1286 = vmax.xlane.f32.xlu0 %v1285
        %v1287 = vpop.xlane.xlu0 %1286
        %v1288 = vmax.f32 %v1022, %v1200
        %1289 = vmax.xlane.f32.xlu0 %v1288
        %v1290 = vpop.xlane.xlu0 %1289
        %v1291 = vmax.f32 %v1025, %v1203
        %1292 = vmax.xlane.f32.xlu0 %v1291
        %v1293 = vpop.xlane.xlu0 %1292
        %v1294 = vmax.f32 %v1027, %v1205
        %1295 = vmax.xlane.f32.xlu0 %v1294
        %v1296 = vpop.xlane.xlu0 %1295
        %v1297 = vmax.f32 %v1030, %v1208
        %1298 = vmax.xlane.f32.xlu0 %v1297
        %v1299 = vpop.xlane.xlu0 %1298
        %v1300 = vmax.f32 %v1032, %v1210
        %1301 = vmax.xlane.f32.xlu0 %v1300
        %v1302 = vpop.xlane.xlu0 %1301
        %v1303 = vmax.f32 %v1035, %v1213
        %1304 = vmax.xlane.f32.xlu0 %v1303
        %v1305 = vpop.xlane.xlu0 %1304
        %v1306 = vmax.f32 %v1037, %v1215
        %1307 = vmax.xlane.f32.xlu0 %v1306
        %v1308 = vpop.xlane.xlu0 %1307
        %v1309 = vmax.f32 %v1040, %v1218
        %1310 = vmax.xlane.f32.xlu0 %v1309
        %v1311 = vpop.xlane.xlu0 %1310
        %v1312 = vmax.f32 %v1042, %v1220
        %1313 = vmax.xlane.f32.xlu0 %v1312
        %v1314 = vpop.xlane.xlu0 %1313
        %v1315 = vmax.f32 %v1045, %v1223
        %1316 = vmax.xlane.f32.xlu0 %v1315
        %v1317 = vpop.xlane.xlu0 %1316
        %v1318 = vmax.f32 %v1047, %v1225
        %1319 = vmax.xlane.f32.xlu0 %v1318
        %v1320 = vpop.xlane.xlu0 %1319
        %v1321 = vmax.f32 %v1050, %v1228
        %1322 = vmax.xlane.f32.xlu0 %v1321
        %v1323 = vpop.xlane.xlu0 %1322
        %v1324 = vmax.f32 %v1052, %v1230
        %1325 = vmax.xlane.f32.xlu0 %v1324
        %v1326 = vpop.xlane.xlu0 %1325
        %v1327 = vmax.f32 %v1055, %v1233
        %1328 = vmax.xlane.f32.xlu0 %v1327
        %v1329 = vpop.xlane.xlu0 %1328
        %v1330 = vmax.f32 %v1057, %v1235
        %1331 = vmax.xlane.f32.xlu0 %v1330
        %v1332 = vpop.xlane.xlu0 %1331
        %v1333 = vsub.f32 %v980, %v1239
        %v1334 = vsub.f32 %v1158, %v1239
        %v1335 = vsub.f32 %v982, %v1242
        %v1336 = vsub.f32 %v1160, %v1242
        %v1337 = vsub.f32 %v985, %v1245
        %v1338 = vsub.f32 %v1163, %v1245
        %v1339 = vsub.f32 %v987, %v1248
        %v1340 = vsub.f32 %v1165, %v1248
        %v1341 = vsub.f32 %v990, %v1251
        %v1342 = vsub.f32 %v1168, %v1251
        %v1343 = vsub.f32 %v992, %v1254
        %v1344 = vsub.f32 %v1170, %v1254
        %v1345 = vsub.f32 %v995, %v1257
        %v1346 = vsub.f32 %v1173, %v1257
        %v1347 = vsub.f32 %v997, %v1260
        %v1348 = vsub.f32 %v1175, %v1260
        %v1349 = vsub.f32 %v1000, %v1263
        %v1350 = vsub.f32 %v1178, %v1263
        %v1351 = vsub.f32 %v1002, %v1266
        %v1352 = vsub.f32 %v1180, %v1266
        %v1353 = vsub.f32 %v1005, %v1269
        %v1354 = vsub.f32 %v1183, %v1269
        %v1355 = vsub.f32 %v1007, %v1272
        %v1356 = vsub.f32 %v1185, %v1272
        %v1357 = vsub.f32 %v1010, %v1275
        %v1358 = vsub.f32 %v1188, %v1275
        %v1359 = vsub.f32 %v1012, %v1278
        %v1360 = vsub.f32 %v1190, %v1278
        %v1361 = vsub.f32 %v1015, %v1281
        %v1362 = vsub.f32 %v1193, %v1281
        %v1363 = vsub.f32 %v1017, %v1284
        %v1364 = vsub.f32 %v1195, %v1284
        %v1365 = vsub.f32 %v1020, %v1287
        %v1366 = vsub.f32 %v1198, %v1287
        %v1367 = vsub.f32 %v1022, %v1290
        %v1368 = vsub.f32 %v1200, %v1290
        %v1369 = vsub.f32 %v1025, %v1293
        %v1370 = vsub.f32 %v1203, %v1293
        %v1371 = vsub.f32 %v1027, %v1296
        %v1372 = vsub.f32 %v1205, %v1296
        %v1373 = vsub.f32 %v1030, %v1299
        %v1374 = vsub.f32 %v1208, %v1299
        %v1375 = vsub.f32 %v1032, %v1302
        %v1376 = vsub.f32 %v1210, %v1302
        %v1377 = vsub.f32 %v1035, %v1305
        %v1378 = vsub.f32 %v1213, %v1305
        %v1379 = vsub.f32 %v1037, %v1308
        %v1380 = vsub.f32 %v1215, %v1308
        %v1381 = vsub.f32 %v1040, %v1311
        %v1382 = vsub.f32 %v1218, %v1311
        %v1383 = vsub.f32 %v1042, %v1314
        %v1384 = vsub.f32 %v1220, %v1314
        %v1385 = vsub.f32 %v1045, %v1317
        %v1386 = vsub.f32 %v1223, %v1317
        %v1387 = vsub.f32 %v1047, %v1320
        %v1388 = vsub.f32 %v1225, %v1320
        %v1389 = vsub.f32 %v1050, %v1323
        %v1390 = vsub.f32 %v1228, %v1323
        %v1391 = vsub.f32 %v1052, %v1326
        %v1392 = vsub.f32 %v1230, %v1326
        %v1393 = vsub.f32 %v1055, %v1329
        %v1394 = vsub.f32 %v1233, %v1329
        %v1395 = vsub.f32 %v1057, %v1332
        %v1396 = vsub.f32 %v1235, %v1332
        %v1397 = vmul.f32 %v1333, 1.442695
        %v1398 = vpow.pop %v1397
        %v1399 = vmul.f32 %v1334, 1.442695
        %v1400 = vpow.pop %v1399
        %v1401 = vmul.f32 %v1335, 1.442695
        %v1402 = vpow.pop %v1401
        %v1403 = vmul.f32 %v1336, 1.442695
        %v1404 = vpow.pop %v1403
        %v1405 = vmul.f32 %v1337, 1.442695
        %v1406 = vpow.pop %v1405
        %v1407 = vmul.f32 %v1338, 1.442695
        %v1408 = vpow.pop %v1407
        %v1409 = vmul.f32 %v1339, 1.442695
        %v1410 = vpow.pop %v1409
        %v1411 = vmul.f32 %v1340, 1.442695
        %v1412 = vpow.pop %v1411
        %v1413 = vmul.f32 %v1341, 1.442695
        %v1414 = vpow.pop %v1413
        %v1415 = vmul.f32 %v1342, 1.442695
        %v1416 = vpow.pop %v1415
        %v1417 = vmul.f32 %v1343, 1.442695
        %v1418 = vpow.pop %v1417
        %v1419 = vmul.f32 %v1344, 1.442695
        %v1420 = vpow.pop %v1419
        %v1421 = vmul.f32 %v1345, 1.442695
        %v1422 = vpow.pop %v1421
        %v1423 = vmul.f32 %v1346, 1.442695
        %v1424 = vpow.pop %v1423
        %v1425 = vmul.f32 %v1347, 1.442695
        %v1426 = vpow.pop %v1425
        %v1427 = vmul.f32 %v1348, 1.442695
        %v1428 = vpow.pop %v1427
        %v1429 = vmul.f32 %v1349, 1.442695
        %v1430 = vpow.pop %v1429
        %v1431 = vmul.f32 %v1350, 1.442695
        %v1432 = vpow.pop %v1431
        %v1433 = vmul.f32 %v1351, 1.442695
        %v1434 = vpow.pop %v1433
        %v1435 = vmul.f32 %v1352, 1.442695
        %v1436 = vpow.pop %v1435
        %v1437 = vmul.f32 %v1353, 1.442695
        %v1438 = vpow.pop %v1437
        %v1439 = vmul.f32 %v1354, 1.442695
        %v1440 = vpow.pop %v1439
        %v1441 = vmul.f32 %v1355, 1.442695
        %v1442 = vpow.pop %v1441
        %v1443 = vmul.f32 %v1356, 1.442695
        %v1444 = vpow.pop %v1443
        %v1445 = vmul.f32 %v1357, 1.442695
        %v1446 = vpow.pop %v1445
        %v1447 = vmul.f32 %v1358, 1.442695
        %v1448 = vpow.pop %v1447
        %v1449 = vmul.f32 %v1359, 1.442695
        %v1450 = vpow.pop %v1449
        %v1451 = vmul.f32 %v1360, 1.442695
        %v1452 = vpow.pop %v1451
        %v1453 = vmul.f32 %v1361, 1.442695
        %v1454 = vpow.pop %v1453
        %v1455 = vmul.f32 %v1362, 1.442695
        %v1456 = vpow.pop %v1455
        %v1457 = vmul.f32 %v1363, 1.442695
        %v1458 = vpow.pop %v1457
        %v1459 = vmul.f32 %v1364, 1.442695
        %v1460 = vpow.pop %v1459
        %v1461 = vmul.f32 %v1365, 1.442695
        %v1462 = vpow.pop %v1461
        %v1463 = vmul.f32 %v1366, 1.442695
        %v1464 = vpow.pop %v1463
        %v1465 = vmul.f32 %v1367, 1.442695
        %v1466 = vpow.pop %v1465
        %v1467 = vmul.f32 %v1368, 1.442695
        %v1468 = vpow.pop %v1467
        %v1469 = vmul.f32 %v1369, 1.442695
        %v1470 = vpow.pop %v1469
        %v1471 = vmul.f32 %v1370, 1.442695
        %v1472 = vpow.pop %v1471
        %v1473 = vmul.f32 %v1371, 1.442695
        %v1474 = vpow.pop %v1473
        %v1475 = vmul.f32 %v1372, 1.442695
        %v1476 = vpow.pop %v1475
        %v1477 = vmul.f32 %v1373, 1.442695
        %v1478 = vpow.pop %v1477
        %v1479 = vmul.f32 %v1374, 1.442695
        %v1480 = vpow.pop %v1479
        %v1481 = vmul.f32 %v1375, 1.442695
        %v1482 = vpow.pop %v1481
        %v1483 = vmul.f32 %v1376, 1.442695
        %v1484 = vpow.pop %v1483
        %v1485 = vmul.f32 %v1377, 1.442695
        %v1486 = vpow.pop %v1485
        %v1487 = vmul.f32 %v1378, 1.442695
        %v1488 = vpow.pop %v1487
        %v1489 = vmul.f32 %v1379, 1.442695
        %v1490 = vpow.pop %v1489
        %v1491 = vmul.f32 %v1380, 1.442695
        %v1492 = vpow.pop %v1491
        %v1493 = vmul.f32 %v1381, 1.442695
        %v1494 = vpow.pop %v1493
        %v1495 = vmul.f32 %v1382, 1.442695
        %v1496 = vpow.pop %v1495
        %v1497 = vmul.f32 %v1383, 1.442695
        %v1498 = vpow.pop %v1497
        %v1499 = vmul.f32 %v1384, 1.442695
        %v1500 = vpow.pop %v1499
        %v1501 = vmul.f32 %v1385, 1.442695
        %v1502 = vpow.pop %v1501
        %v1503 = vmul.f32 %v1386, 1.442695
        %v1504 = vpow.pop %v1503
        %v1505 = vmul.f32 %v1387, 1.442695
        %v1506 = vpow.pop %v1505
        %v1507 = vmul.f32 %v1388, 1.442695
        %v1508 = vpow.pop %v1507
        %v1509 = vmul.f32 %v1389, 1.442695
        %v1510 = vpow.pop %v1509
        %v1511 = vmul.f32 %v1390, 1.442695
        %v1512 = vpow.pop %v1511
        %v1513 = vmul.f32 %v1391, 1.442695
        %v1514 = vpow.pop %v1513
        %v1515 = vmul.f32 %v1392, 1.442695
        %v1516 = vpow.pop %v1515
        %v1517 = vmul.f32 %v1393, 1.442695
        %v1518 = vpow.pop %v1517
        %v1519 = vmul.f32 %v1394, 1.442695
        %v1520 = vpow.pop %v1519
        %v1521 = vmul.f32 %v1395, 1.442695
        %v1522 = vpow.pop %v1521
        %v1523 = vmul.f32 %v1396, 1.442695
        %v1524 = vpow.pop %v1523
        %v1525 = vadd.f32 %v1398, %v1400
        %1526 = vadd.xlane.f32.xlu0 %v1525
        %v1527 = vpop.xlane.xlu0 %1526
        %v1528 = vadd.f32 %v1402, %v1404
        %1529 = vadd.xlane.f32.xlu0 %v1528
        %v1530 = vpop.xlane.xlu0 %1529
        %v1531 = vadd.f32 %v1406, %v1408
        %1532 = vadd.xlane.f32.xlu0 %v1531
        %v1533 = vpop.xlane.xlu0 %1532
        %v1534 = vadd.f32 %v1410, %v1412
        %1535 = vadd.xlane.f32.xlu0 %v1534
        %v1536 = vpop.xlane.xlu0 %1535
        %v1537 = vadd.f32 %v1414, %v1416
        %1538 = vadd.xlane.f32.xlu0 %v1537
        %v1539 = vpop.xlane.xlu0 %1538
        %v1540 = vadd.f32 %v1418, %v1420
        %1541 = vadd.xlane.f32.xlu0 %v1540
        %v1542 = vpop.xlane.xlu0 %1541
        %v1543 = vadd.f32 %v1422, %v1424
        %1544 = vadd.xlane.f32.xlu0 %v1543
        %v1545 = vpop.xlane.xlu0 %1544
        %v1546 = vadd.f32 %v1426, %v1428
        %1547 = vadd.xlane.f32.xlu0 %v1546
        %v1548 = vpop.xlane.xlu0 %1547
        %v1549 = vadd.f32 %v1430, %v1432
        %1550 = vadd.xlane.f32.xlu0 %v1549
        %v1551 = vpop.xlane.xlu0 %1550
        %v1552 = vadd.f32 %v1434, %v1436
        %1553 = vadd.xlane.f32.xlu0 %v1552
        %v1554 = vpop.xlane.xlu0 %1553
        %v1555 = vadd.f32 %v1438, %v1440
        %1556 = vadd.xlane.f32.xlu0 %v1555
        %v1557 = vpop.xlane.xlu0 %1556
        %v1558 = vadd.f32 %v1442, %v1444
        %1559 = vadd.xlane.f32.xlu0 %v1558
        %v1560 = vpop.xlane.xlu0 %1559
        %v1561 = vadd.f32 %v1446, %v1448
        %1562 = vadd.xlane.f32.xlu0 %v1561
        %v1563 = vpop.xlane.xlu0 %1562
        %v1564 = vadd.f32 %v1450, %v1452
        %1565 = vadd.xlane.f32.xlu0 %v1564
        %v1566 = vpop.xlane.xlu0 %1565
        %v1567 = vadd.f32 %v1454, %v1456
        %1568 = vadd.xlane.f32.xlu0 %v1567
        %v1569 = vpop.xlane.xlu0 %1568
        %v1570 = vadd.f32 %v1458, %v1460
        %1571 = vadd.xlane.f32.xlu0 %v1570
        %v1572 = vpop.xlane.xlu0 %1571
        %v1573 = vadd.f32 %v1462, %v1464
        %1574 = vadd.xlane.f32.xlu0 %v1573
        %v1575 = vpop.xlane.xlu0 %1574
        %v1576 = vadd.f32 %v1466, %v1468
        %1577 = vadd.xlane.f32.xlu0 %v1576
        %v1578 = vpop.xlane.xlu0 %1577
        %v1579 = vadd.f32 %v1470, %v1472
        %1580 = vadd.xlane.f32.xlu0 %v1579
        %v1581 = vpop.xlane.xlu0 %1580
        %v1582 = vadd.f32 %v1474, %v1476
        %1583 = vadd.xlane.f32.xlu0 %v1582
        %v1584 = vpop.xlane.xlu0 %1583
        %v1585 = vadd.f32 %v1478, %v1480
        %1586 = vadd.xlane.f32.xlu0 %v1585
        %v1587 = vpop.xlane.xlu0 %1586
        %v1588 = vadd.f32 %v1482, %v1484
        %1589 = vadd.xlane.f32.xlu0 %v1588
        %v1590 = vpop.xlane.xlu0 %1589
        %v1591 = vadd.f32 %v1486, %v1488
        %1592 = vadd.xlane.f32.xlu0 %v1591
        %v1593 = vpop.xlane.xlu0 %1592
        %v1594 = vadd.f32 %v1490, %v1492
        %1595 = vadd.xlane.f32.xlu0 %v1594
        %v1596 = vpop.xlane.xlu0 %1595
        %v1597 = vadd.f32 %v1494, %v1496
        %1598 = vadd.xlane.f32.xlu0 %v1597
        %v1599 = vpop.xlane.xlu0 %1598
        %v1600 = vadd.f32 %v1498, %v1500
        %1601 = vadd.xlane.f32.xlu0 %v1600
        %v1602 = vpop.xlane.xlu0 %1601
        %v1603 = vadd.f32 %v1502, %v1504
        %1604 = vadd.xlane.f32.xlu0 %v1603
        %v1605 = vpop.xlane.xlu0 %1604
        %v1606 = vadd.f32 %v1506, %v1508
        %1607 = vadd.xlane.f32.xlu0 %v1606
        %v1608 = vpop.xlane.xlu0 %1607
        %v1609 = vadd.f32 %v1510, %v1512
        %1610 = vadd.xlane.f32.xlu0 %v1609
        %v1611 = vpop.xlane.xlu0 %1610
        %v1612 = vadd.f32 %v1514, %v1516
        %1613 = vadd.xlane.f32.xlu0 %v1612
        %v1614 = vpop.xlane.xlu0 %1613
        %v1615 = vadd.f32 %v1518, %v1520
        %1616 = vadd.xlane.f32.xlu0 %v1615
        %v1617 = vpop.xlane.xlu0 %1616
        %v1618 = vadd.f32 %v1522, %v1524
        %1619 = vadd.xlane.f32.xlu0 %v1618
        %v1620 = vpop.xlane.xlu0 %1619
        %v1621 = vrcp.pop %v1527
        %v1622 = vrcp.pop %v1530
        %v1623 = vrcp.pop %v1533
        %v1624 = vrcp.pop %v1536
        %v1625 = vrcp.pop %v1539
        %v1626 = vrcp.pop %v1542
        %v1627 = vrcp.pop %v1545
        %v1628 = vrcp.pop %v1548
        %v1629 = vrcp.pop %v1551
        %v1630 = vrcp.pop %v1554
        %v1631 = vrcp.pop %v1557
        %v1632 = vrcp.pop %v1560
        %v1633 = vrcp.pop %v1563
        %v1634 = vrcp.pop %v1566
        %v1635 = vrcp.pop %v1569
        %v1636 = vrcp.pop %v1572
        %v1637 = vrcp.pop %v1575
        %v1638 = vrcp.pop %v1578
        %v1639 = vrcp.pop %v1581
        %v1640 = vrcp.pop %v1584
        %v1641 = vrcp.pop %v1587
        %v1642 = vrcp.pop %v1590
        %v1643 = vrcp.pop %v1593
        %v1644 = vrcp.pop %v1596
        %v1645 = vrcp.pop %v1599
        %v1646 = vrcp.pop %v1602
        %v1647 = vrcp.pop %v1605
        %v1648 = vrcp.pop %v1608
        %v1649 = vrcp.pop %v1611
        %v1650 = vrcp.pop %v1614
        %v1651 = vrcp.pop %v1617
        %v1652 = vrcp.pop %v1620
        %v1653 = vmul.f32 %v1398, %v1621
        %v1654 = vmul.f32 %v1400, %v1621
        %v1655 = vmul.f32 %v1402, %v1622
        %v1656 = vmul.f32 %v1404, %v1622
        %v1657 = vmul.f32 %v1406, %v1623
        %v1658 = vmul.f32 %v1408, %v1623
        %v1659 = vmul.f32 %v1410, %v1624
        %v1660 = vmul.f32 %v1412, %v1624
        %v1661 = vmul.f32 %v1414, %v1625
        %v1662 = vmul.f32 %v1416, %v1625
        %v1663 = vmul.f32 %v1418, %v1626
        %v1664 = vmul.f32 %v1420, %v1626
        %v1665 = vmul.f32 %v1422, %v1627
        %v1666 = vmul.f32 %v1424, %v1627
        %v1667 = vmul.f32 %v1426, %v1628
        %v1668 = vmul.f32 %v1428, %v1628
        %v1669 = vmul.f32 %v1430, %v1629
        %v1670 = vmul.f32 %v1432, %v1629
        %v1671 = vmul.f32 %v1434, %v1630
        %v1672 = vmul.f32 %v1436, %v1630
        %v1673 = vmul.f32 %v1438, %v1631
        %v1674 = vmul.f32 %v1440, %v1631
        %v1675 = vmul.f32 %v1442, %v1632
        %v1676 = vmul.f32 %v1444, %v1632
        %v1677 = vmul.f32 %v1446, %v1633
        %v1678 = vmul.f32 %v1448, %v1633
        %v1679 = vmul.f32 %v1450, %v1634
        %v1680 = vmul.f32 %v1452, %v1634
        %v1681 = vmul.f32 %v1454, %v1635
        %v1682 = vmul.f32 %v1456, %v1635
        %v1683 = vmul.f32 %v1458, %v1636
        %v1684 = vmul.f32 %v1460, %v1636
        %v1685 = vmul.f32 %v1462, %v1637
        %v1686 = vmul.f32 %v1464, %v1637
        %v1687 = vmul.f32 %v1466, %v1638
        %v1688 = vmul.f32 %v1468, %v1638
        %v1689 = vmul.f32 %v1470, %v1639
        %v1690 = vmul.f32 %v1472, %v1639
        %v1691 = vmul.f32 %v1474, %v1640
        %v1692 = vmul.f32 %v1476, %v1640
        %v1693 = vmul.f32 %v1478, %v1641
        %v1694 = vmul.f32 %v1480, %v1641
        %v1695 = vmul.f32 %v1482, %v1642
        %v1696 = vmul.f32 %v1484, %v1642
        %v1697 = vmul.f32 %v1486, %v1643
        %v1698 = vmul.f32 %v1488, %v1643
        %v1699 = vmul.f32 %v1490, %v1644
        %v1700 = vmul.f32 %v1492, %v1644
        %v1701 = vmul.f32 %v1494, %v1645
        %v1702 = vmul.f32 %v1496, %v1645
        %v1703 = vmul.f32 %v1498, %v1646
        %v1704 = vmul.f32 %v1500, %v1646
        %v1705 = vmul.f32 %v1502, %v1647
        %v1706 = vmul.f32 %v1504, %v1647
        %v1707 = vmul.f32 %v1506, %v1648
        %v1708 = vmul.f32 %v1508, %v1648
        %v1709 = vmul.f32 %v1510, %v1649
        %v1710 = vmul.f32 %v1512, %v1649
        %v1711 = vmul.f32 %v1514, %v1650
        %v1712 = vmul.f32 %v1516, %v1650
        %v1713 = vmul.f32 %v1518, %v1651
        %v1714 = vmul.f32 %v1520, %v1651
        %v1715 = vmul.f32 %v1522, %v1652
        %v1716 = vmul.f32 %v1524, %v1652
        %v1717 = vpack.c.bf16 %v1655, %v1653
        %v1718 = vpack.c.bf16 %v1656, %v1654
        %v1719 = vpack.c.bf16 %v1659, %v1657
        %v1720 = vpack.c.bf16 %v1660, %v1658
        %v1721 = vpack.c.bf16 %v1663, %v1661
        %v1722 = vpack.c.bf16 %v1664, %v1662
        %v1723 = vpack.c.bf16 %v1667, %v1665
        %v1724 = vpack.c.bf16 %v1668, %v1666
        %v1725 = vpack.c.bf16 %v1671, %v1669
        %v1726 = vpack.c.bf16 %v1672, %v1670
        %v1727 = vpack.c.bf16 %v1675, %v1673
        %v1728 = vpack.c.bf16 %v1676, %v1674
        %v1729 = vpack.c.bf16 %v1679, %v1677
        %v1730 = vpack.c.bf16 %v1680, %v1678
        %v1731 = vpack.c.bf16 %v1683, %v1681
        %v1732 = vpack.c.bf16 %v1684, %v1682
        %v1733 = vpack.c.bf16 %v1687, %v1685
        %v1734 = vpack.c.bf16 %v1688, %v1686
        %v1735 = vpack.c.bf16 %v1691, %v1689
        %v1736 = vpack.c.bf16 %v1692, %v1690
        %v1737 = vpack.c.bf16 %v1695, %v1693
        %v1738 = vpack.c.bf16 %v1696, %v1694
        %v1739 = vpack.c.bf16 %v1699, %v1697
        %v1740 = vpack.c.bf16 %v1700, %v1698
        %v1741 = vpack.c.bf16 %v1703, %v1701
        %v1742 = vpack.c.bf16 %v1704, %v1702
        %v1743 = vpack.c.bf16 %v1707, %v1705
        %v1744 = vpack.c.bf16 %v1708, %v1706
        %v1745 = vpack.c.bf16 %v1711, %v1709
        %v1746 = vpack.c.bf16 %v1712, %v1710
        %v1747 = vpack.c.bf16 %v1715, %v1713
        %v1748 = vpack.c.bf16 %v1716, %v1714
        %v1749 = vld [vmem:[#allocation8] sm:$0xff]
        %v1750 = vld [vmem:[#allocation8 + $0x8] sm:$0xff]
        %v1751 = vld [vmem:[#allocation8 + $0x10] sm:$0xff]
        %v1752 = vld [vmem:[#allocation8 + $0x18] sm:$0xff]
        %v1753 = vld [vmem:[#allocation8 + $0x20] sm:$0xff]
        %v1754 = vld [vmem:[#allocation8 + $0x28] sm:$0xff]
        %v1755 = vld [vmem:[#allocation8 + $0x30] sm:$0xff]
        %v1756 = vld [vmem:[#allocation8 + $0x38] sm:$0xff]
        %v1757 = vld [vmem:[#allocation8 + $0x40] sm:$0xff]
        %v1758 = vld [vmem:[#allocation8 + $0x48] sm:$0xff]
        %v1759 = vld [vmem:[#allocation8 + $0x50] sm:$0xff]
        %v1760 = vld [vmem:[#allocation8 + $0x58] sm:$0xff]
        %v1761 = vld [vmem:[#allocation8 + $0x60] sm:$0xff]
        %v1762 = vld [vmem:[#allocation8 + $0x68] sm:$0xff]
        %v1763 = vld [vmem:[#allocation8 + $0x70] sm:$0xff]
        %v1764 = vld [vmem:[#allocation8 + $0x78] sm:$0xff]
        %v1765 = vld [vmem:[#allocation8 + $0x80] sm:$0xff]
        %v1766 = vld [vmem:[#allocation8 + $0x88] sm:$0xff]
        %v1767 = vld [vmem:[#allocation8 + $0x90] sm:$0xff]
        %v1768 = vld [vmem:[#allocation8 + $0x98] sm:$0xff]
        %v1769 = vld [vmem:[#allocation8 + $0xa0] sm:$0xff]
        %v1770 = vld [vmem:[#allocation8 + $0xa8] sm:$0xff]
        %v1771 = vld [vmem:[#allocation8 + $0xb0] sm:$0xff]
        %v1772 = vld [vmem:[#allocation8 + $0xb8] sm:$0xff]
        %v1773 = vld [vmem:[#allocation8 + $0xc0] sm:$0xff]
        %v1774 = vld [vmem:[#allocation8 + $0xc8] sm:$0xff]
        %v1775 = vld [vmem:[#allocation8 + $0xd0] sm:$0xff]
        %v1776 = vld [vmem:[#allocation8 + $0xd8] sm:$0xff]
        %v1777 = vld [vmem:[#allocation8 + $0xe0] sm:$0xff]
        %v1778 = vld [vmem:[#allocation8 + $0xe8] sm:$0xff]
        %v1779 = vld [vmem:[#allocation8 + $0xf0] sm:$0xff]
        %v1780 = vld [vmem:[#allocation8 + $0xf8] sm:$0xff]
        %v1781 = vld [vmem:[%s5] sm:$0x3]
        %v1783 = vperm.slane %v1781, 0
        %v1784 = vperm.slane %v1781, 1
        %v1819 = vunpack.c.l.b16 %v1749
        %v1820 = vunpack.c.h.b16 %v1749
        %v1821 = vunpack.c.l.b16 %v1750
        %v1822 = vunpack.c.h.b16 %v1750
        %v1823 = vunpack.c.l.b16 %v1751
        %v1824 = vunpack.c.h.b16 %v1751
        %v1825 = vunpack.c.l.b16 %v1752
        %v1826 = vunpack.c.h.b16 %v1752
        %v1827 = vunpack.c.l.b16 %v1753
        %v1828 = vunpack.c.h.b16 %v1753
        %v1829 = vunpack.c.l.b16 %v1754
        %v1830 = vunpack.c.h.b16 %v1754
        %v1831 = vunpack.c.l.b16 %v1755
        %v1832 = vunpack.c.h.b16 %v1755
        %v1833 = vunpack.c.l.b16 %v1756
        %v1834 = vunpack.c.h.b16 %v1756
        %v1835 = vunpack.c.l.b16 %v1757
        %v1836 = vunpack.c.h.b16 %v1757
        %v1837 = vunpack.c.l.b16 %v1758
        %v1838 = vunpack.c.h.b16 %v1758
        %v1839 = vunpack.c.l.b16 %v1759
        %v1840 = vunpack.c.h.b16 %v1759
        %v1841 = vunpack.c.l.b16 %v1760
        %v1842 = vunpack.c.h.b16 %v1760
        %v1843 = vunpack.c.l.b16 %v1761
        %v1844 = vunpack.c.h.b16 %v1761
        %v1845 = vunpack.c.l.b16 %v1762
        %v1846 = vunpack.c.h.b16 %v1762
        %v1847 = vunpack.c.l.b16 %v1763
        %v1848 = vunpack.c.h.b16 %v1763
        %v1849 = vunpack.c.l.b16 %v1764
        %v1850 = vunpack.c.h.b16 %v1764
        %v1851 = vunpack.c.l.b16 %v1765
        %v1852 = vunpack.c.h.b16 %v1765
        %v1853 = vunpack.c.l.b16 %v1766
        %v1854 = vunpack.c.h.b16 %v1766
        %v1855 = vunpack.c.l.b16 %v1767
        %v1856 = vunpack.c.h.b16 %v1767
        %v1857 = vunpack.c.l.b16 %v1768
        %v1858 = vunpack.c.h.b16 %v1768
        %v1859 = vunpack.c.l.b16 %v1769
        %v1860 = vunpack.c.h.b16 %v1769
        %v1861 = vunpack.c.l.b16 %v1770
        %v1862 = vunpack.c.h.b16 %v1770
        %v1863 = vunpack.c.l.b16 %v1771
        %v1864 = vunpack.c.h.b16 %v1771
        %v1865 = vunpack.c.l.b16 %v1772
        %v1866 = vunpack.c.h.b16 %v1772
        %v1867 = vunpack.c.l.b16 %v1773
        %v1868 = vunpack.c.h.b16 %v1773
        %v1869 = vunpack.c.l.b16 %v1774
        %v1870 = vunpack.c.h.b16 %v1774
        %v1871 = vunpack.c.l.b16 %v1775
        %v1872 = vunpack.c.h.b16 %v1775
        %v1873 = vunpack.c.l.b16 %v1776
        %v1874 = vunpack.c.h.b16 %v1776
        %v1875 = vunpack.c.l.b16 %v1777
        %v1876 = vunpack.c.h.b16 %v1777
        %v1877 = vunpack.c.l.b16 %v1778
        %v1878 = vunpack.c.h.b16 %v1778
        %v1879 = vunpack.c.l.b16 %v1779
        %v1880 = vunpack.c.h.b16 %v1779
        %v1881 = vunpack.c.l.b16 %v1780
        %v1882 = vunpack.c.h.b16 %v1780
        %v1883 = vpack.c.b16 %v1821, %v1819
        %v1884 = vpack.c.b16 %v1822, %v1820
        %v1885 = vpack.c.b16 %v1825, %v1823
        %v1886 = vpack.c.b16 %v1826, %v1824
        %v1887 = vpack.c.b16 %v1829, %v1827
        %v1888 = vpack.c.b16 %v1830, %v1828
        %v1889 = vpack.c.b16 %v1833, %v1831
        %v1890 = vpack.c.b16 %v1834, %v1832
        %v1891 = vpack.c.b16 %v1837, %v1835
        %v1892 = vpack.c.b16 %v1838, %v1836
        %v1893 = vpack.c.b16 %v1841, %v1839
        %v1894 = vpack.c.b16 %v1842, %v1840
        %v1895 = vpack.c.b16 %v1845, %v1843
        %v1896 = vpack.c.b16 %v1846, %v1844
        %v1897 = vpack.c.b16 %v1849, %v1847
        %v1898 = vpack.c.b16 %v1850, %v1848
        %v1899 = vpack.c.b16 %v1853, %v1851
        %v1900 = vpack.c.b16 %v1854, %v1852
        %v1901 = vpack.c.b16 %v1857, %v1855
        %v1902 = vpack.c.b16 %v1858, %v1856
        %v1903 = vpack.c.b16 %v1861, %v1859
        %v1904 = vpack.c.b16 %v1862, %v1860
        %v1905 = vpack.c.b16 %v1865, %v1863
        %v1906 = vpack.c.b16 %v1866, %v1864
        %v1907 = vpack.c.b16 %v1869, %v1867
        %v1908 = vpack.c.b16 %v1870, %v1868
        %v1909 = vpack.c.b16 %v1873, %v1871
        %v1910 = vpack.c.b16 %v1874, %v1872
        %v1911 = vpack.c.b16 %v1877, %v1875
        %v1912 = vpack.c.b16 %v1878, %v1876
        %v1913 = vpack.c.b16 %v1881, %v1879
        %v1914 = vpack.c.b16 %v1882, %v1880
        %1947 = vmatpush.bf16.msra.mxu0 %v1897
        %1948 = vmatpush.bf16.msra.mxu0 %v1895
        %1949 = vmatpush.bf16.msra.mxu0 %v1893
        %1950 = vmatpush.bf16.msra.mxu0 %v1891
        %1951 = vmatpush.bf16.msra.mxu0 %v1889
        %1952 = vmatpush.bf16.msra.mxu0 %v1887
        %1953 = vmatpush.bf16.msra.mxu0 %v1885
        %1954 = vmatpush.bf16.msra.mxu0 %v1883
        %1955 = vmatmul.bf16.gmra.mxu0 %v1717
        %v1956 = vpop.f32.mrf.mxu0
        %v1957 = vadd.f32 %v1783, %v1956
        %v1958 = vpop.f32.mrf.mxu0
        %v1959 = vadd.f32 %v1783, %v1958
        %1960 = vmatmul.bf16.gmra.mxu0 %v1719
        %v1961 = vpop.f32.mrf.mxu0
        %v1962 = vadd.f32 %v1783, %v1961
        %v1963 = vpop.f32.mrf.mxu0
        %v1964 = vadd.f32 %v1783, %v1963
        %1965 = vmatmul.bf16.gmra.mxu0 %v1721
        %v1966 = vpop.f32.mrf.mxu0
        %v1967 = vadd.f32 %v1783, %v1966
        %v1968 = vpop.f32.mrf.mxu0
        %v1969 = vadd.f32 %v1783, %v1968
        %1970 = vmatmul.bf16.gmra.mxu0 %v1723
        %v1971 = vpop.f32.mrf.mxu0
        %v1972 = vadd.f32 %v1783, %v1971
        %v1973 = vpop.f32.mrf.mxu0
        %v1974 = vadd.f32 %v1783, %v1973
        %1975 = vmatmul.bf16.gmra.mxu0 %v1725
        %v1976 = vpop.f32.mrf.mxu0
        %v1977 = vadd.f32 %v1783, %v1976
        %v1978 = vpop.f32.mrf.mxu0
        %v1979 = vadd.f32 %v1783, %v1978
        %1980 = vmatmul.bf16.gmra.mxu0 %v1727
        %v1981 = vpop.f32.mrf.mxu0
        %v1982 = vadd.f32 %v1783, %v1981
        %v1983 = vpop.f32.mrf.mxu0
        %v1984 = vadd.f32 %v1783, %v1983
        %1985 = vmatmul.bf16.gmra.mxu0 %v1729
        %v1986 = vpop.f32.mrf.mxu0
        %v1987 = vadd.f32 %v1783, %v1986
        %v1988 = vpop.f32.mrf.mxu0
        %v1989 = vadd.f32 %v1783, %v1988
        %1990 = vmatmul.bf16.gmra.mxu0 %v1731
        %v1991 = vpop.f32.mrf.mxu0
        %v1992 = vadd.f32 %v1783, %v1991
        %v1993 = vpop.f32.mrf.mxu0
        %v1994 = vadd.f32 %v1783, %v1993
        %1995 = vmatmul.bf16.gmra.mxu0 %v1733
        %v1996 = vpop.f32.mrf.mxu0
        %v1997 = vadd.f32 %v1783, %v1996
        %v1998 = vpop.f32.mrf.mxu0
        %v1999 = vadd.f32 %v1783, %v1998
        %2000 = vmatmul.bf16.gmra.mxu0 %v1735
        %v2001 = vpop.f32.mrf.mxu0
        %v2002 = vadd.f32 %v1783, %v2001
        %v2003 = vpop.f32.mrf.mxu0
        %v2004 = vadd.f32 %v1783, %v2003
        %2005 = vmatmul.bf16.gmra.mxu0 %v1737
        %v2006 = vpop.f32.mrf.mxu0
        %v2007 = vadd.f32 %v1783, %v2006
        %v2008 = vpop.f32.mrf.mxu0
        %v2009 = vadd.f32 %v1783, %v2008
        %2010 = vmatmul.bf16.gmra.mxu0 %v1739
        %v2011 = vpop.f32.mrf.mxu0
        %v2012 = vadd.f32 %v1783, %v2011
        %v2013 = vpop.f32.mrf.mxu0
        %v2014 = vadd.f32 %v1783, %v2013
        %2015 = vmatmul.bf16.gmra.mxu0 %v1741
        %v2016 = vpop.f32.mrf.mxu0
        %v2017 = vadd.f32 %v1783, %v2016
        %v2018 = vpop.f32.mrf.mxu0
        %v2019 = vadd.f32 %v1783, %v2018
        %2020 = vmatmul.bf16.gmra.mxu0 %v1743
        %v2021 = vpop.f32.mrf.mxu0
        %v2022 = vadd.f32 %v1783, %v2021
        %v2023 = vpop.f32.mrf.mxu0
        %v2024 = vadd.f32 %v1783, %v2023
        %2025 = vmatmul.bf16.gmra.mxu0 %v1745
        %v2026 = vpop.f32.mrf.mxu0
        %v2027 = vadd.f32 %v1783, %v2026
        %v2028 = vpop.f32.mrf.mxu0
        %v2029 = vadd.f32 %v1783, %v2028
        %2030 = vmatmul.bf16.gmra.mxu0 %v1747
        %v2031 = vpop.f32.mrf.mxu0
        %v2032 = vadd.f32 %v1783, %v2031
        %v2033 = vpop.f32.mrf.mxu0
        %v2034 = vadd.f32 %v1783, %v2033
        %2035 = vdwg.mxu0
        %2036 = vmatpush.bf16.msra.mxu0 %v1913
        %2037 = vmatpush.bf16.msra.mxu0 %v1911
        %2038 = vmatpush.bf16.msra.mxu0 %v1909
        %2039 = vmatpush.bf16.msra.mxu0 %v1907
        %2040 = vmatpush.bf16.msra.mxu0 %v1905
        %2041 = vmatpush.bf16.msra.mxu0 %v1903
        %2042 = vmatpush.bf16.msra.mxu0 %v1901
        %2043 = vmatpush.bf16.msra.mxu0 %v1899
        %2044 = vmatmul.bf16.gmra.mxu0 %v1718
        %v2045 = vpop.f32.mrf.mxu0
        %v2046 = vadd.f32 %v1957, %v2045
        %v2047 = vpop.f32.mrf.mxu0
        %v2048 = vadd.f32 %v1959, %v2047
        %2049 = vmatmul.bf16.gmra.mxu0 %v1720
        %v2050 = vpop.f32.mrf.mxu0
        %v2051 = vadd.f32 %v1962, %v2050
        %v2052 = vpop.f32.mrf.mxu0
        %v2053 = vadd.f32 %v1964, %v2052
        %2054 = vmatmul.bf16.gmra.mxu0 %v1722
        %v2055 = vpop.f32.mrf.mxu0
        %v2056 = vadd.f32 %v1967, %v2055
        %v2057 = vpop.f32.mrf.mxu0
        %v2058 = vadd.f32 %v1969, %v2057
        %2059 = vmatmul.bf16.gmra.mxu0 %v1724
        %v2060 = vpop.f32.mrf.mxu0
        %v2061 = vadd.f32 %v1972, %v2060
        %v2062 = vpop.f32.mrf.mxu0
        %v2063 = vadd.f32 %v1974, %v2062
        %2064 = vmatmul.bf16.gmra.mxu0 %v1726
        %v2065 = vpop.f32.mrf.mxu0
        %v2066 = vadd.f32 %v1977, %v2065
        %v2067 = vpop.f32.mrf.mxu0
        %v2068 = vadd.f32 %v1979, %v2067
        %2069 = vmatmul.bf16.gmra.mxu0 %v1728
        %v2070 = vpop.f32.mrf.mxu0
        %v2071 = vadd.f32 %v1982, %v2070
        %v2072 = vpop.f32.mrf.mxu0
        %v2073 = vadd.f32 %v1984, %v2072
        %2074 = vmatmul.bf16.gmra.mxu0 %v1730
        %v2075 = vpop.f32.mrf.mxu0
        %v2076 = vadd.f32 %v1987, %v2075
        %v2077 = vpop.f32.mrf.mxu0
        %v2078 = vadd.f32 %v1989, %v2077
        %2079 = vmatmul.bf16.gmra.mxu0 %v1732
        %v2080 = vpop.f32.mrf.mxu0
        %v2081 = vadd.f32 %v1992, %v2080
        %v2082 = vpop.f32.mrf.mxu0
        %v2083 = vadd.f32 %v1994, %v2082
        %2084 = vmatmul.bf16.gmra.mxu0 %v1734
        %v2085 = vpop.f32.mrf.mxu0
        %v2086 = vadd.f32 %v1997, %v2085
        %v2087 = vpop.f32.mrf.mxu0
        %v2088 = vadd.f32 %v1999, %v2087
        %2089 = vmatmul.bf16.gmra.mxu0 %v1736
        %v2090 = vpop.f32.mrf.mxu0
        %v2091 = vadd.f32 %v2002, %v2090
        %v2092 = vpop.f32.mrf.mxu0
        %v2093 = vadd.f32 %v2004, %v2092
        %2094 = vmatmul.bf16.gmra.mxu0 %v1738
        %v2095 = vpop.f32.mrf.mxu0
        %v2096 = vadd.f32 %v2007, %v2095
        %v2097 = vpop.f32.mrf.mxu0
        %v2098 = vadd.f32 %v2009, %v2097
        %2099 = vmatmul.bf16.gmra.mxu0 %v1740
        %v2100 = vpop.f32.mrf.mxu0
        %v2101 = vadd.f32 %v2012, %v2100
        %v2102 = vpop.f32.mrf.mxu0
        %v2103 = vadd.f32 %v2014, %v2102
        %2104 = vmatmul.bf16.gmra.mxu0 %v1742
        %v2105 = vpop.f32.mrf.mxu0
        %v2106 = vadd.f32 %v2017, %v2105
        %v2107 = vpop.f32.mrf.mxu0
        %v2108 = vadd.f32 %v2019, %v2107
        %2109 = vmatmul.bf16.gmra.mxu0 %v1744
        %v2110 = vpop.f32.mrf.mxu0
        %v2111 = vadd.f32 %v2022, %v2110
        %v2112 = vpop.f32.mrf.mxu0
        %v2113 = vadd.f32 %v2024, %v2112
        %2114 = vmatmul.bf16.gmra.mxu0 %v1746
        %v2115 = vpop.f32.mrf.mxu0
        %v2116 = vadd.f32 %v2027, %v2115
        %v2117 = vpop.f32.mrf.mxu0
        %v2118 = vadd.f32 %v2029, %v2117
        %2119 = vmatmul.bf16.gmra.mxu0 %v1748
        %v2120 = vpop.f32.mrf.mxu0
        %v2121 = vadd.f32 %v2032, %v2120
        %v2122 = vpop.f32.mrf.mxu0
        %v2123 = vadd.f32 %v2034, %v2122
        %2124 = vdwg.mxu0
        %2125 = vmatpush.bf16.msra.mxu0 %v1898
        %2126 = vmatpush.bf16.msra.mxu0 %v1896
        %2127 = vmatpush.bf16.msra.mxu0 %v1894
        %2128 = vmatpush.bf16.msra.mxu0 %v1892
        %2129 = vmatpush.bf16.msra.mxu0 %v1890
        %2130 = vmatpush.bf16.msra.mxu0 %v1888
        %2131 = vmatpush.bf16.msra.mxu0 %v1886
        %2132 = vmatpush.bf16.msra.mxu0 %v1884
        %2133 = vmatmul.bf16.gmra.mxu0 %v1717
        %v2134 = vpop.f32.mrf.mxu0
        %v2135 = vadd.f32 %v1784, %v2134
        %v2136 = vpop.f32.mrf.mxu0
        %v2137 = vadd.f32 %v1784, %v2136
        %2138 = vmatmul.bf16.gmra.mxu0 %v1719
        %v2139 = vpop.f32.mrf.mxu0
        %v2140 = vadd.f32 %v1784, %v2139
        %v2141 = vpop.f32.mrf.mxu0
        %v2142 = vadd.f32 %v1784, %v2141
        %2143 = vmatmul.bf16.gmra.mxu0 %v1721
        %v2144 = vpop.f32.mrf.mxu0
        %v2145 = vadd.f32 %v1784, %v2144
        %v2146 = vpop.f32.mrf.mxu0
        %v2147 = vadd.f32 %v1784, %v2146
        %2148 = vmatmul.bf16.gmra.mxu0 %v1723
        %v2149 = vpop.f32.mrf.mxu0
        %v2150 = vadd.f32 %v1784, %v2149
        %v2151 = vpop.f32.mrf.mxu0
        %v2152 = vadd.f32 %v1784, %v2151
        %2153 = vmatmul.bf16.gmra.mxu0 %v1725
        %v2154 = vpop.f32.mrf.mxu0
        %v2155 = vadd.f32 %v1784, %v2154
        %v2156 = vpop.f32.mrf.mxu0
        %v2157 = vadd.f32 %v1784, %v2156
        %2158 = vmatmul.bf16.gmra.mxu0 %v1727
        %v2159 = vpop.f32.mrf.mxu0
        %v2160 = vadd.f32 %v1784, %v2159
        %v2161 = vpop.f32.mrf.mxu0
        %v2162 = vadd.f32 %v1784, %v2161
        %2163 = vmatmul.bf16.gmra.mxu0 %v1729
        %v2164 = vpop.f32.mrf.mxu0
        %v2165 = vadd.f32 %v1784, %v2164
        %v2166 = vpop.f32.mrf.mxu0
        %v2167 = vadd.f32 %v1784, %v2166
        %2168 = vmatmul.bf16.gmra.mxu0 %v1731
        %v2169 = vpop.f32.mrf.mxu0
        %v2170 = vadd.f32 %v1784, %v2169
        %v2171 = vpop.f32.mrf.mxu0
        %v2172 = vadd.f32 %v1784, %v2171
        %2173 = vmatmul.bf16.gmra.mxu0 %v1733
        %v2174 = vpop.f32.mrf.mxu0
        %v2175 = vadd.f32 %v1784, %v2174
        %v2176 = vpop.f32.mrf.mxu0
        %v2177 = vadd.f32 %v1784, %v2176
        %2178 = vmatmul.bf16.gmra.mxu0 %v1735
        %v2179 = vpop.f32.mrf.mxu0
        %v2180 = vadd.f32 %v1784, %v2179
        %v2181 = vpop.f32.mrf.mxu0
        %v2182 = vadd.f32 %v1784, %v2181
        %2183 = vmatmul.bf16.gmra.mxu0 %v1737
        %v2184 = vpop.f32.mrf.mxu0
        %v2185 = vadd.f32 %v1784, %v2184
        %v2186 = vpop.f32.mrf.mxu0
        %v2187 = vadd.f32 %v1784, %v2186
        %2188 = vmatmul.bf16.gmra.mxu0 %v1739
        %v2189 = vpop.f32.mrf.mxu0
        %v2190 = vadd.f32 %v1784, %v2189
        %v2191 = vpop.f32.mrf.mxu0
        %v2192 = vadd.f32 %v1784, %v2191
        %2193 = vmatmul.bf16.gmra.mxu0 %v1741
        %v2194 = vpop.f32.mrf.mxu0
        %v2195 = vadd.f32 %v1784, %v2194
        %v2196 = vpop.f32.mrf.mxu0
        %v2197 = vadd.f32 %v1784, %v2196
        %2198 = vmatmul.bf16.gmra.mxu0 %v1743
        %v2199 = vpop.f32.mrf.mxu0
        %v2200 = vadd.f32 %v1784, %v2199
        %v2201 = vpop.f32.mrf.mxu0
        %v2202 = vadd.f32 %v1784, %v2201
        %2203 = vmatmul.bf16.gmra.mxu0 %v1745
        %v2204 = vpop.f32.mrf.mxu0
        %v2205 = vadd.f32 %v1784, %v2204
        %v2206 = vpop.f32.mrf.mxu0
        %v2207 = vadd.f32 %v1784, %v2206
        %2208 = vmatmul.bf16.gmra.mxu0 %v1747
        %v2209 = vpop.f32.mrf.mxu0
        %v2210 = vadd.f32 %v1784, %v2209
        %v2211 = vpop.f32.mrf.mxu0
        %v2212 = vadd.f32 %v1784, %v2211
        %2213 = vdwg.mxu0
        %2214 = vmatpush.bf16.msra.mxu0 %v1914
        %2215 = vmatpush.bf16.msra.mxu0 %v1912
        %2216 = vmatpush.bf16.msra.mxu0 %v1910
        %2217 = vmatpush.bf16.msra.mxu0 %v1908
        %2218 = vmatpush.bf16.msra.mxu0 %v1906
        %2219 = vmatpush.bf16.msra.mxu0 %v1904
        %2220 = vmatpush.bf16.msra.mxu0 %v1902
        %2221 = vmatpush.bf16.msra.mxu0 %v1900
        %2222 = vmatmul.bf16.gmra.mxu0 %v1718
        %v2223 = vpop.f32.mrf.mxu0
        %v2224 = vadd.f32 %v2135, %v2223
        %v2225 = vpop.f32.mrf.mxu0
        %v2226 = vadd.f32 %v2137, %v2225
        %2227 = vmatmul.bf16.gmra.mxu0 %v1720
        %v2228 = vpop.f32.mrf.mxu0
        %v2229 = vadd.f32 %v2140, %v2228
        %v2230 = vpop.f32.mrf.mxu0
        %v2231 = vadd.f32 %v2142, %v2230
        %2232 = vmatmul.bf16.gmra.mxu0 %v1722
        %v2233 = vpop.f32.mrf.mxu0
        %v2234 = vadd.f32 %v2145, %v2233
        %v2235 = vpop.f32.mrf.mxu0
        %v2236 = vadd.f32 %v2147, %v2235
        %2237 = vmatmul.bf16.gmra.mxu0 %v1724
        %v2238 = vpop.f32.mrf.mxu0
        %v2239 = vadd.f32 %v2150, %v2238
        %v2240 = vpop.f32.mrf.mxu0
        %v2241 = vadd.f32 %v2152, %v2240
        %2242 = vmatmul.bf16.gmra.mxu0 %v1726
        %v2243 = vpop.f32.mrf.mxu0
        %v2244 = vadd.f32 %v2155, %v2243
        %v2245 = vpop.f32.mrf.mxu0
        %v2246 = vadd.f32 %v2157, %v2245
        %2247 = vmatmul.bf16.gmra.mxu0 %v1728
        %v2248 = vpop.f32.mrf.mxu0
        %v2249 = vadd.f32 %v2160, %v2248
        %v2250 = vpop.f32.mrf.mxu0
        %v2251 = vadd.f32 %v2162, %v2250
        %2252 = vmatmul.bf16.gmra.mxu0 %v1730
        %v2253 = vpop.f32.mrf.mxu0
        %v2254 = vadd.f32 %v2165, %v2253
        %v2255 = vpop.f32.mrf.mxu0
        %v2256 = vadd.f32 %v2167, %v2255
        %2257 = vmatmul.bf16.gmra.mxu0 %v1732
        %v2258 = vpop.f32.mrf.mxu0
        %v2259 = vadd.f32 %v2170, %v2258
        %v2260 = vpop.f32.mrf.mxu0
        %v2261 = vadd.f32 %v2172, %v2260
        %2262 = vmatmul.bf16.gmra.mxu0 %v1734
        %v2263 = vpop.f32.mrf.mxu0
        %v2264 = vadd.f32 %v2175, %v2263
        %v2265 = vpop.f32.mrf.mxu0
        %v2266 = vadd.f32 %v2177, %v2265
        %2267 = vmatmul.bf16.gmra.mxu0 %v1736
        %v2268 = vpop.f32.mrf.mxu0
        %v2269 = vadd.f32 %v2180, %v2268
        %v2270 = vpop.f32.mrf.mxu0
        %v2271 = vadd.f32 %v2182, %v2270
        %2272 = vmatmul.bf16.gmra.mxu0 %v1738
        %v2273 = vpop.f32.mrf.mxu0
        %v2274 = vadd.f32 %v2185, %v2273
        %v2275 = vpop.f32.mrf.mxu0
        %v2276 = vadd.f32 %v2187, %v2275
        %2277 = vmatmul.bf16.gmra.mxu0 %v1740
        %v2278 = vpop.f32.mrf.mxu0
        %v2279 = vadd.f32 %v2190, %v2278
        %v2280 = vpop.f32.mrf.mxu0
        %v2281 = vadd.f32 %v2192, %v2280
        %2282 = vmatmul.bf16.gmra.mxu0 %v1742
        %v2283 = vpop.f32.mrf.mxu0
        %v2284 = vadd.f32 %v2195, %v2283
        %v2285 = vpop.f32.mrf.mxu0
        %v2286 = vadd.f32 %v2197, %v2285
        %2287 = vmatmul.bf16.gmra.mxu0 %v1744
        %v2288 = vpop.f32.mrf.mxu0
        %v2289 = vadd.f32 %v2200, %v2288
        %v2290 = vpop.f32.mrf.mxu0
        %v2291 = vadd.f32 %v2202, %v2290
        %2292 = vmatmul.bf16.gmra.mxu0 %v1746
        %v2293 = vpop.f32.mrf.mxu0
        %v2294 = vadd.f32 %v2205, %v2293
        %v2295 = vpop.f32.mrf.mxu0
        %v2296 = vadd.f32 %v2207, %v2295
        %2297 = vmatmul.bf16.gmra.mxu0 %v1748
        %v2298 = vpop.f32.mrf.mxu0
        %v2299 = vadd.f32 %v2210, %v2298
        %v2300 = vpop.f32.mrf.mxu0
        %v2301 = vadd.f32 %v2212, %v2300
        %2302 = vdwg.mxu0
        %v2303 = vmul.f32 %v2224, %v491
        %v2304 = vmul.f32 %v2226, %v492
        %v2305 = vmul.f32 %v2229, %v493
        %v2306 = vmul.f32 %v2231, %v494
        %v2307 = vmul.f32 %v2234, %v495
        %v2308 = vmul.f32 %v2236, %v496
        %v2309 = vmul.f32 %v2239, %v497
        %v2310 = vmul.f32 %v2241, %v498
        %v2311 = vmul.f32 %v2244, %v499
        %v2312 = vmul.f32 %v2246, %v500
        %v2313 = vmul.f32 %v2249, %v501
        %v2314 = vmul.f32 %v2251, %v502
        %v2315 = vmul.f32 %v2254, %v503
        %v2316 = vmul.f32 %v2256, %v504
        %v2317 = vmul.f32 %v2259, %v505
        %v2318 = vmul.f32 %v2261, %v506
        %v2319 = vmul.f32 %v2264, %v507
        %v2320 = vmul.f32 %v2266, %v508
        %v2321 = vmul.f32 %v2269, %v509
        %v2322 = vmul.f32 %v2271, %v510
        %v2323 = vmul.f32 %v2274, %v511
        %v2324 = vmul.f32 %v2276, %v512
        %v2325 = vmul.f32 %v2279, %v513
        %v2326 = vmul.f32 %v2281, %v514
        %v2327 = vmul.f32 %v2284, %v515
        %v2328 = vmul.f32 %v2286, %v516
        %v2329 = vmul.f32 %v2289, %v517
        %v2330 = vmul.f32 %v2291, %v518
        %v2331 = vmul.f32 %v2294, %v519
        %v2332 = vmul.f32 %v2296, %v520
        %v2333 = vmul.f32 %v2299, %v521
        %v2334 = vmul.f32 %v2301, %v522
        %v2335 = vadd.f32 %v2046, %v2303
        %v2336 = vadd.f32 %v2048, %v2304
        %v2337 = vadd.f32 %v2051, %v2305
        %v2338 = vadd.f32 %v2053, %v2306
        %v2339 = vadd.f32 %v2056, %v2307
        %v2340 = vadd.f32 %v2058, %v2308
        %v2341 = vadd.f32 %v2061, %v2309
        %v2342 = vadd.f32 %v2063, %v2310
        %v2343 = vadd.f32 %v2066, %v2311
        %v2344 = vadd.f32 %v2068, %v2312
        %v2345 = vadd.f32 %v2071, %v2313
        %v2346 = vadd.f32 %v2073, %v2314
        %v2347 = vadd.f32 %v2076, %v2315
        %v2348 = vadd.f32 %v2078, %v2316
        %v2349 = vadd.f32 %v2081, %v2317
        %v2350 = vadd.f32 %v2083, %v2318
        %v2351 = vadd.f32 %v2086, %v2319
        %v2352 = vadd.f32 %v2088, %v2320
        %v2353 = vadd.f32 %v2091, %v2321
        %v2354 = vadd.f32 %v2093, %v2322
        %v2355 = vadd.f32 %v2096, %v2323
        %v2356 = vadd.f32 %v2098, %v2324
        %v2357 = vadd.f32 %v2101, %v2325
        %v2358 = vadd.f32 %v2103, %v2326
        %v2359 = vadd.f32 %v2106, %v2327
        %v2360 = vadd.f32 %v2108, %v2328
        %v2361 = vadd.f32 %v2111, %v2329
        %v2362 = vadd.f32 %v2113, %v2330
        %v2363 = vadd.f32 %v2116, %v2331
        %v2364 = vadd.f32 %v2118, %v2332
        %v2365 = vadd.f32 %v2121, %v2333
        %v2366 = vadd.f32 %v2123, %v2334
        %2367 = vmax.xlane.f32.xlu0 %v2335
        %v2368 = vpop.xlane.xlu0 %2367
        %2369 = vmax.xlane.f32.xlu0 %v2336
        %v2370 = vpop.xlane.xlu0 %2369
        %2371 = vmax.xlane.f32.xlu0 %v2337
        %v2372 = vpop.xlane.xlu0 %2371
        %2373 = vmax.xlane.f32.xlu0 %v2338
        %v2374 = vpop.xlane.xlu0 %2373
        %2375 = vmax.xlane.f32.xlu0 %v2339
        %v2376 = vpop.xlane.xlu0 %2375
        %2377 = vmax.xlane.f32.xlu0 %v2340
        %v2378 = vpop.xlane.xlu0 %2377
        %2379 = vmax.xlane.f32.xlu0 %v2341
        %v2380 = vpop.xlane.xlu0 %2379
        %2381 = vmax.xlane.f32.xlu0 %v2342
        %v2382 = vpop.xlane.xlu0 %2381
        %2383 = vmax.xlane.f32.xlu0 %v2343
        %v2384 = vpop.xlane.xlu0 %2383
        %2385 = vmax.xlane.f32.xlu0 %v2344
        %v2386 = vpop.xlane.xlu0 %2385
        %2387 = vmax.xlane.f32.xlu0 %v2345
        %v2388 = vpop.xlane.xlu0 %2387
        %2389 = vmax.xlane.f32.xlu0 %v2346
        %v2390 = vpop.xlane.xlu0 %2389
        %2391 = vmax.xlane.f32.xlu0 %v2347
        %v2392 = vpop.xlane.xlu0 %2391
        %2393 = vmax.xlane.f32.xlu0 %v2348
        %v2394 = vpop.xlane.xlu0 %2393
        %2395 = vmax.xlane.f32.xlu0 %v2349
        %v2396 = vpop.xlane.xlu0 %2395
        %2397 = vmax.xlane.f32.xlu0 %v2350
        %v2398 = vpop.xlane.xlu0 %2397
        %2399 = vmax.xlane.f32.xlu0 %v2351
        %v2400 = vpop.xlane.xlu0 %2399
        %2401 = vmax.xlane.f32.xlu0 %v2352
        %v2402 = vpop.xlane.xlu0 %2401
        %2403 = vmax.xlane.f32.xlu0 %v2353
        %v2404 = vpop.xlane.xlu0 %2403
        %2405 = vmax.xlane.f32.xlu0 %v2354
        %v2406 = vpop.xlane.xlu0 %2405
        %2407 = vmax.xlane.f32.xlu0 %v2355
        %v2408 = vpop.xlane.xlu0 %2407
        %2409 = vmax.xlane.f32.xlu0 %v2356
        %v2410 = vpop.xlane.xlu0 %2409
        %2411 = vmax.xlane.f32.xlu0 %v2357
        %v2412 = vpop.xlane.xlu0 %2411
        %2413 = vmax.xlane.f32.xlu0 %v2358
        %v2414 = vpop.xlane.xlu0 %2413
        %2415 = vmax.xlane.f32.xlu0 %v2359
        %v2416 = vpop.xlane.xlu0 %2415
        %2417 = vmax.xlane.f32.xlu0 %v2360
        %v2418 = vpop.xlane.xlu0 %2417
        %2419 = vmax.xlane.f32.xlu0 %v2361
        %v2420 = vpop.xlane.xlu0 %2419
        %2421 = vmax.xlane.f32.xlu0 %v2362
        %v2422 = vpop.xlane.xlu0 %2421
        %2423 = vmax.xlane.f32.xlu0 %v2363
        %v2424 = vpop.xlane.xlu0 %2423
        %2425 = vmax.xlane.f32.xlu0 %v2364
        %v2426 = vpop.xlane.xlu0 %2425
        %2427 = vmax.xlane.f32.xlu0 %v2365
        %v2428 = vpop.xlane.xlu0 %2427
        %2429 = vmax.xlane.f32.xlu0 %v2366
        %v2430 = vpop.xlane.xlu0 %2429
        %v2431 = vsub.f32 %v2335, %v2368
        %v2432 = vsub.f32 %v2336, %v2370
        %v2433 = vsub.f32 %v2337, %v2372
        %v2434 = vsub.f32 %v2338, %v2374
        %v2435 = vsub.f32 %v2339, %v2376
        %v2436 = vsub.f32 %v2340, %v2378
        %v2437 = vsub.f32 %v2341, %v2380
        %v2438 = vsub.f32 %v2342, %v2382
        %v2439 = vsub.f32 %v2343, %v2384
        %v2440 = vsub.f32 %v2344, %v2386
        %v2441 = vsub.f32 %v2345, %v2388
        %v2442 = vsub.f32 %v2346, %v2390
        %v2443 = vsub.f32 %v2347, %v2392
        %v2444 = vsub.f32 %v2348, %v2394
        %v2445 = vsub.f32 %v2349, %v2396
        %v2446 = vsub.f32 %v2350, %v2398
        %v2447 = vsub.f32 %v2351, %v2400
        %v2448 = vsub.f32 %v2352, %v2402
        %v2449 = vsub.f32 %v2353, %v2404
        %v2450 = vsub.f32 %v2354, %v2406
        %v2451 = vsub.f32 %v2355, %v2408
        %v2452 = vsub.f32 %v2356, %v2410
        %v2453 = vsub.f32 %v2357, %v2412
        %v2454 = vsub.f32 %v2358, %v2414
        %v2455 = vsub.f32 %v2359, %v2416
        %v2456 = vsub.f32 %v2360, %v2418
        %v2457 = vsub.f32 %v2361, %v2420
        %v2458 = vsub.f32 %v2362, %v2422
        %v2459 = vsub.f32 %v2363, %v2424
        %v2460 = vsub.f32 %v2364, %v2426
        %v2461 = vsub.f32 %v2365, %v2428
        %v2462 = vsub.f32 %v2366, %v2430
        %v2463 = vmul.f32 %v2431, 1.442695
        %v2464 = vpow.pop %v2463
        %v2465 = vmul.f32 %v2432, 1.442695
        %v2466 = vpow.pop %v2465
        %v2467 = vmul.f32 %v2433, 1.442695
        %v2468 = vpow.pop %v2467
        %v2469 = vmul.f32 %v2434, 1.442695
        %v2470 = vpow.pop %v2469
        %v2471 = vmul.f32 %v2435, 1.442695
        %v2472 = vpow.pop %v2471
        %v2473 = vmul.f32 %v2436, 1.442695
        %v2474 = vpow.pop %v2473
        %v2475 = vmul.f32 %v2437, 1.442695
        %v2476 = vpow.pop %v2475
        %v2477 = vmul.f32 %v2438, 1.442695
        %v2478 = vpow.pop %v2477
        %v2479 = vmul.f32 %v2439, 1.442695
        %v2480 = vpow.pop %v2479
        %v2481 = vmul.f32 %v2440, 1.442695
        %v2482 = vpow.pop %v2481
        %v2483 = vmul.f32 %v2441, 1.442695
        %v2484 = vpow.pop %v2483
        %v2485 = vmul.f32 %v2442, 1.442695
        %v2486 = vpow.pop %v2485
        %v2487 = vmul.f32 %v2443, 1.442695
        %v2488 = vpow.pop %v2487
        %v2489 = vmul.f32 %v2444, 1.442695
        %v2490 = vpow.pop %v2489
        %v2491 = vmul.f32 %v2445, 1.442695
        %v2492 = vpow.pop %v2491
        %v2493 = vmul.f32 %v2446, 1.442695
        %v2494 = vpow.pop %v2493
        %v2495 = vmul.f32 %v2447, 1.442695
        %v2496 = vpow.pop %v2495
        %v2497 = vmul.f32 %v2448, 1.442695
        %v2498 = vpow.pop %v2497
        %v2499 = vmul.f32 %v2449, 1.442695
        %v2500 = vpow.pop %v2499
        %v2501 = vmul.f32 %v2450, 1.442695
        %v2502 = vpow.pop %v2501
        %v2503 = vmul.f32 %v2451, 1.442695
        %v2504 = vpow.pop %v2503
        %v2505 = vmul.f32 %v2452, 1.442695
        %v2506 = vpow.pop %v2505
        %v2507 = vmul.f32 %v2453, 1.442695
        %v2508 = vpow.pop %v2507
        %v2509 = vmul.f32 %v2454, 1.442695
        %v2510 = vpow.pop %v2509
        %v2511 = vmul.f32 %v2455, 1.442695
        %v2512 = vpow.pop %v2511
        %v2513 = vmul.f32 %v2456, 1.442695
        %v2514 = vpow.pop %v2513
        %v2515 = vmul.f32 %v2457, 1.442695
        %v2516 = vpow.pop %v2515
        %v2517 = vmul.f32 %v2458, 1.442695
        %v2518 = vpow.pop %v2517
        %v2519 = vmul.f32 %v2459, 1.442695
        %v2520 = vpow.pop %v2519
        %v2521 = vmul.f32 %v2460, 1.442695
        %v2522 = vpow.pop %v2521
        %v2523 = vmul.f32 %v2461, 1.442695
        %v2524 = vpow.pop %v2523
        %v2525 = vmul.f32 %v2462, 1.442695
        %v2526 = vpow.pop %v2525
        %2527 = vadd.xlane.f32.xlu0 %v2464
        %v2528 = vpop.xlane.xlu0 %2527
        %2529 = vadd.xlane.f32.xlu0 %v2466
        %v2530 = vpop.xlane.xlu0 %2529
        %2531 = vadd.xlane.f32.xlu0 %v2468
        %v2532 = vpop.xlane.xlu0 %2531
        %2533 = vadd.xlane.f32.xlu0 %v2470
        %v2534 = vpop.xlane.xlu0 %2533
        %2535 = vadd.xlane.f32.xlu0 %v2472
        %v2536 = vpop.xlane.xlu0 %2535
        %2537 = vadd.xlane.f32.xlu0 %v2474
        %v2538 = vpop.xlane.xlu0 %2537
        %2539 = vadd.xlane.f32.xlu0 %v2476
        %v2540 = vpop.xlane.xlu0 %2539
        %2541 = vadd.xlane.f32.xlu0 %v2478
        %v2542 = vpop.xlane.xlu0 %2541
        %2543 = vadd.xlane.f32.xlu0 %v2480
        %v2544 = vpop.xlane.xlu0 %2543
        %2545 = vadd.xlane.f32.xlu0 %v2482
        %v2546 = vpop.xlane.xlu0 %2545
        %2547 = vadd.xlane.f32.xlu0 %v2484
        %v2548 = vpop.xlane.xlu0 %2547
        %2549 = vadd.xlane.f32.xlu0 %v2486
        %v2550 = vpop.xlane.xlu0 %2549
        %2551 = vadd.xlane.f32.xlu0 %v2488
        %v2552 = vpop.xlane.xlu0 %2551
        %2553 = vadd.xlane.f32.xlu0 %v2490
        %v2554 = vpop.xlane.xlu0 %2553
        %2555 = vadd.xlane.f32.xlu0 %v2492
        %v2556 = vpop.xlane.xlu0 %2555
        %2557 = vadd.xlane.f32.xlu0 %v2494
        %v2558 = vpop.xlane.xlu0 %2557
        %2559 = vadd.xlane.f32.xlu0 %v2496
        %v2560 = vpop.xlane.xlu0 %2559
        %2561 = vadd.xlane.f32.xlu0 %v2498
        %v2562 = vpop.xlane.xlu0 %2561
        %2563 = vadd.xlane.f32.xlu0 %v2500
        %v2564 = vpop.xlane.xlu0 %2563
        %2565 = vadd.xlane.f32.xlu0 %v2502
        %v2566 = vpop.xlane.xlu0 %2565
        %2567 = vadd.xlane.f32.xlu0 %v2504
        %v2568 = vpop.xlane.xlu0 %2567
        %2569 = vadd.xlane.f32.xlu0 %v2506
        %v2570 = vpop.xlane.xlu0 %2569
        %2571 = vadd.xlane.f32.xlu0 %v2508
        %v2572 = vpop.xlane.xlu0 %2571
        %2573 = vadd.xlane.f32.xlu0 %v2510
        %v2574 = vpop.xlane.xlu0 %2573
        %2575 = vadd.xlane.f32.xlu0 %v2512
        %v2576 = vpop.xlane.xlu0 %2575
        %2577 = vadd.xlane.f32.xlu0 %v2514
        %v2578 = vpop.xlane.xlu0 %2577
        %2579 = vadd.xlane.f32.xlu0 %v2516
        %v2580 = vpop.xlane.xlu0 %2579
        %2581 = vadd.xlane.f32.xlu0 %v2518
        %v2582 = vpop.xlane.xlu0 %2581
        %2583 = vadd.xlane.f32.xlu0 %v2520
        %v2584 = vpop.xlane.xlu0 %2583
        %2585 = vadd.xlane.f32.xlu0 %v2522
        %v2586 = vpop.xlane.xlu0 %2585
        %2587 = vadd.xlane.f32.xlu0 %v2524
        %v2588 = vpop.xlane.xlu0 %2587
        %2589 = vadd.xlane.f32.xlu0 %v2526
        %v2590 = vpop.xlane.xlu0 %2589
        %v2591 = vrcp.pop %v2528
        %v2592 = vrcp.pop %v2530
        %v2593 = vrcp.pop %v2532
        %v2594 = vrcp.pop %v2534
        %v2595 = vrcp.pop %v2536
        %v2596 = vrcp.pop %v2538
        %v2597 = vrcp.pop %v2540
        %v2598 = vrcp.pop %v2542
        %v2599 = vrcp.pop %v2544
        %v2600 = vrcp.pop %v2546
        %v2601 = vrcp.pop %v2548
        %v2602 = vrcp.pop %v2550
        %v2603 = vrcp.pop %v2552
        %v2604 = vrcp.pop %v2554
        %v2605 = vrcp.pop %v2556
        %v2606 = vrcp.pop %v2558
        %v2607 = vrcp.pop %v2560
        %v2608 = vrcp.pop %v2562
        %v2609 = vrcp.pop %v2564
        %v2610 = vrcp.pop %v2566
        %v2611 = vrcp.pop %v2568
        %v2612 = vrcp.pop %v2570
        %v2613 = vrcp.pop %v2572
        %v2614 = vrcp.pop %v2574
        %v2615 = vrcp.pop %v2576
        %v2616 = vrcp.pop %v2578
        %v2617 = vrcp.pop %v2580
        %v2618 = vrcp.pop %v2582
        %v2619 = vrcp.pop %v2584
        %v2620 = vrcp.pop %v2586
        %v2621 = vrcp.pop %v2588
        %v2622 = vrcp.pop %v2590
        %v2623 = vmul.f32 %v2464, %v2591
        %v2624 = vmul.f32 %v2466, %v2592
        %v2625 = vmul.f32 %v2468, %v2593
        %v2626 = vmul.f32 %v2470, %v2594
        %v2627 = vmul.f32 %v2472, %v2595
        %v2628 = vmul.f32 %v2474, %v2596
        %v2629 = vmul.f32 %v2476, %v2597
        %v2630 = vmul.f32 %v2478, %v2598
        %v2631 = vmul.f32 %v2480, %v2599
        %v2632 = vmul.f32 %v2482, %v2600
        %v2633 = vmul.f32 %v2484, %v2601
        %v2634 = vmul.f32 %v2486, %v2602
        %v2635 = vmul.f32 %v2488, %v2603
        %v2636 = vmul.f32 %v2490, %v2604
        %v2637 = vmul.f32 %v2492, %v2605
        %v2638 = vmul.f32 %v2494, %v2606
        %v2639 = vmul.f32 %v2496, %v2607
        %v2640 = vmul.f32 %v2498, %v2608
        %v2641 = vmul.f32 %v2500, %v2609
        %v2642 = vmul.f32 %v2502, %v2610
        %v2643 = vmul.f32 %v2504, %v2611
        %v2644 = vmul.f32 %v2506, %v2612
        %v2645 = vmul.f32 %v2508, %v2613
        %v2646 = vmul.f32 %v2510, %v2614
        %v2647 = vmul.f32 %v2512, %v2615
        %v2648 = vmul.f32 %v2514, %v2616
        %v2649 = vmul.f32 %v2516, %v2617
        %v2650 = vmul.f32 %v2518, %v2618
        %v2651 = vmul.f32 %v2520, %v2619
        %v2652 = vmul.f32 %v2522, %v2620
        %v2653 = vmul.f32 %v2524, %v2621
        %v2654 = vmul.f32 %v2526, %v2622
        %v2655 = vpack.c.bf16 %v2624, %v2623
        %v2656 = vpack.c.bf16 %v2626, %v2625
        %v2657 = vpack.c.bf16 %v2628, %v2627
        %v2658 = vpack.c.bf16 %v2630, %v2629
        %v2659 = vpack.c.bf16 %v2632, %v2631
        %v2660 = vpack.c.bf16 %v2634, %v2633
        %v2661 = vpack.c.bf16 %v2636, %v2635
        %v2662 = vpack.c.bf16 %v2638, %v2637
        %v2663 = vpack.c.bf16 %v2640, %v2639
        %v2664 = vpack.c.bf16 %v2642, %v2641
        %v2665 = vpack.c.bf16 %v2644, %v2643
        %v2666 = vpack.c.bf16 %v2646, %v2645
        %v2667 = vpack.c.bf16 %v2648, %v2647
        %v2668 = vpack.c.bf16 %v2650, %v2649
        %v2669 = vpack.c.bf16 %v2652, %v2651
        %v2670 = vpack.c.bf16 %v2654, %v2653
        %v2671 = vld [vmem:[#allocation10] sm:$0xff]
        %v2672 = vld [vmem:[#allocation10 + $0x8] sm:$0xff]
        %v2673 = vld [vmem:[#allocation10 + $0x10] sm:$0xff]
        %v2674 = vld [vmem:[#allocation10 + $0x18] sm:$0xff]
        %v2675 = vld [vmem:[#allocation10 + $0x20] sm:$0xff]
        %v2676 = vld [vmem:[#allocation10 + $0x28] sm:$0xff]
        %v2677 = vld [vmem:[#allocation10 + $0x30] sm:$0xff]
        %v2678 = vld [vmem:[#allocation10 + $0x38] sm:$0xff]
        %v2679 = vld [vmem:[#allocation10 + $0x40] sm:$0xff]
        %v2680 = vld [vmem:[#allocation10 + $0x48] sm:$0xff]
        %v2681 = vld [vmem:[#allocation10 + $0x50] sm:$0xff]
        %v2682 = vld [vmem:[#allocation10 + $0x58] sm:$0xff]
        %v2683 = vld [vmem:[#allocation10 + $0x60] sm:$0xff]
        %v2684 = vld [vmem:[#allocation10 + $0x68] sm:$0xff]
        %v2685 = vld [vmem:[#allocation10 + $0x70] sm:$0xff]
        %v2686 = vld [vmem:[#allocation10 + $0x78] sm:$0xff]
        %v2687 = vld [vmem:[%s7] sm:$0x3]
        %v2689 = vperm.slane %v2687, 0
        %v2690 = vperm.slane %v2687, 1
        %v2709 = vunpack.c.l.b16 %v2671
        %v2710 = vunpack.c.h.b16 %v2671
        %v2711 = vunpack.c.l.b16 %v2672
        %v2712 = vunpack.c.h.b16 %v2672
        %v2713 = vunpack.c.l.b16 %v2673
        %v2714 = vunpack.c.h.b16 %v2673
        %v2715 = vunpack.c.l.b16 %v2674
        %v2716 = vunpack.c.h.b16 %v2674
        %v2717 = vunpack.c.l.b16 %v2675
        %v2718 = vunpack.c.h.b16 %v2675
        %v2719 = vunpack.c.l.b16 %v2676
        %v2720 = vunpack.c.h.b16 %v2676
        %v2721 = vunpack.c.l.b16 %v2677
        %v2722 = vunpack.c.h.b16 %v2677
        %v2723 = vunpack.c.l.b16 %v2678
        %v2724 = vunpack.c.h.b16 %v2678
        %v2725 = vunpack.c.l.b16 %v2679
        %v2726 = vunpack.c.h.b16 %v2679
        %v2727 = vunpack.c.l.b16 %v2680
        %v2728 = vunpack.c.h.b16 %v2680
        %v2729 = vunpack.c.l.b16 %v2681
        %v2730 = vunpack.c.h.b16 %v2681
        %v2731 = vunpack.c.l.b16 %v2682
        %v2732 = vunpack.c.h.b16 %v2682
        %v2733 = vunpack.c.l.b16 %v2683
        %v2734 = vunpack.c.h.b16 %v2683
        %v2735 = vunpack.c.l.b16 %v2684
        %v2736 = vunpack.c.h.b16 %v2684
        %v2737 = vunpack.c.l.b16 %v2685
        %v2738 = vunpack.c.h.b16 %v2685
        %v2739 = vunpack.c.l.b16 %v2686
        %v2740 = vunpack.c.h.b16 %v2686
        %v2741 = vpack.c.b16 %v2711, %v2709
        %v2742 = vpack.c.b16 %v2712, %v2710
        %v2743 = vpack.c.b16 %v2715, %v2713
        %v2744 = vpack.c.b16 %v2716, %v2714
        %v2745 = vpack.c.b16 %v2719, %v2717
        %v2746 = vpack.c.b16 %v2720, %v2718
        %v2747 = vpack.c.b16 %v2723, %v2721
        %v2748 = vpack.c.b16 %v2724, %v2722
        %v2749 = vpack.c.b16 %v2727, %v2725
        %v2750 = vpack.c.b16 %v2728, %v2726
        %v2751 = vpack.c.b16 %v2731, %v2729
        %v2752 = vpack.c.b16 %v2732, %v2730
        %v2753 = vpack.c.b16 %v2735, %v2733
        %v2754 = vpack.c.b16 %v2736, %v2734
        %v2755 = vpack.c.b16 %v2739, %v2737
        %v2756 = vpack.c.b16 %v2740, %v2738
        %2773 = vmatpush.bf16.msra.mxu0 %v2755
        %2774 = vmatpush.bf16.msra.mxu0 %v2753
        %2775 = vmatpush.bf16.msra.mxu0 %v2751
        %2776 = vmatpush.bf16.msra.mxu0 %v2749
        %2777 = vmatpush.bf16.msra.mxu0 %v2747
        %2778 = vmatpush.bf16.msra.mxu0 %v2745
        %2779 = vmatpush.bf16.msra.mxu0 %v2743
        %2780 = vmatpush.bf16.msra.mxu0 %v2741
        %2781 = vmatmul.bf16.gmra.mxu0 %v2655
        %v2782 = vpop.f32.mrf.mxu0
        %v2783 = vadd.f32 %v2689, %v2782
        %v2784 = vpop.f32.mrf.mxu0
        %v2785 = vadd.f32 %v2689, %v2784
        %2786 = vmatmul.bf16.gmra.mxu0 %v2656
        %v2787 = vpop.f32.mrf.mxu0
        %v2788 = vadd.f32 %v2689, %v2787
        %v2789 = vpop.f32.mrf.mxu0
        %v2790 = vadd.f32 %v2689, %v2789
        %2791 = vmatmul.bf16.gmra.mxu0 %v2657
        %v2792 = vpop.f32.mrf.mxu0
        %v2793 = vadd.f32 %v2689, %v2792
        %v2794 = vpop.f32.mrf.mxu0
        %v2795 = vadd.f32 %v2689, %v2794
        %2796 = vmatmul.bf16.gmra.mxu0 %v2658
        %v2797 = vpop.f32.mrf.mxu0
        %v2798 = vadd.f32 %v2689, %v2797
        %v2799 = vpop.f32.mrf.mxu0
        %v2800 = vadd.f32 %v2689, %v2799
        %2801 = vmatmul.bf16.gmra.mxu0 %v2659
        %v2802 = vpop.f32.mrf.mxu0
        %v2803 = vadd.f32 %v2689, %v2802
        %v2804 = vpop.f32.mrf.mxu0
        %v2805 = vadd.f32 %v2689, %v2804
        %2806 = vmatmul.bf16.gmra.mxu0 %v2660
        %v2807 = vpop.f32.mrf.mxu0
        %v2808 = vadd.f32 %v2689, %v2807
        %v2809 = vpop.f32.mrf.mxu0
        %v2810 = vadd.f32 %v2689, %v2809
        %2811 = vmatmul.bf16.gmra.mxu0 %v2661
        %v2812 = vpop.f32.mrf.mxu0
        %v2813 = vadd.f32 %v2689, %v2812
        %v2814 = vpop.f32.mrf.mxu0
        %v2815 = vadd.f32 %v2689, %v2814
        %2816 = vmatmul.bf16.gmra.mxu0 %v2662
        %v2817 = vpop.f32.mrf.mxu0
        %v2818 = vadd.f32 %v2689, %v2817
        %v2819 = vpop.f32.mrf.mxu0
        %v2820 = vadd.f32 %v2689, %v2819
        %2821 = vmatmul.bf16.gmra.mxu0 %v2663
        %v2822 = vpop.f32.mrf.mxu0
        %v2823 = vadd.f32 %v2689, %v2822
        %v2824 = vpop.f32.mrf.mxu0
        %v2825 = vadd.f32 %v2689, %v2824
        %2826 = vmatmul.bf16.gmra.mxu0 %v2664
        %v2827 = vpop.f32.mrf.mxu0
        %v2828 = vadd.f32 %v2689, %v2827
        %v2829 = vpop.f32.mrf.mxu0
        %v2830 = vadd.f32 %v2689, %v2829
        %2831 = vmatmul.bf16.gmra.mxu0 %v2665
        %v2832 = vpop.f32.mrf.mxu0
        %v2833 = vadd.f32 %v2689, %v2832
        %v2834 = vpop.f32.mrf.mxu0
        %v2835 = vadd.f32 %v2689, %v2834
        %2836 = vmatmul.bf16.gmra.mxu0 %v2666
        %v2837 = vpop.f32.mrf.mxu0
        %v2838 = vadd.f32 %v2689, %v2837
        %v2839 = vpop.f32.mrf.mxu0
        %v2840 = vadd.f32 %v2689, %v2839
        %2841 = vmatmul.bf16.gmra.mxu0 %v2667
        %v2842 = vpop.f32.mrf.mxu0
        %v2843 = vadd.f32 %v2689, %v2842
        %v2844 = vpop.f32.mrf.mxu0
        %v2845 = vadd.f32 %v2689, %v2844
        %2846 = vmatmul.bf16.gmra.mxu0 %v2668
        %v2847 = vpop.f32.mrf.mxu0
        %v2848 = vadd.f32 %v2689, %v2847
        %v2849 = vpop.f32.mrf.mxu0
        %v2850 = vadd.f32 %v2689, %v2849
        %2851 = vmatmul.bf16.gmra.mxu0 %v2669
        %v2852 = vpop.f32.mrf.mxu0
        %v2853 = vadd.f32 %v2689, %v2852
        %v2854 = vpop.f32.mrf.mxu0
        %v2855 = vadd.f32 %v2689, %v2854
        %2856 = vmatmul.bf16.gmra.mxu0 %v2670
        %v2857 = vpop.f32.mrf.mxu0
        %v2858 = vadd.f32 %v2689, %v2857
        %v2859 = vpop.f32.mrf.mxu0
        %v2860 = vadd.f32 %v2689, %v2859
        %2861 = vdwg.mxu0
        %2862 = vmatpush.bf16.msra.mxu0 %v2756
        %2863 = vmatpush.bf16.msra.mxu0 %v2754
        %2864 = vmatpush.bf16.msra.mxu0 %v2752
        %2865 = vmatpush.bf16.msra.mxu0 %v2750
        %2866 = vmatpush.bf16.msra.mxu0 %v2748
        %2867 = vmatpush.bf16.msra.mxu0 %v2746
        %2868 = vmatpush.bf16.msra.mxu0 %v2744
        %2869 = vmatpush.bf16.msra.mxu0 %v2742
        %2870 = vmatmul.bf16.gmra.mxu0 %v2655
        %v2871 = vpop.f32.mrf.mxu0
        %v2872 = vadd.f32 %v2690, %v2871
        %v2873 = vpop.f32.mrf.mxu0
        %v2874 = vadd.f32 %v2690, %v2873
        %2875 = vmatmul.bf16.gmra.mxu0 %v2656
        %v2876 = vpop.f32.mrf.mxu0
        %v2877 = vadd.f32 %v2690, %v2876
        %v2878 = vpop.f32.mrf.mxu0
        %v2879 = vadd.f32 %v2690, %v2878
        %2880 = vmatmul.bf16.gmra.mxu0 %v2657
        %v2881 = vpop.f32.mrf.mxu0
        %v2882 = vadd.f32 %v2690, %v2881
        %v2883 = vpop.f32.mrf.mxu0
        %v2884 = vadd.f32 %v2690, %v2883
        %2885 = vmatmul.bf16.gmra.mxu0 %v2658
        %v2886 = vpop.f32.mrf.mxu0
        %v2887 = vadd.f32 %v2690, %v2886
        %v2888 = vpop.f32.mrf.mxu0
        %v2889 = vadd.f32 %v2690, %v2888
        %2890 = vmatmul.bf16.gmra.mxu0 %v2659
        %v2891 = vpop.f32.mrf.mxu0
        %v2892 = vadd.f32 %v2690, %v2891
        %v2893 = vpop.f32.mrf.mxu0
        %v2894 = vadd.f32 %v2690, %v2893
        %2895 = vmatmul.bf16.gmra.mxu0 %v2660
        %v2896 = vpop.f32.mrf.mxu0
        %v2897 = vadd.f32 %v2690, %v2896
        %v2898 = vpop.f32.mrf.mxu0
        %v2899 = vadd.f32 %v2690, %v2898
        %2900 = vmatmul.bf16.gmra.mxu0 %v2661
        %v2901 = vpop.f32.mrf.mxu0
        %v2902 = vadd.f32 %v2690, %v2901
        %v2903 = vpop.f32.mrf.mxu0
        %v2904 = vadd.f32 %v2690, %v2903
        %2905 = vmatmul.bf16.gmra.mxu0 %v2662
        %v2906 = vpop.f32.mrf.mxu0
        %v2907 = vadd.f32 %v2690, %v2906
        %v2908 = vpop.f32.mrf.mxu0
        %v2909 = vadd.f32 %v2690, %v2908
        %2910 = vmatmul.bf16.gmra.mxu0 %v2663
        %v2911 = vpop.f32.mrf.mxu0
        %v2912 = vadd.f32 %v2690, %v2911
        %v2913 = vpop.f32.mrf.mxu0
        %v2914 = vadd.f32 %v2690, %v2913
        %2915 = vmatmul.bf16.gmra.mxu0 %v2664
        %v2916 = vpop.f32.mrf.mxu0
        %v2917 = vadd.f32 %v2690, %v2916
        %v2918 = vpop.f32.mrf.mxu0
        %v2919 = vadd.f32 %v2690, %v2918
        %2920 = vmatmul.bf16.gmra.mxu0 %v2665
        %v2921 = vpop.f32.mrf.mxu0
        %v2922 = vadd.f32 %v2690, %v2921
        %v2923 = vpop.f32.mrf.mxu0
        %v2924 = vadd.f32 %v2690, %v2923
        %2925 = vmatmul.bf16.gmra.mxu0 %v2666
        %v2926 = vpop.f32.mrf.mxu0
        %v2927 = vadd.f32 %v2690, %v2926
        %v2928 = vpop.f32.mrf.mxu0
        %v2929 = vadd.f32 %v2690, %v2928
        %2930 = vmatmul.bf16.gmra.mxu0 %v2667
        %v2931 = vpop.f32.mrf.mxu0
        %v2932 = vadd.f32 %v2690, %v2931
        %v2933 = vpop.f32.mrf.mxu0
        %v2934 = vadd.f32 %v2690, %v2933
        %2935 = vmatmul.bf16.gmra.mxu0 %v2668
        %v2936 = vpop.f32.mrf.mxu0
        %v2937 = vadd.f32 %v2690, %v2936
        %v2938 = vpop.f32.mrf.mxu0
        %v2939 = vadd.f32 %v2690, %v2938
        %2940 = vmatmul.bf16.gmra.mxu0 %v2669
        %v2941 = vpop.f32.mrf.mxu0
        %v2942 = vadd.f32 %v2690, %v2941
        %v2943 = vpop.f32.mrf.mxu0
        %v2944 = vadd.f32 %v2690, %v2943
        %2945 = vmatmul.bf16.gmra.mxu0 %v2670
        %v2946 = vpop.f32.mrf.mxu0
        %v2947 = vadd.f32 %v2690, %v2946
        %v2948 = vpop.f32.mrf.mxu0
        %v2949 = vadd.f32 %v2690, %v2948
        %2950 = vdwg.mxu0
        %v2951 = vmax.f32 %v2783, %v2872
        %2952 = vmax.xlane.f32.xlu0 %v2951
        %v2953 = vpop.xlane.xlu0 %2952
        %v2954 = vmax.f32 %v2785, %v2874
        %2955 = vmax.xlane.f32.xlu0 %v2954
        %v2956 = vpop.xlane.xlu0 %2955
        %v2957 = vmax.f32 %v2788, %v2877
        %2958 = vmax.xlane.f32.xlu0 %v2957
        %v2959 = vpop.xlane.xlu0 %2958
        %v2960 = vmax.f32 %v2790, %v2879
        %2961 = vmax.xlane.f32.xlu0 %v2960
        %v2962 = vpop.xlane.xlu0 %2961
        %v2963 = vmax.f32 %v2793, %v2882
        %2964 = vmax.xlane.f32.xlu0 %v2963
        %v2965 = vpop.xlane.xlu0 %2964
        %v2966 = vmax.f32 %v2795, %v2884
        %2967 = vmax.xlane.f32.xlu0 %v2966
        %v2968 = vpop.xlane.xlu0 %2967
        %v2969 = vmax.f32 %v2798, %v2887
        %2970 = vmax.xlane.f32.xlu0 %v2969
        %v2971 = vpop.xlane.xlu0 %2970
        %v2972 = vmax.f32 %v2800, %v2889
        %2973 = vmax.xlane.f32.xlu0 %v2972
        %v2974 = vpop.xlane.xlu0 %2973
        %v2975 = vmax.f32 %v2803, %v2892
        %2976 = vmax.xlane.f32.xlu0 %v2975
        %v2977 = vpop.xlane.xlu0 %2976
        %v2978 = vmax.f32 %v2805, %v2894
        %2979 = vmax.xlane.f32.xlu0 %v2978
        %v2980 = vpop.xlane.xlu0 %2979
        %v2981 = vmax.f32 %v2808, %v2897
        %2982 = vmax.xlane.f32.xlu0 %v2981
        %v2983 = vpop.xlane.xlu0 %2982
        %v2984 = vmax.f32 %v2810, %v2899
        %2985 = vmax.xlane.f32.xlu0 %v2984
        %v2986 = vpop.xlane.xlu0 %2985
        %v2987 = vmax.f32 %v2813, %v2902
        %2988 = vmax.xlane.f32.xlu0 %v2987
        %v2989 = vpop.xlane.xlu0 %2988
        %v2990 = vmax.f32 %v2815, %v2904
        %2991 = vmax.xlane.f32.xlu0 %v2990
        %v2992 = vpop.xlane.xlu0 %2991
        %v2993 = vmax.f32 %v2818, %v2907
        %2994 = vmax.xlane.f32.xlu0 %v2993
        %v2995 = vpop.xlane.xlu0 %2994
        %v2996 = vmax.f32 %v2820, %v2909
        %2997 = vmax.xlane.f32.xlu0 %v2996
        %v2998 = vpop.xlane.xlu0 %2997
        %v2999 = vmax.f32 %v2823, %v2912
        %3000 = vmax.xlane.f32.xlu0 %v2999
        %v3001 = vpop.xlane.xlu0 %3000
        %v3002 = vmax.f32 %v2825, %v2914
        %3003 = vmax.xlane.f32.xlu0 %v3002
        %v3004 = vpop.xlane.xlu0 %3003
        %v3005 = vmax.f32 %v2828, %v2917
        %3006 = vmax.xlane.f32.xlu0 %v3005
        %v3007 = vpop.xlane.xlu0 %3006
        %v3008 = vmax.f32 %v2830, %v2919
        %3009 = vmax.xlane.f32.xlu0 %v3008
        %v3010 = vpop.xlane.xlu0 %3009
        %v3011 = vmax.f32 %v2833, %v2922
        %3012 = vmax.xlane.f32.xlu0 %v3011
        %v3013 = vpop.xlane.xlu0 %3012
        %v3014 = vmax.f32 %v2835, %v2924
        %3015 = vmax.xlane.f32.xlu0 %v3014
        %v3016 = vpop.xlane.xlu0 %3015
        %v3017 = vmax.f32 %v2838, %v2927
        %3018 = vmax.xlane.f32.xlu0 %v3017
        %v3019 = vpop.xlane.xlu0 %3018
        %v3020 = vmax.f32 %v2840, %v2929
        %3021 = vmax.xlane.f32.xlu0 %v3020
        %v3022 = vpop.xlane.xlu0 %3021
        %v3023 = vmax.f32 %v2843, %v2932
        %3024 = vmax.xlane.f32.xlu0 %v3023
        %v3025 = vpop.xlane.xlu0 %3024
        %v3026 = vmax.f32 %v2845, %v2934
        %3027 = vmax.xlane.f32.xlu0 %v3026
        %v3028 = vpop.xlane.xlu0 %3027
        %v3029 = vmax.f32 %v2848, %v2937
        %3030 = vmax.xlane.f32.xlu0 %v3029
        %v3031 = vpop.xlane.xlu0 %3030
        %v3032 = vmax.f32 %v2850, %v2939
        %3033 = vmax.xlane.f32.xlu0 %v3032
        %v3034 = vpop.xlane.xlu0 %3033
        %v3035 = vmax.f32 %v2853, %v2942
        %3036 = vmax.xlane.f32.xlu0 %v3035
        %v3037 = vpop.xlane.xlu0 %3036
        %v3038 = vmax.f32 %v2855, %v2944
        %3039 = vmax.xlane.f32.xlu0 %v3038
        %v3040 = vpop.xlane.xlu0 %3039
        %v3041 = vmax.f32 %v2858, %v2947
        %3042 = vmax.xlane.f32.xlu0 %v3041
        %v3043 = vpop.xlane.xlu0 %3042
        %v3044 = vmax.f32 %v2860, %v2949
        %3045 = vmax.xlane.f32.xlu0 %v3044
        %v3046 = vpop.xlane.xlu0 %3045
        %v3047 = vsub.f32 %v2783, %v2953
        %v3048 = vsub.f32 %v2872, %v2953
        %v3049 = vsub.f32 %v2785, %v2956
        %v3050 = vsub.f32 %v2874, %v2956
        %v3051 = vsub.f32 %v2788, %v2959
        %v3052 = vsub.f32 %v2877, %v2959
        %v3053 = vsub.f32 %v2790, %v2962
        %v3054 = vsub.f32 %v2879, %v2962
        %v3055 = vsub.f32 %v2793, %v2965
        %v3056 = vsub.f32 %v2882, %v2965
        %v3057 = vsub.f32 %v2795, %v2968
        %v3058 = vsub.f32 %v2884, %v2968
        %v3059 = vsub.f32 %v2798, %v2971
        %v3060 = vsub.f32 %v2887, %v2971
        %v3061 = vsub.f32 %v2800, %v2974
        %v3062 = vsub.f32 %v2889, %v2974
        %v3063 = vsub.f32 %v2803, %v2977
        %v3064 = vsub.f32 %v2892, %v2977
        %v3065 = vsub.f32 %v2805, %v2980
        %v3066 = vsub.f32 %v2894, %v2980
        %v3067 = vsub.f32 %v2808, %v2983
        %v3068 = vsub.f32 %v2897, %v2983
        %v3069 = vsub.f32 %v2810, %v2986
        %v3070 = vsub.f32 %v2899, %v2986
        %v3071 = vsub.f32 %v2813, %v2989
        %v3072 = vsub.f32 %v2902, %v2989
        %v3073 = vsub.f32 %v2815, %v2992
        %v3074 = vsub.f32 %v2904, %v2992
        %v3075 = vsub.f32 %v2818, %v2995
        %v3076 = vsub.f32 %v2907, %v2995
        %v3077 = vsub.f32 %v2820, %v2998
        %v3078 = vsub.f32 %v2909, %v2998
        %v3079 = vsub.f32 %v2823, %v3001
        %v3080 = vsub.f32 %v2912, %v3001
        %v3081 = vsub.f32 %v2825, %v3004
        %v3082 = vsub.f32 %v2914, %v3004
        %v3083 = vsub.f32 %v2828, %v3007
        %v3084 = vsub.f32 %v2917, %v3007
        %v3085 = vsub.f32 %v2830, %v3010
        %v3086 = vsub.f32 %v2919, %v3010
        %v3087 = vsub.f32 %v2833, %v3013
        %v3088 = vsub.f32 %v2922, %v3013
        %v3089 = vsub.f32 %v2835, %v3016
        %v3090 = vsub.f32 %v2924, %v3016
        %v3091 = vsub.f32 %v2838, %v3019
        %v3092 = vsub.f32 %v2927, %v3019
        %v3093 = vsub.f32 %v2840, %v3022
        %v3094 = vsub.f32 %v2929, %v3022
        %v3095 = vsub.f32 %v2843, %v3025
        %v3096 = vsub.f32 %v2932, %v3025
        %v3097 = vsub.f32 %v2845, %v3028
        %v3098 = vsub.f32 %v2934, %v3028
        %v3099 = vsub.f32 %v2848, %v3031
        %v3100 = vsub.f32 %v2937, %v3031
        %v3101 = vsub.f32 %v2850, %v3034
        %v3102 = vsub.f32 %v2939, %v3034
        %v3103 = vsub.f32 %v2853, %v3037
        %v3104 = vsub.f32 %v2942, %v3037
        %v3105 = vsub.f32 %v2855, %v3040
        %v3106 = vsub.f32 %v2944, %v3040
        %v3107 = vsub.f32 %v2858, %v3043
        %v3108 = vsub.f32 %v2947, %v3043
        %v3109 = vsub.f32 %v2860, %v3046
        %v3110 = vsub.f32 %v2949, %v3046
        %v3111 = vmul.f32 %v3047, 1.442695
        %v3112 = vpow.pop %v3111
        %v3113 = vmul.f32 %v3048, 1.442695
        %v3114 = vpow.pop %v3113
        %v3115 = vmul.f32 %v3049, 1.442695
        %v3116 = vpow.pop %v3115
        %v3117 = vmul.f32 %v3050, 1.442695
        %v3118 = vpow.pop %v3117
        %v3119 = vmul.f32 %v3051, 1.442695
        %v3120 = vpow.pop %v3119
        %v3121 = vmul.f32 %v3052, 1.442695
        %v3122 = vpow.pop %v3121
        %v3123 = vmul.f32 %v3053, 1.442695
        %v3124 = vpow.pop %v3123
        %v3125 = vmul.f32 %v3054, 1.442695
        %v3126 = vpow.pop %v3125
        %v3127 = vmul.f32 %v3055, 1.442695
        %v3128 = vpow.pop %v3127
        %v3129 = vmul.f32 %v3056, 1.442695
        %v3130 = vpow.pop %v3129
        %v3131 = vmul.f32 %v3057, 1.442695
        %v3132 = vpow.pop %v3131
        %v3133 = vmul.f32 %v3058, 1.442695
        %v3134 = vpow.pop %v3133
        %v3135 = vmul.f32 %v3059, 1.442695
        %v3136 = vpow.pop %v3135
        %v3137 = vmul.f32 %v3060, 1.442695
        %v3138 = vpow.pop %v3137
        %v3139 = vmul.f32 %v3061, 1.442695
        %v3140 = vpow.pop %v3139
        %v3141 = vmul.f32 %v3062, 1.442695
        %v3142 = vpow.pop %v3141
        %v3143 = vmul.f32 %v3063, 1.442695
        %v3144 = vpow.pop %v3143
        %v3145 = vmul.f32 %v3064, 1.442695
        %v3146 = vpow.pop %v3145
        %v3147 = vmul.f32 %v3065, 1.442695
        %v3148 = vpow.pop %v3147
        %v3149 = vmul.f32 %v3066, 1.442695
        %v3150 = vpow.pop %v3149
        %v3151 = vmul.f32 %v3067, 1.442695
        %v3152 = vpow.pop %v3151
        %v3153 = vmul.f32 %v3068, 1.442695
        %v3154 = vpow.pop %v3153
        %v3155 = vmul.f32 %v3069, 1.442695
        %v3156 = vpow.pop %v3155
        %v3157 = vmul.f32 %v3070, 1.442695
        %v3158 = vpow.pop %v3157
        %v3159 = vmul.f32 %v3071, 1.442695
        %v3160 = vpow.pop %v3159
        %v3161 = vmul.f32 %v3072, 1.442695
        %v3162 = vpow.pop %v3161
        %v3163 = vmul.f32 %v3073, 1.442695
        %v3164 = vpow.pop %v3163
        %v3165 = vmul.f32 %v3074, 1.442695
        %v3166 = vpow.pop %v3165
        %v3167 = vmul.f32 %v3075, 1.442695
        %v3168 = vpow.pop %v3167
        %v3169 = vmul.f32 %v3076, 1.442695
        %v3170 = vpow.pop %v3169
        %v3171 = vmul.f32 %v3077, 1.442695
        %v3172 = vpow.pop %v3171
        %v3173 = vmul.f32 %v3078, 1.442695
        %v3174 = vpow.pop %v3173
        %v3175 = vmul.f32 %v3079, 1.442695
        %v3176 = vpow.pop %v3175
        %v3177 = vmul.f32 %v3080, 1.442695
        %v3178 = vpow.pop %v3177
        %v3179 = vmul.f32 %v3081, 1.442695
        %v3180 = vpow.pop %v3179
        %v3181 = vmul.f32 %v3082, 1.442695
        %v3182 = vpow.pop %v3181
        %v3183 = vmul.f32 %v3083, 1.442695
        %v3184 = vpow.pop %v3183
        %v3185 = vmul.f32 %v3084, 1.442695
        %v3186 = vpow.pop %v3185
        %v3187 = vmul.f32 %v3085, 1.442695
        %v3188 = vpow.pop %v3187
        %v3189 = vmul.f32 %v3086, 1.442695
        %v3190 = vpow.pop %v3189
        %v3191 = vmul.f32 %v3087, 1.442695
        %v3192 = vpow.pop %v3191
        %v3193 = vmul.f32 %v3088, 1.442695
        %v3194 = vpow.pop %v3193
        %v3195 = vmul.f32 %v3089, 1.442695
        %v3196 = vpow.pop %v3195
        %v3197 = vmul.f32 %v3090, 1.442695
        %v3198 = vpow.pop %v3197
        %v3199 = vmul.f32 %v3091, 1.442695
        %v3200 = vpow.pop %v3199
        %v3201 = vmul.f32 %v3092, 1.442695
        %v3202 = vpow.pop %v3201
        %v3203 = vmul.f32 %v3093, 1.442695
        %v3204 = vpow.pop %v3203
        %v3205 = vmul.f32 %v3094, 1.442695
        %v3206 = vpow.pop %v3205
        %v3207 = vmul.f32 %v3095, 1.442695
        %v3208 = vpow.pop %v3207
        %v3209 = vmul.f32 %v3096, 1.442695
        %v3210 = vpow.pop %v3209
        %v3211 = vmul.f32 %v3097, 1.442695
        %v3212 = vpow.pop %v3211
        %v3213 = vmul.f32 %v3098, 1.442695
        %v3214 = vpow.pop %v3213
        %v3215 = vmul.f32 %v3099, 1.442695
        %v3216 = vpow.pop %v3215
        %v3217 = vmul.f32 %v3100, 1.442695
        %v3218 = vpow.pop %v3217
        %v3219 = vmul.f32 %v3101, 1.442695
        %v3220 = vpow.pop %v3219
        %v3221 = vmul.f32 %v3102, 1.442695
        %v3222 = vpow.pop %v3221
        %v3223 = vmul.f32 %v3103, 1.442695
        %v3224 = vpow.pop %v3223
        %v3225 = vmul.f32 %v3104, 1.442695
        %v3226 = vpow.pop %v3225
        %v3227 = vmul.f32 %v3105, 1.442695
        %v3228 = vpow.pop %v3227
        %v3229 = vmul.f32 %v3106, 1.442695
        %v3230 = vpow.pop %v3229
        %v3231 = vmul.f32 %v3107, 1.442695
        %v3232 = vpow.pop %v3231
        %v3233 = vmul.f32 %v3108, 1.442695
        %v3234 = vpow.pop %v3233
        %v3235 = vmul.f32 %v3109, 1.442695
        %v3236 = vpow.pop %v3235
        %v3237 = vmul.f32 %v3110, 1.442695
        %v3238 = vpow.pop %v3237
        %v3239 = vadd.f32 %v3112, %v3114
        %3240 = vadd.xlane.f32.xlu0 %v3239
        %v3241 = vpop.xlane.xlu0 %3240
        %v3242 = vadd.f32 %v3116, %v3118
        %3243 = vadd.xlane.f32.xlu0 %v3242
        %v3244 = vpop.xlane.xlu0 %3243
        %v3245 = vadd.f32 %v3120, %v3122
        %3246 = vadd.xlane.f32.xlu0 %v3245
        %v3247 = vpop.xlane.xlu0 %3246
        %v3248 = vadd.f32 %v3124, %v3126
        %3249 = vadd.xlane.f32.xlu0 %v3248
        %v3250 = vpop.xlane.xlu0 %3249
        %v3251 = vadd.f32 %v3128, %v3130
        %3252 = vadd.xlane.f32.xlu0 %v3251
        %v3253 = vpop.xlane.xlu0 %3252
        %v3254 = vadd.f32 %v3132, %v3134
        %3255 = vadd.xlane.f32.xlu0 %v3254
        %v3256 = vpop.xlane.xlu0 %3255
        %v3257 = vadd.f32 %v3136, %v3138
        %3258 = vadd.xlane.f32.xlu0 %v3257
        %v3259 = vpop.xlane.xlu0 %3258
        %v3260 = vadd.f32 %v3140, %v3142
        %3261 = vadd.xlane.f32.xlu0 %v3260
        %v3262 = vpop.xlane.xlu0 %3261
        %v3263 = vadd.f32 %v3144, %v3146
        %3264 = vadd.xlane.f32.xlu0 %v3263
        %v3265 = vpop.xlane.xlu0 %3264
        %v3266 = vadd.f32 %v3148, %v3150
        %3267 = vadd.xlane.f32.xlu0 %v3266
        %v3268 = vpop.xlane.xlu0 %3267
        %v3269 = vadd.f32 %v3152, %v3154
        %3270 = vadd.xlane.f32.xlu0 %v3269
        %v3271 = vpop.xlane.xlu0 %3270
        %v3272 = vadd.f32 %v3156, %v3158
        %3273 = vadd.xlane.f32.xlu0 %v3272
        %v3274 = vpop.xlane.xlu0 %3273
        %v3275 = vadd.f32 %v3160, %v3162
        %3276 = vadd.xlane.f32.xlu0 %v3275
        %v3277 = vpop.xlane.xlu0 %3276
        %v3278 = vadd.f32 %v3164, %v3166
        %3279 = vadd.xlane.f32.xlu0 %v3278
        %v3280 = vpop.xlane.xlu0 %3279
        %v3281 = vadd.f32 %v3168, %v3170
        %3282 = vadd.xlane.f32.xlu0 %v3281
        %v3283 = vpop.xlane.xlu0 %3282
        %v3284 = vadd.f32 %v3172, %v3174
        %3285 = vadd.xlane.f32.xlu0 %v3284
        %v3286 = vpop.xlane.xlu0 %3285
        %v3287 = vadd.f32 %v3176, %v3178
        %3288 = vadd.xlane.f32.xlu0 %v3287
        %v3289 = vpop.xlane.xlu0 %3288
        %v3290 = vadd.f32 %v3180, %v3182
        %3291 = vadd.xlane.f32.xlu0 %v3290
        %v3292 = vpop.xlane.xlu0 %3291
        %v3293 = vadd.f32 %v3184, %v3186
        %3294 = vadd.xlane.f32.xlu0 %v3293
        %v3295 = vpop.xlane.xlu0 %3294
        %v3296 = vadd.f32 %v3188, %v3190
        %3297 = vadd.xlane.f32.xlu0 %v3296
        %v3298 = vpop.xlane.xlu0 %3297
        %v3299 = vadd.f32 %v3192, %v3194
        %3300 = vadd.xlane.f32.xlu0 %v3299
        %v3301 = vpop.xlane.xlu0 %3300
        %v3302 = vadd.f32 %v3196, %v3198
        %3303 = vadd.xlane.f32.xlu0 %v3302
        %v3304 = vpop.xlane.xlu0 %3303
        %v3305 = vadd.f32 %v3200, %v3202
        %3306 = vadd.xlane.f32.xlu0 %v3305
        %v3307 = vpop.xlane.xlu0 %3306
        %v3308 = vadd.f32 %v3204, %v3206
        %3309 = vadd.xlane.f32.xlu0 %v3308
        %v3310 = vpop.xlane.xlu0 %3309
        %v3311 = vadd.f32 %v3208, %v3210
        %3312 = vadd.xlane.f32.xlu0 %v3311
        %v3313 = vpop.xlane.xlu0 %3312
        %v3314 = vadd.f32 %v3212, %v3214
        %3315 = vadd.xlane.f32.xlu0 %v3314
        %v3316 = vpop.xlane.xlu0 %3315
        %v3317 = vadd.f32 %v3216, %v3218
        %3318 = vadd.xlane.f32.xlu0 %v3317
        %v3319 = vpop.xlane.xlu0 %3318
        %v3320 = vadd.f32 %v3220, %v3222
        %3321 = vadd.xlane.f32.xlu0 %v3320
        %v3322 = vpop.xlane.xlu0 %3321
        %v3323 = vadd.f32 %v3224, %v3226
        %3324 = vadd.xlane.f32.xlu0 %v3323
        %v3325 = vpop.xlane.xlu0 %3324
        %v3326 = vadd.f32 %v3228, %v3230
        %3327 = vadd.xlane.f32.xlu0 %v3326
        %v3328 = vpop.xlane.xlu0 %3327
        %v3329 = vadd.f32 %v3232, %v3234
        %3330 = vadd.xlane.f32.xlu0 %v3329
        %v3331 = vpop.xlane.xlu0 %3330
        %v3332 = vadd.f32 %v3236, %v3238
        %3333 = vadd.xlane.f32.xlu0 %v3332
        %v3334 = vpop.xlane.xlu0 %3333
        %v3335 = vrcp.pop %v3241
        %v3336 = vrcp.pop %v3244
        %v3337 = vrcp.pop %v3247
        %v3338 = vrcp.pop %v3250
        %v3339 = vrcp.pop %v3253
        %v3340 = vrcp.pop %v3256
        %v3341 = vrcp.pop %v3259
        %v3342 = vrcp.pop %v3262
        %v3343 = vrcp.pop %v3265
        %v3344 = vrcp.pop %v3268
        %v3345 = vrcp.pop %v3271
        %v3346 = vrcp.pop %v3274
        %v3347 = vrcp.pop %v3277
        %v3348 = vrcp.pop %v3280
        %v3349 = vrcp.pop %v3283
        %v3350 = vrcp.pop %v3286
        %v3351 = vrcp.pop %v3289
        %v3352 = vrcp.pop %v3292
        %v3353 = vrcp.pop %v3295
        %v3354 = vrcp.pop %v3298
        %v3355 = vrcp.pop %v3301
        %v3356 = vrcp.pop %v3304
        %v3357 = vrcp.pop %v3307
        %v3358 = vrcp.pop %v3310
        %v3359 = vrcp.pop %v3313
        %v3360 = vrcp.pop %v3316
        %v3361 = vrcp.pop %v3319
        %v3362 = vrcp.pop %v3322
        %v3363 = vrcp.pop %v3325
        %v3364 = vrcp.pop %v3328
        %v3365 = vrcp.pop %v3331
        %v3366 = vrcp.pop %v3334
        %v3367 = vmul.f32 %v3112, %v3335
        %v3368 = vmul.f32 %v3114, %v3335
        %v3369 = vmul.f32 %v3116, %v3336
        %v3370 = vmul.f32 %v3118, %v3336
        %v3371 = vmul.f32 %v3120, %v3337
        %v3372 = vmul.f32 %v3122, %v3337
        %v3373 = vmul.f32 %v3124, %v3338
        %v3374 = vmul.f32 %v3126, %v3338
        %v3375 = vmul.f32 %v3128, %v3339
        %v3376 = vmul.f32 %v3130, %v3339
        %v3377 = vmul.f32 %v3132, %v3340
        %v3378 = vmul.f32 %v3134, %v3340
        %v3379 = vmul.f32 %v3136, %v3341
        %v3380 = vmul.f32 %v3138, %v3341
        %v3381 = vmul.f32 %v3140, %v3342
        %v3382 = vmul.f32 %v3142, %v3342
        %v3383 = vmul.f32 %v3144, %v3343
        %v3384 = vmul.f32 %v3146, %v3343
        %v3385 = vmul.f32 %v3148, %v3344
        %v3386 = vmul.f32 %v3150, %v3344
        %v3387 = vmul.f32 %v3152, %v3345
        %v3388 = vmul.f32 %v3154, %v3345
        %v3389 = vmul.f32 %v3156, %v3346
        %v3390 = vmul.f32 %v3158, %v3346
        %v3391 = vmul.f32 %v3160, %v3347
        %v3392 = vmul.f32 %v3162, %v3347
        %v3393 = vmul.f32 %v3164, %v3348
        %v3394 = vmul.f32 %v3166, %v3348
        %v3395 = vmul.f32 %v3168, %v3349
        %v3396 = vmul.f32 %v3170, %v3349
        %v3397 = vmul.f32 %v3172, %v3350
        %v3398 = vmul.f32 %v3174, %v3350
        %v3399 = vmul.f32 %v3176, %v3351
        %v3400 = vmul.f32 %v3178, %v3351
        %v3401 = vmul.f32 %v3180, %v3352
        %v3402 = vmul.f32 %v3182, %v3352
        %v3403 = vmul.f32 %v3184, %v3353
        %v3404 = vmul.f32 %v3186, %v3353
        %v3405 = vmul.f32 %v3188, %v3354
        %v3406 = vmul.f32 %v3190, %v3354
        %v3407 = vmul.f32 %v3192, %v3355
        %v3408 = vmul.f32 %v3194, %v3355
        %v3409 = vmul.f32 %v3196, %v3356
        %v3410 = vmul.f32 %v3198, %v3356
        %v3411 = vmul.f32 %v3200, %v3357
        %v3412 = vmul.f32 %v3202, %v3357
        %v3413 = vmul.f32 %v3204, %v3358
        %v3414 = vmul.f32 %v3206, %v3358
        %v3415 = vmul.f32 %v3208, %v3359
        %v3416 = vmul.f32 %v3210, %v3359
        %v3417 = vmul.f32 %v3212, %v3360
        %v3418 = vmul.f32 %v3214, %v3360
        %v3419 = vmul.f32 %v3216, %v3361
        %v3420 = vmul.f32 %v3218, %v3361
        %v3421 = vmul.f32 %v3220, %v3362
        %v3422 = vmul.f32 %v3222, %v3362
        %v3423 = vmul.f32 %v3224, %v3363
        %v3424 = vmul.f32 %v3226, %v3363
        %v3425 = vmul.f32 %v3228, %v3364
        %v3426 = vmul.f32 %v3230, %v3364
        %v3427 = vmul.f32 %v3232, %v3365
        %v3428 = vmul.f32 %v3234, %v3365
        %v3429 = vmul.f32 %v3236, %v3366
        %v3430 = vmul.f32 %v3238, %v3366
        %v3431 = vpack.c.bf16 %v3368, %v3367
        %v3432 = vpack.c.bf16 %v3370, %v3369
        %v3433 = vpack.c.bf16 %v3372, %v3371
        %v3434 = vpack.c.bf16 %v3374, %v3373
        %v3435 = vpack.c.bf16 %v3376, %v3375
        %v3436 = vpack.c.bf16 %v3378, %v3377
        %v3437 = vpack.c.bf16 %v3380, %v3379
        %v3438 = vpack.c.bf16 %v3382, %v3381
        %v3439 = vpack.c.bf16 %v3384, %v3383
        %v3440 = vpack.c.bf16 %v3386, %v3385
        %v3441 = vpack.c.bf16 %v3388, %v3387
        %v3442 = vpack.c.bf16 %v3390, %v3389
        %v3443 = vpack.c.bf16 %v3392, %v3391
        %v3444 = vpack.c.bf16 %v3394, %v3393
        %v3445 = vpack.c.bf16 %v3396, %v3395
        %v3446 = vpack.c.bf16 %v3398, %v3397
        %v3447 = vpack.c.bf16 %v3400, %v3399
        %v3448 = vpack.c.bf16 %v3402, %v3401
        %v3449 = vpack.c.bf16 %v3404, %v3403
        %v3450 = vpack.c.bf16 %v3406, %v3405
        %v3451 = vpack.c.bf16 %v3408, %v3407
        %v3452 = vpack.c.bf16 %v3410, %v3409
        %v3453 = vpack.c.bf16 %v3412, %v3411
        %v3454 = vpack.c.bf16 %v3414, %v3413
        %v3455 = vpack.c.bf16 %v3416, %v3415
        %v3456 = vpack.c.bf16 %v3418, %v3417
        %v3457 = vpack.c.bf16 %v3420, %v3419
        %v3458 = vpack.c.bf16 %v3422, %v3421
        %v3459 = vpack.c.bf16 %v3424, %v3423
        %v3460 = vpack.c.bf16 %v3426, %v3425
        %v3461 = vpack.c.bf16 %v3428, %v3427
        %v3462 = vpack.c.bf16 %v3430, %v3429
        %3463 = vst [vmem:[%s448] sm:$0xff] %v3431
        %3464 = vst [vmem:[%s448 + $0x8] sm:$0xff] %v3432
        %3465 = vst [vmem:[%s448 + $0x10] sm:$0xff] %v3433
        %3466 = vst [vmem:[%s448 + $0x18] sm:$0xff] %v3434
        %3467 = vst [vmem:[%s448 + $0x20] sm:$0xff] %v3435
        %3468 = vst [vmem:[%s448 + $0x28] sm:$0xff] %v3436
        %3469 = vst [vmem:[%s448 + $0x30] sm:$0xff] %v3437
        %3470 = vst [vmem:[%s448 + $0x38] sm:$0xff] %v3438
        %3471 = vst [vmem:[%s448 + $0x40] sm:$0xff] %v3439
        %3472 = vst [vmem:[%s448 + $0x48] sm:$0xff] %v3440
        %3473 = vst [vmem:[%s448 + $0x50] sm:$0xff] %v3441
        %3474 = vst [vmem:[%s448 + $0x58] sm:$0xff] %v3442
        %3475 = vst [vmem:[%s448 + $0x60] sm:$0xff] %v3443
        %3476 = vst [vmem:[%s448 + $0x68] sm:$0xff] %v3444
        %3477 = vst [vmem:[%s448 + $0x70] sm:$0xff] %v3445
        %3478 = vst [vmem:[%s448 + $0x78] sm:$0xff] %v3446
        %3479 = vst [vmem:[%s448 + $0x80] sm:$0xff] %v3447
        %3480 = vst [vmem:[%s448 + $0x88] sm:$0xff] %v3448
        %3481 = vst [vmem:[%s448 + $0x90] sm:$0xff] %v3449
        %3482 = vst [vmem:[%s448 + $0x98] sm:$0xff] %v3450
        %3483 = vst [vmem:[%s448 + $0xa0] sm:$0xff] %v3451
        %3484 = vst [vmem:[%s448 + $0xa8] sm:$0xff] %v3452
        %3485 = vst [vmem:[%s448 + $0xb0] sm:$0xff] %v3453
        %3486 = vst [vmem:[%s448 + $0xb8] sm:$0xff] %v3454
        %3487 = vst [vmem:[%s448 + $0xc0] sm:$0xff] %v3455
        %3488 = vst [vmem:[%s448 + $0xc8] sm:$0xff] %v3456
        %3489 = vst [vmem:[%s448 + $0xd0] sm:$0xff] %v3457
        %3490 = vst [vmem:[%s448 + $0xd8] sm:$0xff] %v3458
        %3491 = vst [vmem:[%s448 + $0xe0] sm:$0xff] %v3459
        %3492 = vst [vmem:[%s448 + $0xe8] sm:$0xff] %v3460
        %3493 = vst [vmem:[%s448 + $0xf0] sm:$0xff] %v3461
        %3494 = vst [vmem:[%s448 + $0xf8] sm:$0xff] %v3462
        %v3495 = vmul.f32 %v2046, %v2046
        %v3496 = vmul.f32 %v2048, %v2048
        %v3497 = vmul.f32 %v2051, %v2051
        %v3498 = vmul.f32 %v2053, %v2053
        %v3499 = vmul.f32 %v2056, %v2056
        %v3500 = vmul.f32 %v2058, %v2058
        %v3501 = vmul.f32 %v2061, %v2061
        %v3502 = vmul.f32 %v2063, %v2063
        %v3503 = vmul.f32 %v2066, %v2066
        %v3504 = vmul.f32 %v2068, %v2068
        %v3505 = vmul.f32 %v2071, %v2071
        %v3506 = vmul.f32 %v2073, %v2073
        %v3507 = vmul.f32 %v2076, %v2076
        %v3508 = vmul.f32 %v2078, %v2078
        %v3509 = vmul.f32 %v2081, %v2081
        %v3510 = vmul.f32 %v2083, %v2083
        %v3511 = vmul.f32 %v2086, %v2086
        %v3512 = vmul.f32 %v2088, %v2088
        %v3513 = vmul.f32 %v2091, %v2091
        %v3514 = vmul.f32 %v2093, %v2093
        %v3515 = vmul.f32 %v2096, %v2096
        %v3516 = vmul.f32 %v2098, %v2098
        %v3517 = vmul.f32 %v2101, %v2101
        %v3518 = vmul.f32 %v2103, %v2103
        %v3519 = vmul.f32 %v2106, %v2106
        %v3520 = vmul.f32 %v2108, %v2108
        %v3521 = vmul.f32 %v2111, %v2111
        %v3522 = vmul.f32 %v2113, %v2113
        %v3523 = vmul.f32 %v2116, %v2116
        %v3524 = vmul.f32 %v2118, %v2118
        %v3525 = vmul.f32 %v2121, %v2121
        %v3526 = vmul.f32 %v2123, %v2123
        %v3527 = vsub.f32 %v2224, 1.0
        %v3528 = vsub.f32 %v2226, 1.0
        %v3529 = vsub.f32 %v2229, 1.0
        %v3530 = vsub.f32 %v2231, 1.0
        %v3531 = vsub.f32 %v2234, 1.0
        %v3532 = vsub.f32 %v2236, 1.0
        %v3533 = vsub.f32 %v2239, 1.0
        %v3534 = vsub.f32 %v2241, 1.0
        %v3535 = vsub.f32 %v2244, 1.0
        %v3536 = vsub.f32 %v2246, 1.0
        %v3537 = vsub.f32 %v2249, 1.0
        %v3538 = vsub.f32 %v2251, 1.0
        %v3539 = vsub.f32 %v2254, 1.0
        %v3540 = vsub.f32 %v2256, 1.0
        %v3541 = vsub.f32 %v2259, 1.0
        %v3542 = vsub.f32 %v2261, 1.0
        %v3543 = vsub.f32 %v2264, 1.0
        %v3544 = vsub.f32 %v2266, 1.0
        %v3545 = vsub.f32 %v2269, 1.0
        %v3546 = vsub.f32 %v2271, 1.0
        %v3547 = vsub.f32 %v2274, 1.0
        %v3548 = vsub.f32 %v2276, 1.0
        %v3549 = vsub.f32 %v2279, 1.0
        %v3550 = vsub.f32 %v2281, 1.0
        %v3551 = vsub.f32 %v2284, 1.0
        %v3552 = vsub.f32 %v2286, 1.0
        %v3553 = vsub.f32 %v2289, 1.0
        %v3554 = vsub.f32 %v2291, 1.0
        %v3555 = vsub.f32 %v2294, 1.0
        %v3556 = vsub.f32 %v2296, 1.0
        %v3557 = vsub.f32 %v2299, 1.0
        %v3558 = vsub.f32 %v2301, 1.0
        %v3559 = vmul.f32 %v3527, %v3527
        %v3560 = vmul.f32 %v3528, %v3528
        %v3561 = vmul.f32 %v3529, %v3529
        %v3562 = vmul.f32 %v3530, %v3530
        %v3563 = vmul.f32 %v3531, %v3531
        %v3564 = vmul.f32 %v3532, %v3532
        %v3565 = vmul.f32 %v3533, %v3533
        %v3566 = vmul.f32 %v3534, %v3534
        %v3567 = vmul.f32 %v3535, %v3535
        %v3568 = vmul.f32 %v3536, %v3536
        %v3569 = vmul.f32 %v3537, %v3537
        %v3570 = vmul.f32 %v3538, %v3538
        %v3571 = vmul.f32 %v3539, %v3539
        %v3572 = vmul.f32 %v3540, %v3540
        %v3573 = vmul.f32 %v3541, %v3541
        %v3574 = vmul.f32 %v3542, %v3542
        %v3575 = vmul.f32 %v3543, %v3543
        %v3576 = vmul.f32 %v3544, %v3544
        %v3577 = vmul.f32 %v3545, %v3545
        %v3578 = vmul.f32 %v3546, %v3546
        %v3579 = vmul.f32 %v3547, %v3547
        %v3580 = vmul.f32 %v3548, %v3548
        %v3581 = vmul.f32 %v3549, %v3549
        %v3582 = vmul.f32 %v3550, %v3550
        %v3583 = vmul.f32 %v3551, %v3551
        %v3584 = vmul.f32 %v3552, %v3552
        %v3585 = vmul.f32 %v3553, %v3553
        %v3586 = vmul.f32 %v3554, %v3554
        %v3587 = vmul.f32 %v3555, %v3555
        %v3588 = vmul.f32 %v3556, %v3556
        %v3589 = vmul.f32 %v3557, %v3557
        %v3590 = vmul.f32 %v3558, %v3558
        %v3591 = vadd.f32 %v3495, %v3559
        %v3592 = vadd.f32 %v3496, %v3560
        %v3593 = vadd.f32 %v3497, %v3561
        %v3594 = vadd.f32 %v3498, %v3562
        %v3595 = vadd.f32 %v3499, %v3563
        %v3596 = vadd.f32 %v3500, %v3564
        %v3597 = vadd.f32 %v3501, %v3565
        %v3598 = vadd.f32 %v3502, %v3566
        %v3599 = vadd.f32 %v3503, %v3567
        %v3600 = vadd.f32 %v3504, %v3568
        %v3601 = vadd.f32 %v3505, %v3569
        %v3602 = vadd.f32 %v3506, %v3570
        %v3603 = vadd.f32 %v3507, %v3571
        %v3604 = vadd.f32 %v3508, %v3572
        %v3605 = vadd.f32 %v3509, %v3573
        %v3606 = vadd.f32 %v3510, %v3574
        %v3607 = vadd.f32 %v3511, %v3575
        %v3608 = vadd.f32 %v3512, %v3576
        %v3609 = vadd.f32 %v3513, %v3577
        %v3610 = vadd.f32 %v3514, %v3578
        %v3611 = vadd.f32 %v3515, %v3579
        %v3612 = vadd.f32 %v3516, %v3580
        %v3613 = vadd.f32 %v3517, %v3581
        %v3614 = vadd.f32 %v3518, %v3582
        %v3615 = vadd.f32 %v3519, %v3583
        %v3616 = vadd.f32 %v3520, %v3584
        %v3617 = vadd.f32 %v3521, %v3585
        %v3618 = vadd.f32 %v3522, %v3586
        %v3619 = vadd.f32 %v3523, %v3587
        %v3620 = vadd.f32 %v3524, %v3588
        %v3621 = vadd.f32 %v3525, %v3589
        %v3622 = vadd.f32 %v3526, %v3590
        %v3623 = vsub.f32 %v3591, 1.0
        %v3624 = vsub.f32 %v3592, 1.0
        %v3625 = vsub.f32 %v3593, 1.0
        %v3626 = vsub.f32 %v3594, 1.0
        %v3627 = vsub.f32 %v3595, 1.0
        %v3628 = vsub.f32 %v3596, 1.0
        %v3629 = vsub.f32 %v3597, 1.0
        %v3630 = vsub.f32 %v3598, 1.0
        %v3631 = vsub.f32 %v3599, 1.0
        %v3632 = vsub.f32 %v3600, 1.0
        %v3633 = vsub.f32 %v3601, 1.0
        %v3634 = vsub.f32 %v3602, 1.0
        %v3635 = vsub.f32 %v3603, 1.0
        %v3636 = vsub.f32 %v3604, 1.0
        %v3637 = vsub.f32 %v3605, 1.0
        %v3638 = vsub.f32 %v3606, 1.0
        %v3639 = vsub.f32 %v3607, 1.0
        %v3640 = vsub.f32 %v3608, 1.0
        %v3641 = vsub.f32 %v3609, 1.0
        %v3642 = vsub.f32 %v3610, 1.0
        %v3643 = vsub.f32 %v3611, 1.0
        %v3644 = vsub.f32 %v3612, 1.0
        %v3645 = vsub.f32 %v3613, 1.0
        %v3646 = vsub.f32 %v3614, 1.0
        %v3647 = vsub.f32 %v3615, 1.0
        %v3648 = vsub.f32 %v3616, 1.0
        %v3649 = vsub.f32 %v3617, 1.0
        %v3650 = vsub.f32 %v3618, 1.0
        %v3651 = vsub.f32 %v3619, 1.0
        %v3652 = vsub.f32 %v3620, 1.0
        %v3653 = vsub.f32 %v3621, 1.0
        %v3654 = vsub.f32 %v3622, 1.0
        %v3655 = vlog2.pop %v3559
        %v3656 = vmul.f32 %v3655, 0.6931472
        %v3657 = vlog2.pop %v3560
        %v3658 = vmul.f32 %v3657, 0.6931472
        %v3659 = vlog2.pop %v3561
        %v3660 = vmul.f32 %v3659, 0.6931472
        %v3661 = vlog2.pop %v3562
        %v3662 = vmul.f32 %v3661, 0.6931472
        %v3663 = vlog2.pop %v3563
        %v3664 = vmul.f32 %v3663, 0.6931472
        %v3665 = vlog2.pop %v3564
        %v3666 = vmul.f32 %v3665, 0.6931472
        %v3667 = vlog2.pop %v3565
        %v3668 = vmul.f32 %v3667, 0.6931472
        %v3669 = vlog2.pop %v3566
        %v3670 = vmul.f32 %v3669, 0.6931472
        %v3671 = vlog2.pop %v3567
        %v3672 = vmul.f32 %v3671, 0.6931472
        %v3673 = vlog2.pop %v3568
        %v3674 = vmul.f32 %v3673, 0.6931472
        %v3675 = vlog2.pop %v3569
        %v3676 = vmul.f32 %v3675, 0.6931472
        %v3677 = vlog2.pop %v3570
        %v3678 = vmul.f32 %v3677, 0.6931472
        %v3679 = vlog2.pop %v3571
        %v3680 = vmul.f32 %v3679, 0.6931472
        %v3681 = vlog2.pop %v3572
        %v3682 = vmul.f32 %v3681, 0.6931472
        %v3683 = vlog2.pop %v3573
        %v3684 = vmul.f32 %v3683, 0.6931472
        %v3685 = vlog2.pop %v3574
        %v3686 = vmul.f32 %v3685, 0.6931472
        %v3687 = vlog2.pop %v3575
        %v3688 = vmul.f32 %v3687, 0.6931472
        %v3689 = vlog2.pop %v3576
        %v3690 = vmul.f32 %v3689, 0.6931472
        %v3691 = vlog2.pop %v3577
        %v3692 = vmul.f32 %v3691, 0.6931472
        %v3693 = vlog2.pop %v3578
        %v3694 = vmul.f32 %v3693, 0.6931472
        %v3695 = vlog2.pop %v3579
        %v3696 = vmul.f32 %v3695, 0.6931472
        %v3697 = vlog2.pop %v3580
        %v3698 = vmul.f32 %v3697, 0.6931472
        %v3699 = vlog2.pop %v3581
        %v3700 = vmul.f32 %v3699, 0.6931472
        %v3701 = vlog2.pop %v3582
        %v3702 = vmul.f32 %v3701, 0.6931472
        %v3703 = vlog2.pop %v3583
        %v3704 = vmul.f32 %v3703, 0.6931472
        %v3705 = vlog2.pop %v3584
        %v3706 = vmul.f32 %v3705, 0.6931472
        %v3707 = vlog2.pop %v3585
        %v3708 = vmul.f32 %v3707, 0.6931472
        %v3709 = vlog2.pop %v3586
        %v3710 = vmul.f32 %v3709, 0.6931472
        %v3711 = vlog2.pop %v3587
        %v3712 = vmul.f32 %v3711, 0.6931472
        %v3713 = vlog2.pop %v3588
        %v3714 = vmul.f32 %v3713, 0.6931472
        %v3715 = vlog2.pop %v3589
        %v3716 = vmul.f32 %v3715, 0.6931472
        %v3717 = vlog2.pop %v3590
        %v3718 = vmul.f32 %v3717, 0.6931472
        %v3719 = vsub.f32 %v3623, %v3656
        %v3720 = vsub.f32 %v3624, %v3658
        %v3721 = vsub.f32 %v3625, %v3660
        %v3722 = vsub.f32 %v3626, %v3662
        %v3723 = vsub.f32 %v3627, %v3664
        %v3724 = vsub.f32 %v3628, %v3666
        %v3725 = vsub.f32 %v3629, %v3668
        %v3726 = vsub.f32 %v3630, %v3670
        %v3727 = vsub.f32 %v3631, %v3672
        %v3728 = vsub.f32 %v3632, %v3674
        %v3729 = vsub.f32 %v3633, %v3676
        %v3730 = vsub.f32 %v3634, %v3678
        %v3731 = vsub.f32 %v3635, %v3680
        %v3732 = vsub.f32 %v3636, %v3682
        %v3733 = vsub.f32 %v3637, %v3684
        %v3734 = vsub.f32 %v3638, %v3686
        %v3735 = vsub.f32 %v3639, %v3688
        %v3736 = vsub.f32 %v3640, %v3690
        %v3737 = vsub.f32 %v3641, %v3692
        %v3738 = vsub.f32 %v3642, %v3694
        %v3739 = vsub.f32 %v3643, %v3696
        %v3740 = vsub.f32 %v3644, %v3698
        %v3741 = vsub.f32 %v3645, %v3700
        %v3742 = vsub.f32 %v3646, %v3702
        %v3743 = vsub.f32 %v3647, %v3704
        %v3744 = vsub.f32 %v3648, %v3706
        %v3745 = vsub.f32 %v3649, %v3708
        %v3746 = vsub.f32 %v3650, %v3710
        %v3747 = vsub.f32 %v3651, %v3712
        %v3748 = vsub.f32 %v3652, %v3714
        %v3749 = vsub.f32 %v3653, %v3716
        %v3750 = vsub.f32 %v3654, %v3718
        %v3751 = vmul.f32 %v3719, 0.5
        %v3752 = vmul.f32 %v3720, 0.5
        %v3753 = vmul.f32 %v3721, 0.5
        %v3754 = vmul.f32 %v3722, 0.5
        %v3755 = vmul.f32 %v3723, 0.5
        %v3756 = vmul.f32 %v3724, 0.5
        %v3757 = vmul.f32 %v3725, 0.5
        %v3758 = vmul.f32 %v3726, 0.5
        %v3759 = vmul.f32 %v3727, 0.5
        %v3760 = vmul.f32 %v3728, 0.5
        %v3761 = vmul.f32 %v3729, 0.5
        %v3762 = vmul.f32 %v3730, 0.5
        %v3763 = vmul.f32 %v3731, 0.5
        %v3764 = vmul.f32 %v3732, 0.5
        %v3765 = vmul.f32 %v3733, 0.5
        %v3766 = vmul.f32 %v3734, 0.5
        %v3767 = vmul.f32 %v3735, 0.5
        %v3768 = vmul.f32 %v3736, 0.5
        %v3769 = vmul.f32 %v3737, 0.5
        %v3770 = vmul.f32 %v3738, 0.5
        %v3771 = vmul.f32 %v3739, 0.5
        %v3772 = vmul.f32 %v3740, 0.5
        %v3773 = vmul.f32 %v3741, 0.5
        %v3774 = vmul.f32 %v3742, 0.5
        %v3775 = vmul.f32 %v3743, 0.5
        %v3776 = vmul.f32 %v3744, 0.5
        %v3777 = vmul.f32 %v3745, 0.5
        %v3778 = vmul.f32 %v3746, 0.5
        %v3779 = vmul.f32 %v3747, 0.5
        %v3780 = vmul.f32 %v3748, 0.5
        %v3781 = vmul.f32 %v3749, 0.5
        %v3782 = vmul.f32 %v3750, 0.5
        %v3783 = vadd.f32 %v3751, %v3752
        %v3784 = vadd.f32 %v3783, %v3753
        %v3785 = vadd.f32 %v3784, %v3754
        %v3786 = vadd.f32 %v3785, %v3755
        %v3787 = vadd.f32 %v3786, %v3756
        %v3788 = vadd.f32 %v3787, %v3757
        %v3789 = vadd.f32 %v3788, %v3758
        %v3790 = vadd.f32 %v3789, %v3759
        %v3791 = vadd.f32 %v3790, %v3760
        %v3792 = vadd.f32 %v3791, %v3761
        %v3793 = vadd.f32 %v3792, %v3762
        %v3794 = vadd.f32 %v3793, %v3763
        %v3795 = vadd.f32 %v3794, %v3764
        %v3796 = vadd.f32 %v3795, %v3765
        %v3797 = vadd.f32 %v3796, %v3766
        %v3798 = vadd.f32 %v3797, %v3767
        %v3799 = vadd.f32 %v3798, %v3768
        %v3800 = vadd.f32 %v3799, %v3769
        %v3801 = vadd.f32 %v3800, %v3770
        %v3802 = vadd.f32 %v3801, %v3771
        %v3803 = vadd.f32 %v3802, %v3772
        %v3804 = vadd.f32 %v3803, %v3773
        %v3805 = vadd.f32 %v3804, %v3774
        %v3806 = vadd.f32 %v3805, %v3775
        %v3807 = vadd.f32 %v3806, %v3776
        %v3808 = vadd.f32 %v3807, %v3777
        %v3809 = vadd.f32 %v3808, %v3778
        %v3810 = vadd.f32 %v3809, %v3779
        %v3811 = vadd.f32 %v3810, %v3780
        %v3812 = vadd.f32 %v3811, %v3781
        %v3813 = vadd.f32 %v3812, %v3782
        %3814 = vadd.xlane.f32.xlu0 %v3813
        %v3815 = vpop.xlane.xlu0 %3814
        %v3816 = vrot.slane %v3815, 4
        %v3817 = vadd.f32 %v3815, %v3816
        %v3818 = vrot.slane %v3817, 2
        %v3819 = vadd.f32 %v3817, %v3818
        %v3820 = vrot.slane %v3819, 1
        %v3821 = vadd.f32 %v3819, %v3820
        %s3822 = vtos %v3821
        %v3823 = vunpack.c.l.bf16 %v459
        %v3824 = vunpack.c.h.bf16 %v459
        %v3825 = vunpack.c.l.bf16 %v460
        %v3826 = vunpack.c.h.bf16 %v460
        %v3827 = vunpack.c.l.bf16 %v461
        %v3828 = vunpack.c.h.bf16 %v461
        %v3829 = vunpack.c.l.bf16 %v462
        %v3830 = vunpack.c.h.bf16 %v462
        %v3831 = vunpack.c.l.bf16 %v463
        %v3832 = vunpack.c.h.bf16 %v463
        %v3833 = vunpack.c.l.bf16 %v464
        %v3834 = vunpack.c.h.bf16 %v464
        %v3835 = vunpack.c.l.bf16 %v465
        %v3836 = vunpack.c.h.bf16 %v465
        %v3837 = vunpack.c.l.bf16 %v466
        %v3838 = vunpack.c.h.bf16 %v466
        %v3839 = vunpack.c.l.bf16 %v467
        %v3840 = vunpack.c.h.bf16 %v467
        %v3841 = vunpack.c.l.bf16 %v468
        %v3842 = vunpack.c.h.bf16 %v468
        %v3843 = vunpack.c.l.bf16 %v469
        %v3844 = vunpack.c.h.bf16 %v469
        %v3845 = vunpack.c.l.bf16 %v470
        %v3846 = vunpack.c.h.bf16 %v470
        %v3847 = vunpack.c.l.bf16 %v471
        %v3848 = vunpack.c.h.bf16 %v471
        %v3849 = vunpack.c.l.bf16 %v472
        %v3850 = vunpack.c.h.bf16 %v472
        %v3851 = vunpack.c.l.bf16 %v473
        %v3852 = vunpack.c.h.bf16 %v473
        %v3853 = vunpack.c.l.bf16 %v474
        %v3854 = vunpack.c.h.bf16 %v474
        %v3855 = vunpack.c.l.bf16 %v475
        %v3856 = vunpack.c.h.bf16 %v475
        %v3857 = vunpack.c.l.bf16 %v476
        %v3858 = vunpack.c.h.bf16 %v476
        %v3859 = vunpack.c.l.bf16 %v477
        %v3860 = vunpack.c.h.bf16 %v477
        %v3861 = vunpack.c.l.bf16 %v478
        %v3862 = vunpack.c.h.bf16 %v478
        %v3863 = vunpack.c.l.bf16 %v479
        %v3864 = vunpack.c.h.bf16 %v479
        %v3865 = vunpack.c.l.bf16 %v480
        %v3866 = vunpack.c.h.bf16 %v480
        %v3867 = vunpack.c.l.bf16 %v481
        %v3868 = vunpack.c.h.bf16 %v481
        %v3869 = vunpack.c.l.bf16 %v482
        %v3870 = vunpack.c.h.bf16 %v482
        %v3871 = vunpack.c.l.bf16 %v483
        %v3872 = vunpack.c.h.bf16 %v483
        %v3873 = vunpack.c.l.bf16 %v484
        %v3874 = vunpack.c.h.bf16 %v484
        %v3875 = vunpack.c.l.bf16 %v485
        %v3876 = vunpack.c.h.bf16 %v485
        %v3877 = vunpack.c.l.bf16 %v486
        %v3878 = vunpack.c.h.bf16 %v486
        %v3879 = vunpack.c.l.bf16 %v487
        %v3880 = vunpack.c.h.bf16 %v487
        %v3881 = vunpack.c.l.bf16 %v488
        %v3882 = vunpack.c.h.bf16 %v488
        %v3883 = vunpack.c.l.bf16 %v489
        %v3884 = vunpack.c.h.bf16 %v489
        %v3885 = vunpack.c.l.bf16 %v490
        %v3886 = vunpack.c.h.bf16 %v490
        %v3887 = vsub.f32 %v3823, %v3367
        %v3888 = vsub.f32 %v3824, %v3368
        %v3889 = vsub.f32 %v3825, %v3369
        %v3890 = vsub.f32 %v3826, %v3370
        %v3891 = vsub.f32 %v3827, %v3371
        %v3892 = vsub.f32 %v3828, %v3372
        %v3893 = vsub.f32 %v3829, %v3373
        %v3894 = vsub.f32 %v3830, %v3374
        %v3895 = vsub.f32 %v3831, %v3375
        %v3896 = vsub.f32 %v3832, %v3376
        %v3897 = vsub.f32 %v3833, %v3377
        %v3898 = vsub.f32 %v3834, %v3378
        %v3899 = vsub.f32 %v3835, %v3379
        %v3900 = vsub.f32 %v3836, %v3380
        %v3901 = vsub.f32 %v3837, %v3381
        %v3902 = vsub.f32 %v3838, %v3382
        %v3903 = vsub.f32 %v3839, %v3383
        %v3904 = vsub.f32 %v3840, %v3384
        %v3905 = vsub.f32 %v3841, %v3385
        %v3906 = vsub.f32 %v3842, %v3386
        %v3907 = vsub.f32 %v3843, %v3387
        %v3908 = vsub.f32 %v3844, %v3388
        %v3909 = vsub.f32 %v3845, %v3389
        %v3910 = vsub.f32 %v3846, %v3390
        %v3911 = vsub.f32 %v3847, %v3391
        %v3912 = vsub.f32 %v3848, %v3392
        %v3913 = vsub.f32 %v3849, %v3393
        %v3914 = vsub.f32 %v3850, %v3394
        %v3915 = vsub.f32 %v3851, %v3395
        %v3916 = vsub.f32 %v3852, %v3396
        %v3917 = vsub.f32 %v3853, %v3397
        %v3918 = vsub.f32 %v3854, %v3398
        %v3919 = vsub.f32 %v3855, %v3399
        %v3920 = vsub.f32 %v3856, %v3400
        %v3921 = vsub.f32 %v3857, %v3401
        %v3922 = vsub.f32 %v3858, %v3402
        %v3923 = vsub.f32 %v3859, %v3403
        %v3924 = vsub.f32 %v3860, %v3404
        %v3925 = vsub.f32 %v3861, %v3405
        %v3926 = vsub.f32 %v3862, %v3406
        %v3927 = vsub.f32 %v3863, %v3407
        %v3928 = vsub.f32 %v3864, %v3408
        %v3929 = vsub.f32 %v3865, %v3409
        %v3930 = vsub.f32 %v3866, %v3410
        %v3931 = vsub.f32 %v3867, %v3411
        %v3932 = vsub.f32 %v3868, %v3412
        %v3933 = vsub.f32 %v3869, %v3413
        %v3934 = vsub.f32 %v3870, %v3414
        %v3935 = vsub.f32 %v3871, %v3415
        %v3936 = vsub.f32 %v3872, %v3416
        %v3937 = vsub.f32 %v3873, %v3417
        %v3938 = vsub.f32 %v3874, %v3418
        %v3939 = vsub.f32 %v3875, %v3419
        %v3940 = vsub.f32 %v3876, %v3420
        %v3941 = vsub.f32 %v3877, %v3421
        %v3942 = vsub.f32 %v3878, %v3422
        %v3943 = vsub.f32 %v3879, %v3423
        %v3944 = vsub.f32 %v3880, %v3424
        %v3945 = vsub.f32 %v3881, %v3425
        %v3946 = vsub.f32 %v3882, %v3426
        %v3947 = vsub.f32 %v3883, %v3427
        %v3948 = vsub.f32 %v3884, %v3428
        %v3949 = vsub.f32 %v3885, %v3429
        %v3950 = vsub.f32 %v3886, %v3430
        %v3951 = vmul.f32 %v3887, %v3887
        %v3952 = vmul.f32 %v3888, %v3888
        %v3953 = vmul.f32 %v3889, %v3889
        %v3954 = vmul.f32 %v3890, %v3890
        %v3955 = vmul.f32 %v3891, %v3891
        %v3956 = vmul.f32 %v3892, %v3892
        %v3957 = vmul.f32 %v3893, %v3893
        %v3958 = vmul.f32 %v3894, %v3894
        %v3959 = vmul.f32 %v3895, %v3895
        %v3960 = vmul.f32 %v3896, %v3896
        %v3961 = vmul.f32 %v3897, %v3897
        %v3962 = vmul.f32 %v3898, %v3898
        %v3963 = vmul.f32 %v3899, %v3899
        %v3964 = vmul.f32 %v3900, %v3900
        %v3965 = vmul.f32 %v3901, %v3901
        %v3966 = vmul.f32 %v3902, %v3902
        %v3967 = vmul.f32 %v3903, %v3903
        %v3968 = vmul.f32 %v3904, %v3904
        %v3969 = vmul.f32 %v3905, %v3905
        %v3970 = vmul.f32 %v3906, %v3906
        %v3971 = vmul.f32 %v3907, %v3907
        %v3972 = vmul.f32 %v3908, %v3908
        %v3973 = vmul.f32 %v3909, %v3909
        %v3974 = vmul.f32 %v3910, %v3910
        %v3975 = vmul.f32 %v3911, %v3911
        %v3976 = vmul.f32 %v3912, %v3912
        %v3977 = vmul.f32 %v3913, %v3913
        %v3978 = vmul.f32 %v3914, %v3914
        %v3979 = vmul.f32 %v3915, %v3915
        %v3980 = vmul.f32 %v3916, %v3916
        %v3981 = vmul.f32 %v3917, %v3917
        %v3982 = vmul.f32 %v3918, %v3918
        %v3983 = vmul.f32 %v3919, %v3919
        %v3984 = vmul.f32 %v3920, %v3920
        %v3985 = vmul.f32 %v3921, %v3921
        %v3986 = vmul.f32 %v3922, %v3922
        %v3987 = vmul.f32 %v3923, %v3923
        %v3988 = vmul.f32 %v3924, %v3924
        %v3989 = vmul.f32 %v3925, %v3925
        %v3990 = vmul.f32 %v3926, %v3926
        %v3991 = vmul.f32 %v3927, %v3927
        %v3992 = vmul.f32 %v3928, %v3928
        %v3993 = vmul.f32 %v3929, %v3929
        %v3994 = vmul.f32 %v3930, %v3930
        %v3995 = vmul.f32 %v3931, %v3931
        %v3996 = vmul.f32 %v3932, %v3932
        %v3997 = vmul.f32 %v3933, %v3933
        %v3998 = vmul.f32 %v3934, %v3934
        %v3999 = vmul.f32 %v3935, %v3935
        %v4000 = vmul.f32 %v3936, %v3936
        %v4001 = vmul.f32 %v3937, %v3937
        %v4002 = vmul.f32 %v3938, %v3938
        %v4003 = vmul.f32 %v3939, %v3939
        %v4004 = vmul.f32 %v3940, %v3940
        %v4005 = vmul.f32 %v3941, %v3941
        %v4006 = vmul.f32 %v3942, %v3942
        %v4007 = vmul.f32 %v3943, %v3943
        %v4008 = vmul.f32 %v3944, %v3944
        %v4009 = vmul.f32 %v3945, %v3945
        %v4010 = vmul.f32 %v3946, %v3946
        %v4011 = vmul.f32 %v3947, %v3947
        %v4012 = vmul.f32 %v3948, %v3948
        %v4013 = vmul.f32 %v3949, %v3949
        %v4014 = vmul.f32 %v3950, %v3950
        %v4015 = vadd.f32 %v3951, %v3952
        %v4016 = vadd.f32 %v4015, %v3953
        %v4017 = vadd.f32 %v4016, %v3954
        %v4018 = vadd.f32 %v4017, %v3955
        %v4019 = vadd.f32 %v4018, %v3956
        %v4020 = vadd.f32 %v4019, %v3957
        %v4021 = vadd.f32 %v4020, %v3958
        %v4022 = vadd.f32 %v4021, %v3959
        %v4023 = vadd.f32 %v4022, %v3960
        %v4024 = vadd.f32 %v4023, %v3961
        %v4025 = vadd.f32 %v4024, %v3962
        %v4026 = vadd.f32 %v4025, %v3963
        %v4027 = vadd.f32 %v4026, %v3964
        %v4028 = vadd.f32 %v4027, %v3965
        %v4029 = vadd.f32 %v4028, %v3966
        %v4030 = vadd.f32 %v4029, %v3967
        %v4031 = vadd.f32 %v4030, %v3968
        %v4032 = vadd.f32 %v4031, %v3969
        %v4033 = vadd.f32 %v4032, %v3970
        %v4034 = vadd.f32 %v4033, %v3971
        %v4035 = vadd.f32 %v4034, %v3972
        %v4036 = vadd.f32 %v4035, %v3973
        %v4037 = vadd.f32 %v4036, %v3974
        %v4038 = vadd.f32 %v4037, %v3975
        %v4039 = vadd.f32 %v4038, %v3976
        %v4040 = vadd.f32 %v4039, %v3977
        %v4041 = vadd.f32 %v4040, %v3978
        %v4042 = vadd.f32 %v4041, %v3979
        %v4043 = vadd.f32 %v4042, %v3980
        %v4044 = vadd.f32 %v4043, %v3981
        %v4045 = vadd.f32 %v4044, %v3982
        %v4046 = vadd.f32 %v4045, %v3983
        %v4047 = vadd.f32 %v4046, %v3984
        %v4048 = vadd.f32 %v4047, %v3985
        %v4049 = vadd.f32 %v4048, %v3986
        %v4050 = vadd.f32 %v4049, %v3987
        %v4051 = vadd.f32 %v4050, %v3988
        %v4052 = vadd.f32 %v4051, %v3989
        %v4053 = vadd.f32 %v4052, %v3990
        %v4054 = vadd.f32 %v4053, %v3991
        %v4055 = vadd.f32 %v4054, %v3992
        %v4056 = vadd.f32 %v4055, %v3993
        %v4057 = vadd.f32 %v4056, %v3994
        %v4058 = vadd.f32 %v4057, %v3995
        %v4059 = vadd.f32 %v4058, %v3996
        %v4060 = vadd.f32 %v4059, %v3997
        %v4061 = vadd.f32 %v4060, %v3998
        %v4062 = vadd.f32 %v4061, %v3999
        %v4063 = vadd.f32 %v4062, %v4000
        %v4064 = vadd.f32 %v4063, %v4001
        %v4065 = vadd.f32 %v4064, %v4002
        %v4066 = vadd.f32 %v4065, %v4003
        %v4067 = vadd.f32 %v4066, %v4004
        %v4068 = vadd.f32 %v4067, %v4005
        %v4069 = vadd.f32 %v4068, %v4006
        %v4070 = vadd.f32 %v4069, %v4007
        %v4071 = vadd.f32 %v4070, %v4008
        %v4072 = vadd.f32 %v4071, %v4009
        %v4073 = vadd.f32 %v4072, %v4010
        %v4074 = vadd.f32 %v4073, %v4011
        %v4075 = vadd.f32 %v4074, %v4012
        %v4076 = vadd.f32 %v4075, %v4013
        %v4077 = vadd.f32 %v4076, %v4014
        %4078 = vadd.xlane.f32.xlu0 %v4077
        %v4079 = vpop.xlane.xlu0 %4078
        %v4080 = vrot.slane %v4079, 4
        %v4081 = vadd.f32 %v4079, %v4080
        %v4082 = vrot.slane %v4081, 2
        %v4083 = vadd.f32 %v4081, %v4082
        %v4084 = vrot.slane %v4083, 1
        %v4085 = vadd.f32 %v4083, %v4084
        %s4086 = vtos %v4085
        %v4087 = vlaneseq
        %v4088 = vand.u32 %v4087, 127
        %vm4089 = vcmp.eq.s32.totalorder %v4088, 0
        %vm4090 = vcmp.eq.s32.totalorder %v4088, 1
        %v4091 = vstv %s4086
        %v4092 = vsel %vm4090, %v4091, 0.0
        %v4093 = vstv %s3822
        %v4094 = vsel %vm4089, %v4093, %v4092
        %4095 = vst [vmem:[%s455] sm:$0xff] %v4094
        %s4096 = sand.u32 %s220, 1
        %s4097 = scalar_lea.sflag [#allocation4], %s4096
        %s4098 = sand.u32 %s220, 1
        %s4099 = smul.addr %s4098, 256
        %s4100 = scalar_lea.vmem [#allocation11], %s4099
        %s4101 = sand.u32 %s246, 1
        %s4102 = scalar_lea.sflag [#allocation13], %s4101
        %s4103 = sand.u32 %s246, 1
        %s4104 = smul.addr %s4103, 8
        %s4105 = scalar_lea.vmem [#allocation12], %s4104
        // Predicated region
        $region73: #{tpu_custom_call.1} parent=51 // pred_check
          %p4106 = pneg %p230
        $region74: #{tpu_custom_call.1} parent=51 // pred_check_branch
          %4108 = sbr.rel (%p4106) target = $region76
        $region75: #{tpu_custom_call.1} parent=51 // pred_region
          %s4109 = smul.u32 32, %s34
          %4111 = vsyncadd %s4097, 0
          %s4112 = smul.addr %s4109, 2
          %s4113 = smul.addr %s4112, 4
          %s4114 = scalar_lea.hbm %s8, %s4113
          %s4115 = sshll.u32 %s4100, 4
          %s4116 = int_to_ptr.vmem [resolvable:$true] %s4115
          %s4117 = sshll.u32 %s4114, 4
          %s4118 = int_to_ptr.hbm [resolvable:$true] %s4117
          %4123 = dma.vmem_to_hbm [thread:$0]  %s4116, 4096, %s4118, %s4097, 128, 128, 8
        $region76: #{tpu_custom_call.1} parent=51 // pred_fallthru
          _
        // Predicated region
        $region77: #{tpu_custom_call.1} parent=51 // pred_check
          %p4124 = pneg %p256
        $region78: #{tpu_custom_call.1} parent=51 // pred_check_branch
          %4126 = sbr.rel (%p4124) target = $region80
        $region79: #{tpu_custom_call.1} parent=51 // pred_region
          %4128 = vsyncadd %s4102, 0
          %s4129 = smul.addr %s34, 8
          %s4130 = scalar_lea.hbm %s9, %s4129
          %s4132 = sshll.u32 %s4105, 4
          %s4133 = int_to_ptr.vmem [resolvable:$true] %s4132
          %s4134 = sshll.u32 %s4130, 4
          %s4135 = int_to_ptr.hbm [resolvable:$true] %s4134
          %4137 = dma.vmem_to_hbm [thread:$0]  %s4133, 128, %s4135, %s4102
        $region80: #{tpu_custom_call.1} parent=51 // pred_fallthru
          _
      $region52: #{tpu_custom_call.1} parent=5 // pred_fallthru
        _
      %p4138 = scmp.le.s32.totalorder 2, %s29
      // Predicated region
      $region81: #{tpu_custom_call.1} parent=5 // pred_check
        %p4139 = pneg %p4138
      $region82: #{tpu_custom_call.1} parent=5 // pred_check_branch
        %4141 = sbr.rel (%p4139) target = $region84
      $region83: #{tpu_custom_call.1} parent=5 // pred_region
        %s4142 = ssub.s32 %s29, 2
        // Predicated region
        $region85: #{tpu_custom_call.1} parent=83 // pred_check
          %p4143 = pneg %p236
        $region86: #{tpu_custom_call.1} parent=83 // pred_check_branch
          %4145 = sbr.rel (%p4143) target = $region88
        $region87: #{tpu_custom_call.1} parent=83 // pred_region
          %s4146 = sand.u32 %s221, 1
          %s4147 = scalar_lea.sflag [#allocation4], %s4146
          %s4148 = sand.u32 %s221, 1
          %s4149 = smul.addr %s4148, 256
          %s4150 = scalar_lea.vmem [#allocation11], %s4149
          %4152 = dma.done %s4147, 4096
        $region88: #{tpu_custom_call.1} parent=83 // pred_fallthru
          _
        // Predicated region
        $region89: #{tpu_custom_call.1} parent=83 // pred_check
          %p4153 = pneg %p262
        $region90: #{tpu_custom_call.1} parent=83 // pred_check_branch
          %4155 = sbr.rel (%p4153) target = $region92
        $region91: #{tpu_custom_call.1} parent=83 // pred_region
          %s4156 = sand.u32 %s247, 1
          %s4157 = scalar_lea.sflag [#allocation13], %s4156
          %s4158 = sand.u32 %s247, 1
          %s4159 = smul.addr %s4158, 8
          %s4160 = scalar_lea.vmem [#allocation12], %s4159
          %4162 = dma.done %s4157, 128
        $region92: #{tpu_custom_call.1} parent=83 // pred_fallthru
          _
      $region84: #{tpu_custom_call.1} parent=5 // pred_fallthru
        _
    $region6: #{tpu_custom_call.1} parent=1 // loop_footer
      %s33 = sadd.s32 1, %s29
    $region7: #{tpu_custom_call.1} parent=1 // loop_footer_branch
      %28 = sbr.rel target = $region3
    $region8: #{tpu_custom_call.1} parent=1 // loop_exit
      _
    %4163 = vsyncpa [#allocation3], 1
    %s4164 = scalar_lea.sflag [#allocation3], 1
    %4165 = vsyncpa %s4164, 1
    %4166 = vsyncpa [#allocation6], 1
    %s4167 = scalar_lea.sflag [#allocation6], 1
    %4168 = vsyncpa %s4167, 1
    %4169 = vsyncpa [#allocation9], 1
    %4170 = vsyncpa [#allocation4], 1
    %s4171 = scalar_lea.sflag [#allocation4], 1
    %4172 = vsyncpa %s4171, 1
    %4173 = vsyncpa [#allocation13], 1
    %s4174 = scalar_lea.sflag [#allocation13], 1
    %4175 = vsyncpa %s4174, 1

</llo_original>
